<compile_context>
chip_gen: v6e
topology: v6e:2x2x1
jax: 0.10.0
libtpu: 0.0.40
codegen_flags: <defaults>
</compile_context>

<pallas_src>
import jax
import jax.numpy as jnp
from jax.experimental import pallas as pl
from jax.experimental.pallas import tpu as pltpu


def _round_up(x, m):
    return (x + m - 1) // m * m


def dkt_lstm_chunk_kernel(g_ref, whh_ref, wout_ref, bout_ref, y_ref,
                          h_sc, c_sc, hist_sc):
    """One time-chunk of the DKT LSTM + chunk-level output projection.

    g_ref    : (TC, Bb, 4*Hp)  precomputed input->gate terms
                               (emb_row @ W_ih^T + b_ih + b_hh), gathered per (t, b)
    whh_ref  : (Hp, 4*Hp)      hidden->gate weights (pre-transposed, padded)
    wout_ref : (Hp, Cp)        output projection weights (pre-transposed, padded)
    bout_ref : (1, Cp)         output projection bias (padded)
    y_ref    : (TC, Bb, Cp)    sigmoid probabilities for this chunk
    h_sc/c_sc: (Bb, Hp)        LSTM state carried across time chunks (VMEM)
    hist_sc  : (TC, Bb, Hp)    per-chunk history of hidden states (VMEM)
    """
    # New batch block => new sequences: reset the recurrent state.
    @pl.when(pl.program_id(1) == 0)
    def _():
        h_sc[...] = jnp.zeros_like(h_sc)
        c_sc[...] = jnp.zeros_like(c_sc)

    TC, Bb, Hp = hist_sc.shape

    def step(t, carry):
        h_prev = h_sc[...]                              # (Bb, Hp)
        c_prev = c_sc[...]                              # (Bb, Hp)
        # gates = (x_t @ W_ih^T + b_ih + b_hh) [precomputed] + h_prev @ W_hh^T
        gates = g_ref[t] + jnp.dot(h_prev, whh_ref[...],
                                   preferred_element_type=jnp.float32)
        # PyTorch gate order: i, f, g, o — slices are 128-lane aligned (Hp%128==0).
        i_g = jax.nn.sigmoid(gates[:, 0 * Hp:1 * Hp])
        f_g = jax.nn.sigmoid(gates[:, 1 * Hp:2 * Hp])
        g_g = jnp.tanh(gates[:, 2 * Hp:3 * Hp])
        o_g = jax.nn.sigmoid(gates[:, 3 * Hp:4 * Hp])
        c_new = f_g * c_prev + i_g * g_g
        h_new = o_g * jnp.tanh(c_new)
        c_sc[...] = c_new
        h_sc[...] = h_new
        hist_sc[t] = h_new
        return carry

    jax.lax.fori_loop(0, TC, step, 0, unroll=True)

    # Off the serial path: one big (TC*Bb, Hp) @ (Hp, Cp) matmul + bias +
    # sigmoid, then a single lane-dense store (Cp is a multiple of 128).
    # Dropout is identity in eval mode.
    hs = hist_sc[...].reshape(TC * Bb, Hp)
    logits = jnp.dot(hs, wout_ref[...],
                     preferred_element_type=jnp.float32) + bout_ref[...]
    y_ref[...] = jax.nn.sigmoid(logits).reshape(TC, Bb, -1).astype(y_ref.dtype)


def dkt_forward(q, r, params, num_c, *, time_chunk=None):
    """DKT forward. q, r: (B, T) int32. Returns (B, T, num_c) float32."""
    emb_table = params["emb"]          # (2*num_c, E)
    w_ih_t = params["w_ih_t"]          # (E, 4H)
    w_hh_t = params["w_hh_t"]          # (H, 4H)
    b_gates = params["b_gates"]        # (1, 4H) == b_ih + b_hh
    w_out_t = params["w_out_t"]        # (H, C)
    b_out = params["b_out"]            # (1, C)

    B, T = q.shape
    H = w_hh_t.shape[0]
    C = w_out_t.shape[1]

    # Hardware-aligned padded sizes.
    Hp = _round_up(H, 128)             # lane-align gate slices / MXU N dim
    Cp = _round_up(C, 128)             # lane-dense output store
    Bp = _round_up(B, 8)               # sublane-align batch

    TC = time_chunk if time_chunk is not None else min(16, _round_up(T, 8))
    Tp = _round_up(T, TC)
    n_chunks = Tp // TC

    # Optional 2-way batch split across TensorCores (v7x megacore) — only when
    # each half is still a useful MXU M dimension.
    n_b = 2 if (Bp >= 256 and Bp % 16 == 0) else 1
    Bb = Bp // n_b

    # ---- One-time parameter prep (plain-JAX glue, off the serial path) ----
    # Hoist the input->gate matmul: proj[k] = emb[k] @ W_ih^T + (b_ih + b_hh).
    proj = jnp.dot(emb_table, w_ih_t,
                   preferred_element_type=jnp.float32) + b_gates      # (2C, 4H)
    # Zero-pad each per-gate block to Hp (padded hidden units stay exactly 0
    # through the recurrence and do not touch real outputs).
    proj_pad = jnp.pad(proj.reshape(2 * num_c, 4, H),
                       ((0, 0), (0, 0), (0, Hp - H))).reshape(2 * num_c, 4 * Hp)
    whh_pad = jnp.pad(w_hh_t.reshape(H, 4, H),
                      ((0, Hp - H), (0, 0), (0, Hp - H))).reshape(Hp, 4 * Hp)
    wout_pad = jnp.pad(w_out_t, ((0, Hp - H), (0, Cp - C)))            # (Hp, Cp)
    bout_pad = jnp.pad(b_out, ((0, 0), (0, Cp - C)))                   # (1, Cp)

    # Time-major gather of the precomputed gate contributions (no transpose of
    # a large activation tensor). Padding uses index 0; padded rows/steps are
    # sliced off at the end and cannot contaminate real rows.
    x_idx = (q + num_c * r).astype(jnp.int32)                          # (B, T)
    x_idx_tm = jnp.pad(x_idx.T, ((0, Tp - T), (0, Bp - B)))            # (Tp, Bp)
    g = jnp.take(proj_pad, x_idx_tm, axis=0)                           # (Tp, Bp, 4*Hp)

    # TODO(synk): for v6e throughput, g / whh_pad could be cast to bfloat16
    # (keeping f32 accumulation + f32 gate math); kept f32 here for exactness.

    grid_spec = pltpu.PrefetchScalarGridSpec(
        num_scalar_prefetch=0,
        grid=(n_b, n_chunks),
        in_specs=[
            pl.BlockSpec((TC, Bb, 4 * Hp), lambda bi, ci: (ci, bi, 0)),  # g chunk
            pl.BlockSpec((Hp, 4 * Hp), lambda bi, ci: (0, 0)),           # W_hh^T
            pl.BlockSpec((Hp, Cp), lambda bi, ci: (0, 0)),               # W_out^T
            pl.BlockSpec((1, Cp), lambda bi, ci: (0, 0)),                # b_out
        ],
        out_specs=pl.BlockSpec((TC, Bb, Cp), lambda bi, ci: (ci, bi, 0)),
        scratch_shapes=[
            pltpu.VMEM((Bb, Hp), jnp.float32),       # h state
            pltpu.VMEM((Bb, Hp), jnp.float32),       # c state
            pltpu.VMEM((TC, Bb, Hp), jnp.float32),   # h history for the chunk
        ],
    )

    y_pad = pl.pallas_call(
        dkt_lstm_chunk_kernel,
        out_shape=jax.ShapeDtypeStruct((Tp, Bp, Cp), jnp.float32),
        grid_spec=grid_spec,
        compiler_params=pltpu.CompilerParams(
            # batch blocks are independent ("parallel"), time is sequential.
            dimension_semantics=("parallel", "arbitrary")),
    )(g, whh_pad, wout_pad, bout_pad)

    # (Tp, Bp, Cp) -> (B, T, C) batch-first, drop padding.
    return jnp.transpose(y_pad[:T, :B, :C], (1, 0, 2))


def init_params(key, num_c, emb_size):
    """Deterministic synthetic parameters matching the PyTorch shapes."""
    H = emb_size
    ks = jax.random.split(key, 7)
    scale = 0.1
    emb = scale * jax.random.normal(ks[0], (2 * num_c, emb_size), jnp.float32)
    w_ih = scale * jax.random.normal(ks[1], (4 * H, emb_size), jnp.float32)
    w_hh = scale * jax.random.normal(ks[2], (4 * H, H), jnp.float32)
    b_ih = scale * jax.random.normal(ks[3], (4 * H,), jnp.float32)
    b_hh = scale * jax.random.normal(ks[4], (4 * H,), jnp.float32)
    w_out = scale * jax.random.normal(ks[5], (num_c, H), jnp.float32)
    b_out = scale * jax.random.normal(ks[6], (num_c,), jnp.float32)
    return {
        "emb": emb,
        "w_ih_t": w_ih.T,                         # (E, 4H)
        "w_hh_t": w_hh.T,                         # (H, 4H)
        "b_gates": (b_ih + b_hh)[None, :],        # (1, 4H)
        "w_out_t": w_out.T,                       # (H, C)
        "b_out": b_out[None, :],                  # (1, C)
    }


def dkt_reference(q, r, params, num_c):
    """Pure-JAX reference (mirrors PyTorch LSTM semantics) for sanity check."""
    emb_table = params["emb"]
    w_ih_t, w_hh_t = params["w_ih_t"], params["w_hh_t"]
    b_gates = params["b_gates"][0]
    w_out_t, b_out = params["w_out_t"], params["b_out"][0]
    H = w_hh_t.shape[0]

    x_idx = q + num_c * r
    xemb = jnp.take(emb_table, x_idx, axis=0)          # (B, T, E)
    B, T, _ = xemb.shape

    def step(carry, x_t):
        h, c = carry
        gates = x_t @ w_ih_t + h @ w_hh_t + b_gates
        i = jax.nn.sigmoid(gates[:, :H])
        f = jax.nn.sigmoid(gates[:, H:2 * H])
        g = jnp.tanh(gates[:, 2 * H:3 * H])
        o = jax.nn.sigmoid(gates[:, 3 * H:])
        c = f * c + i * g
        h = o * jnp.tanh(c)
        return (h, c), h

    h0 = jnp.zeros((B, H), jnp.float32)
    c0 = jnp.zeros((B, H), jnp.float32)
    _, hs = jax.lax.scan(step, (h0, c0), jnp.transpose(xemb, (1, 0, 2)))
    hs = jnp.transpose(hs, (1, 0, 2))                   # (B, T, H)
    return jax.nn.sigmoid(hs @ w_out_t + b_out)


if __name__ == "__main__":
    num_c = 16
    emb_size = 32
    batch = 2
    seq_len = 8

    key = jax.random.PRNGKey(0)
    k_param, k_q, k_r = jax.random.split(key, 3)
    params = init_params(k_param, num_c, emb_size)

    q = jax.random.randint(k_q, (batch, seq_len), 0, num_c, dtype=jnp.int32)
    r = jax.random.randint(k_r, (batch, seq_len), 0, 2, dtype=jnp.int32)

    y = jax.block_until_ready(dkt_forward(q, r, params, num_c))
    y_ref = jax.block_until_ready(dkt_reference(q, r, params, num_c))

    assert y.shape == (batch, seq_len, num_c)
    max_err = float(jnp.max(jnp.abs(y - y_ref)))
    assert jnp.allclose(y, y_ref, atol=1e-4, rtol=1e-4), f"mismatch: {max_err}"

    print("KERNEL_OK")
</pallas_src>

<mosaic_0001>
module attributes {stable_mosaic.version = 11 : i64} {
  func.func @dkt_lstm_chunk_kernel(%arg0: i32, %arg1: i32, %arg2: memref<8x8x512xf32, #tpu.memory_space<vmem>>, %arg3: memref<128x512xf32, #tpu.memory_space<vmem>>, %arg4: memref<128x128xf32, #tpu.memory_space<vmem>>, %arg5: memref<1x128xf32, #tpu.memory_space<vmem>>, %arg6: memref<8x8x128xf32, #tpu.memory_space<vmem>>, %arg7: memref<8x128xf32, #tpu.memory_space<vmem>>, %arg8: memref<8x128xf32, #tpu.memory_space<vmem>>, %arg9: memref<8x8x128xf32, #tpu.memory_space<vmem>>) attributes {dimension_semantics = [#tpu.dimension_semantics<parallel>, #tpu.dimension_semantics<arbitrary>], iteration_bounds = array<i64: 1, 1>, scalar_prefetch = 0 : i64, scratch_operands = 3 : i64, tpu.core_type = #tpu.core_type<tc>, window_params = [{transform_indices = @transform_0, window_bounds = array<i64: 8, 8, 512>}, {pipeline_mode = #tpu.pipeline_mode<synchronous>, transform_indices = @transform_1, window_bounds = array<i64: 128, 512>}, {pipeline_mode = #tpu.pipeline_mode<synchronous>, transform_indices = @transform_2, window_bounds = array<i64: 128, 128>}, {pipeline_mode = #tpu.pipeline_mode<synchronous>, transform_indices = @transform_3, window_bounds = array<i64: 1, 128>}, {transform_indices = @transform_4, window_bounds = array<i64: 8, 8, 128>}]} {
    %c0_i32 = arith.constant 0 : i32
    %0 = arith.cmpi eq, %arg1, %c0_i32 : i32
    %1 = arith.extui %0 : i1 to i32
    %c0_i32_0 = arith.constant 0 : i32
    %2 = arith.cmpi ne, %1, %c0_i32_0 : i32
    scf.if %2 {
      %cst_156 = arith.constant 0.000000e+00 : f32
      %329 = vector.broadcast %cst_156 : f32 to vector<8x128xf32>
      %c0_157 = arith.constant 0 : index
      %c0_158 = arith.constant 0 : index
      %330 = vector.load %arg7[%c0_157, %c0_158] : memref<8x128xf32, #tpu.memory_space<vmem>>, vector<8x128xf32>
      tpu.vector_store %arg7[%c0_157, %c0_158], %329 {strides = array<i32>} : memref<8x128xf32, #tpu.memory_space<vmem>>, vector<8x128xf32>,
      %cst_159 = arith.constant 0.000000e+00 : f32
      %331 = vector.broadcast %cst_159 : f32 to vector<8x128xf32>
      %c0_160 = arith.constant 0 : index
      %c0_161 = arith.constant 0 : index
      %332 = vector.load %arg8[%c0_160, %c0_161] : memref<8x128xf32, #tpu.memory_space<vmem>>, vector<8x128xf32>
      tpu.vector_store %arg8[%c0_160, %c0_161], %331 {strides = array<i32>} : memref<8x128xf32, #tpu.memory_space<vmem>>, vector<8x128xf32>,
    } else {
    }
    %c0_i32_1 = arith.constant 0 : i32
    %c0 = arith.constant 0 : index
    %c0_2 = arith.constant 0 : index
    %3 = vector.load %arg7[%c0, %c0_2] : memref<8x128xf32, #tpu.memory_space<vmem>>, vector<8x128xf32>
    %c0_3 = arith.constant 0 : index
    %c0_4 = arith.constant 0 : index
    %4 = vector.load %arg8[%c0_3, %c0_4] : memref<8x128xf32, #tpu.memory_space<vmem>>, vector<8x128xf32>
    %5 = arith.index_cast %c0_i32_1 : i32 to index
    %c0_5 = arith.constant 0 : index
    %c0_6 = arith.constant 0 : index
    %6 = vector.load %arg2[%5, %c0_5, %c0_6] : memref<8x8x512xf32, #tpu.memory_space<vmem>>, vector<1x8x512xf32>
    %7 = vector.shape_cast %6 : vector<1x8x512xf32> to vector<8x512xf32>
    %c0_7 = arith.constant 0 : index
    %c0_8 = arith.constant 0 : index
    %8 = vector.load %arg3[%c0_7, %c0_8] : memref<128x512xf32, #tpu.memory_space<vmem>>, vector<128x512xf32>
    %cst = arith.constant dense<0.000000e+00> : vector<8x512xf32>
    %9 = tpu.matmul %3, %8, %cst {dimension_numbers = #tpu.dot_dimension_numbers<[1], [0], [0], [1], [0, 0, 1, 1], [], []>} : vector<8x128xf32>, vector<128x512xf32>, vector<8x512xf32> -> vector<8x512xf32>
    %10 = arith.addf %7, %9 : vector<8x512xf32>
    %11 = vector.extract_strided_slice %10 {offsets = [0, 0], sizes = [8, 128], strides = [1, 1]} : vector<8x512xf32> to vector<8x128xf32>
    %12 = arith.negf %11 : vector<8x128xf32>
    %13 = math.exp %12 : vector<8x128xf32>
    %cst_9 = arith.constant 1.000000e+00 : f32
    %14 = vector.broadcast %cst_9 : f32 to vector<8x128xf32>
    %15 = arith.addf %14, %13 : vector<8x128xf32>
    %16 = arith.divf %14, %15 : vector<8x128xf32>
    %17 = vector.extract_strided_slice %10 {offsets = [0, 128], sizes = [8, 128], strides = [1, 1]} : vector<8x512xf32> to vector<8x128xf32>
    %18 = arith.negf %17 : vector<8x128xf32>
    %19 = math.exp %18 : vector<8x128xf32>
    %cst_10 = arith.constant 1.000000e+00 : f32
    %20 = vector.broadcast %cst_10 : f32 to vector<8x128xf32>
    %21 = arith.addf %20, %19 : vector<8x128xf32>
    %22 = arith.divf %20, %21 : vector<8x128xf32>
    %23 = vector.extract_strided_slice %10 {offsets = [0, 256], sizes = [8, 128], strides = [1, 1]} : vector<8x512xf32> to vector<8x128xf32>
    %24 = math.tanh %23 : vector<8x128xf32>
    %25 = vector.extract_strided_slice %10 {offsets = [0, 384], sizes = [8, 128], strides = [1, 1]} : vector<8x512xf32> to vector<8x128xf32>
    %26 = arith.negf %25 : vector<8x128xf32>
    %27 = math.exp %26 : vector<8x128xf32>
    %cst_11 = arith.constant 1.000000e+00 : f32
    %28 = vector.broadcast %cst_11 : f32 to vector<8x128xf32>
    %29 = arith.addf %28, %27 : vector<8x128xf32>
    %30 = arith.divf %28, %29 : vector<8x128xf32>
    %31 = arith.mulf %22, %4 : vector<8x128xf32>
    %32 = arith.mulf %16, %24 : vector<8x128xf32>
    %33 = arith.addf %31, %32 : vector<8x128xf32>
    %34 = math.tanh %33 : vector<8x128xf32>
    %35 = arith.mulf %30, %34 : vector<8x128xf32>
    %c0_12 = arith.constant 0 : index
    %c0_13 = arith.constant 0 : index
    %36 = vector.load %arg8[%c0_12, %c0_13] : memref<8x128xf32, #tpu.memory_space<vmem>>, vector<8x128xf32>
    tpu.vector_store %arg8[%c0_12, %c0_13], %33 {strides = array<i32>} : memref<8x128xf32, #tpu.memory_space<vmem>>, vector<8x128xf32>,
    %c0_14 = arith.constant 0 : index
    %c0_15 = arith.constant 0 : index
    %37 = vector.load %arg7[%c0_14, %c0_15] : memref<8x128xf32, #tpu.memory_space<vmem>>, vector<8x128xf32>
    tpu.vector_store %arg7[%c0_14, %c0_15], %35 {strides = array<i32>} : memref<8x128xf32, #tpu.memory_space<vmem>>, vector<8x128xf32>,
    %38 = arith.index_cast %c0_i32_1 : i32 to index
    %c0_16 = arith.constant 0 : index
    %c0_17 = arith.constant 0 : index
    %39 = vector.load %arg9[%38, %c0_16, %c0_17] : memref<8x8x128xf32, #tpu.memory_space<vmem>>, vector<1x8x128xf32>
    %40 = vector.shape_cast %39 : vector<1x8x128xf32> to vector<8x128xf32>
    %41 = vector.shape_cast %35 : vector<8x128xf32> to vector<1x8x128xf32>
    tpu.vector_store %arg9[%38, %c0_16, %c0_17], %41 {strides = array<i32>} : memref<8x8x128xf32, #tpu.memory_space<vmem>>, vector<1x8x128xf32>,
    %c1_i32 = arith.constant 1 : i32
    %c0_18 = arith.constant 0 : index
    %c0_19 = arith.constant 0 : index
    %42 = vector.load %arg7[%c0_18, %c0_19] : memref<8x128xf32, #tpu.memory_space<vmem>>, vector<8x128xf32>
    %c0_20 = arith.constant 0 : index
    %c0_21 = arith.constant 0 : index
    %43 = vector.load %arg8[%c0_20, %c0_21] : memref<8x128xf32, #tpu.memory_space<vmem>>, vector<8x128xf32>
    %44 = arith.index_cast %c1_i32 : i32 to index
    %c0_22 = arith.constant 0 : index
    %c0_23 = arith.constant 0 : index
    %45 = vector.load %arg2[%44, %c0_22, %c0_23] : memref<8x8x512xf32, #tpu.memory_space<vmem>>, vector<1x8x512xf32>
    %46 = vector.shape_cast %45 : vector<1x8x512xf32> to vector<8x512xf32>
    %c0_24 = arith.constant 0 : index
    %c0_25 = arith.constant 0 : index
    %47 = vector.load %arg3[%c0_24, %c0_25] : memref<128x512xf32, #tpu.memory_space<vmem>>, vector<128x512xf32>
    %cst_26 = arith.constant dense<0.000000e+00> : vector<8x512xf32>
    %48 = tpu.matmul %42, %47, %cst_26 {dimension_numbers = #tpu.dot_dimension_numbers<[1], [0], [0], [1], [0, 0, 1, 1], [], []>} : vector<8x128xf32>, vector<128x512xf32>, vector<8x512xf32> -> vector<8x512xf32>
    %49 = arith.addf %46, %48 : vector<8x512xf32>
    %50 = vector.extract_strided_slice %49 {offsets = [0, 0], sizes = [8, 128], strides = [1, 1]} : vector<8x512xf32> to vector<8x128xf32>
    %51 = arith.negf %50 : vector<8x128xf32>
    %52 = math.exp %51 : vector<8x128xf32>
    %cst_27 = arith.constant 1.000000e+00 : f32
    %53 = vector.broadcast %cst_27 : f32 to vector<8x128xf32>
    %54 = arith.addf %53, %52 : vector<8x128xf32>
    %55 = arith.divf %53, %54 : vector<8x128xf32>
    %56 = vector.extract_strided_slice %49 {offsets = [0, 128], sizes = [8, 128], strides = [1, 1]} : vector<8x512xf32> to vector<8x128xf32>
    %57 = arith.negf %56 : vector<8x128xf32>
    %58 = math.exp %57 : vector<8x128xf32>
    %cst_28 = arith.constant 1.000000e+00 : f32
    %59 = vector.broadcast %cst_28 : f32 to vector<8x128xf32>
    %60 = arith.addf %59, %58 : vector<8x128xf32>
    %61 = arith.divf %59, %60 : vector<8x128xf32>
    %62 = vector.extract_strided_slice %49 {offsets = [0, 256], sizes = [8, 128], strides = [1, 1]} : vector<8x512xf32> to vector<8x128xf32>
    %63 = math.tanh %62 : vector<8x128xf32>
    %64 = vector.extract_strided_slice %49 {offsets = [0, 384], sizes = [8, 128], strides = [1, 1]} : vector<8x512xf32> to vector<8x128xf32>
    %65 = arith.negf %64 : vector<8x128xf32>
    %66 = math.exp %65 : vector<8x128xf32>
    %cst_29 = arith.constant 1.000000e+00 : f32
    %67 = vector.broadcast %cst_29 : f32 to vector<8x128xf32>
    %68 = arith.addf %67, %66 : vector<8x128xf32>
    %69 = arith.divf %67, %68 : vector<8x128xf32>
    %70 = arith.mulf %61, %43 : vector<8x128xf32>
    %71 = arith.mulf %55, %63 : vector<8x128xf32>
    %72 = arith.addf %70, %71 : vector<8x128xf32>
    %73 = math.tanh %72 : vector<8x128xf32>
    %74 = arith.mulf %69, %73 : vector<8x128xf32>
    %c0_30 = arith.constant 0 : index
    %c0_31 = arith.constant 0 : index
    %75 = vector.load %arg8[%c0_30, %c0_31] : memref<8x128xf32, #tpu.memory_space<vmem>>, vector<8x128xf32>
    tpu.vector_store %arg8[%c0_30, %c0_31], %72 {strides = array<i32>} : memref<8x128xf32, #tpu.memory_space<vmem>>, vector<8x128xf32>,
    %c0_32 = arith.constant 0 : index
    %c0_33 = arith.constant 0 : index
    %76 = vector.load %arg7[%c0_32, %c0_33] : memref<8x128xf32, #tpu.memory_space<vmem>>, vector<8x128xf32>
    tpu.vector_store %arg7[%c0_32, %c0_33], %74 {strides = array<i32>} : memref<8x128xf32, #tpu.memory_space<vmem>>, vector<8x128xf32>,
    %77 = arith.index_cast %c1_i32 : i32 to index
    %c0_34 = arith.constant 0 : index
    %c0_35 = arith.constant 0 : index
    %78 = vector.load %arg9[%77, %c0_34, %c0_35] : memref<8x8x128xf32, #tpu.memory_space<vmem>>, vector<1x8x128xf32>
    %79 = vector.shape_cast %78 : vector<1x8x128xf32> to vector<8x128xf32>
    %80 = vector.shape_cast %74 : vector<8x128xf32> to vector<1x8x128xf32>
    tpu.vector_store %arg9[%77, %c0_34, %c0_35], %80 {strides = array<i32>} : memref<8x8x128xf32, #tpu.memory_space<vmem>>, vector<1x8x128xf32>,
    %c2_i32 = arith.constant 2 : i32
    %c0_36 = arith.constant 0 : index
    %c0_37 = arith.constant 0 : index
    %81 = vector.load %arg7[%c0_36, %c0_37] : memref<8x128xf32, #tpu.memory_space<vmem>>, vector<8x128xf32>
    %c0_38 = arith.constant 0 : index
    %c0_39 = arith.constant 0 : index
    %82 = vector.load %arg8[%c0_38, %c0_39] : memref<8x128xf32, #tpu.memory_space<vmem>>, vector<8x128xf32>
    %83 = arith.index_cast %c2_i32 : i32 to index
    %c0_40 = arith.constant 0 : index
    %c0_41 = arith.constant 0 : index
    %84 = vector.load %arg2[%83, %c0_40, %c0_41] : memref<8x8x512xf32, #tpu.memory_space<vmem>>, vector<1x8x512xf32>
    %85 = vector.shape_cast %84 : vector<1x8x512xf32> to vector<8x512xf32>
    %c0_42 = arith.constant 0 : index
    %c0_43 = arith.constant 0 : index
    %86 = vector.load %arg3[%c0_42, %c0_43] : memref<128x512xf32, #tpu.memory_space<vmem>>, vector<128x512xf32>
    %cst_44 = arith.constant dense<0.000000e+00> : vector<8x512xf32>
    %87 = tpu.matmul %81, %86, %cst_44 {dimension_numbers = #tpu.dot_dimension_numbers<[1], [0], [0], [1], [0, 0, 1, 1], [], []>} : vector<8x128xf32>, vector<128x512xf32>, vector<8x512xf32> -> vector<8x512xf32>
    %88 = arith.addf %85, %87 : vector<8x512xf32>
    %89 = vector.extract_strided_slice %88 {offsets = [0, 0], sizes = [8, 128], strides = [1, 1]} : vector<8x512xf32> to vector<8x128xf32>
    %90 = arith.negf %89 : vector<8x128xf32>
    %91 = math.exp %90 : vector<8x128xf32>
    %cst_45 = arith.constant 1.000000e+00 : f32
    %92 = vector.broadcast %cst_45 : f32 to vector<8x128xf32>
    %93 = arith.addf %92, %91 : vector<8x128xf32>
    %94 = arith.divf %92, %93 : vector<8x128xf32>
    %95 = vector.extract_strided_slice %88 {offsets = [0, 128], sizes = [8, 128], strides = [1, 1]} : vector<8x512xf32> to vector<8x128xf32>
    %96 = arith.negf %95 : vector<8x128xf32>
    %97 = math.exp %96 : vector<8x128xf32>
    %cst_46 = arith.constant 1.000000e+00 : f32
    %98 = vector.broadcast %cst_46 : f32 to vector<8x128xf32>
    %99 = arith.addf %98, %97 : vector<8x128xf32>
    %100 = arith.divf %98, %99 : vector<8x128xf32>
    %101 = vector.extract_strided_slice %88 {offsets = [0, 256], sizes = [8, 128], strides = [1, 1]} : vector<8x512xf32> to vector<8x128xf32>
    %102 = math.tanh %101 : vector<8x128xf32>
    %103 = vector.extract_strided_slice %88 {offsets = [0, 384], sizes = [8, 128], strides = [1, 1]} : vector<8x512xf32> to vector<8x128xf32>
    %104 = arith.negf %103 : vector<8x128xf32>
    %105 = math.exp %104 : vector<8x128xf32>
    %cst_47 = arith.constant 1.000000e+00 : f32
    %106 = vector.broadcast %cst_47 : f32 to vector<8x128xf32>
    %107 = arith.addf %106, %105 : vector<8x128xf32>
    %108 = arith.divf %106, %107 : vector<8x128xf32>
    %109 = arith.mulf %100, %82 : vector<8x128xf32>
    %110 = arith.mulf %94, %102 : vector<8x128xf32>
    %111 = arith.addf %109, %110 : vector<8x128xf32>
    %112 = math.tanh %111 : vector<8x128xf32>
    %113 = arith.mulf %108, %112 : vector<8x128xf32>
    %c0_48 = arith.constant 0 : index
    %c0_49 = arith.constant 0 : index
    %114 = vector.load %arg8[%c0_48, %c0_49] : memref<8x128xf32, #tpu.memory_space<vmem>>, vector<8x128xf32>
    tpu.vector_store %arg8[%c0_48, %c0_49], %111 {strides = array<i32>} : memref<8x128xf32, #tpu.memory_space<vmem>>, vector<8x128xf32>,
    %c0_50 = arith.constant 0 : index
    %c0_51 = arith.constant 0 : index
    %115 = vector.load %arg7[%c0_50, %c0_51] : memref<8x128xf32, #tpu.memory_space<vmem>>, vector<8x128xf32>
    tpu.vector_store %arg7[%c0_50, %c0_51], %113 {strides = array<i32>} : memref<8x128xf32, #tpu.memory_space<vmem>>, vector<8x128xf32>,
    %116 = arith.index_cast %c2_i32 : i32 to index
    %c0_52 = arith.constant 0 : index
    %c0_53 = arith.constant 0 : index
    %117 = vector.load %arg9[%116, %c0_52, %c0_53] : memref<8x8x128xf32, #tpu.memory_space<vmem>>, vector<1x8x128xf32>
    %118 = vector.shape_cast %117 : vector<1x8x128xf32> to vector<8x128xf32>
    %119 = vector.shape_cast %113 : vector<8x128xf32> to vector<1x8x128xf32>
    tpu.vector_store %arg9[%116, %c0_52, %c0_53], %119 {strides = array<i32>} : memref<8x8x128xf32, #tpu.memory_space<vmem>>, vector<1x8x128xf32>,
    %c3_i32 = arith.constant 3 : i32
    %c0_54 = arith.constant 0 : index
    %c0_55 = arith.constant 0 : index
    %120 = vector.load %arg7[%c0_54, %c0_55] : memref<8x128xf32, #tpu.memory_space<vmem>>, vector<8x128xf32>
    %c0_56 = arith.constant 0 : index
    %c0_57 = arith.constant 0 : index
    %121 = vector.load %arg8[%c0_56, %c0_57] : memref<8x128xf32, #tpu.memory_space<vmem>>, vector<8x128xf32>
    %122 = arith.index_cast %c3_i32 : i32 to index
    %c0_58 = arith.constant 0 : index
    %c0_59 = arith.constant 0 : index
    %123 = vector.load %arg2[%122, %c0_58, %c0_59] : memref<8x8x512xf32, #tpu.memory_space<vmem>>, vector<1x8x512xf32>
    %124 = vector.shape_cast %123 : vector<1x8x512xf32> to vector<8x512xf32>
    %c0_60 = arith.constant 0 : index
    %c0_61 = arith.constant 0 : index
    %125 = vector.load %arg3[%c0_60, %c0_61] : memref<128x512xf32, #tpu.memory_space<vmem>>, vector<128x512xf32>
    %cst_62 = arith.constant dense<0.000000e+00> : vector<8x512xf32>
    %126 = tpu.matmul %120, %125, %cst_62 {dimension_numbers = #tpu.dot_dimension_numbers<[1], [0], [0], [1], [0, 0, 1, 1], [], []>} : vector<8x128xf32>, vector<128x512xf32>, vector<8x512xf32> -> vector<8x512xf32>
    %127 = arith.addf %124, %126 : vector<8x512xf32>
    %128 = vector.extract_strided_slice %127 {offsets = [0, 0], sizes = [8, 128], strides = [1, 1]} : vector<8x512xf32> to vector<8x128xf32>
    %129 = arith.negf %128 : vector<8x128xf32>
    %130 = math.exp %129 : vector<8x128xf32>
    %cst_63 = arith.constant 1.000000e+00 : f32
    %131 = vector.broadcast %cst_63 : f32 to vector<8x128xf32>
    %132 = arith.addf %131, %130 : vector<8x128xf32>
    %133 = arith.divf %131, %132 : vector<8x128xf32>
    %134 = vector.extract_strided_slice %127 {offsets = [0, 128], sizes = [8, 128], strides = [1, 1]} : vector<8x512xf32> to vector<8x128xf32>
    %135 = arith.negf %134 : vector<8x128xf32>
    %136 = math.exp %135 : vector<8x128xf32>
    %cst_64 = arith.constant 1.000000e+00 : f32
    %137 = vector.broadcast %cst_64 : f32 to vector<8x128xf32>
    %138 = arith.addf %137, %136 : vector<8x128xf32>
    %139 = arith.divf %137, %138 : vector<8x128xf32>
    %140 = vector.extract_strided_slice %127 {offsets = [0, 256], sizes = [8, 128], strides = [1, 1]} : vector<8x512xf32> to vector<8x128xf32>
    %141 = math.tanh %140 : vector<8x128xf32>
    %142 = vector.extract_strided_slice %127 {offsets = [0, 384], sizes = [8, 128], strides = [1, 1]} : vector<8x512xf32> to vector<8x128xf32>
    %143 = arith.negf %142 : vector<8x128xf32>
    %144 = math.exp %143 : vector<8x128xf32>
    %cst_65 = arith.constant 1.000000e+00 : f32
    %145 = vector.broadcast %cst_65 : f32 to vector<8x128xf32>
    %146 = arith.addf %145, %144 : vector<8x128xf32>
    %147 = arith.divf %145, %146 : vector<8x128xf32>
    %148 = arith.mulf %139, %121 : vector<8x128xf32>
    %149 = arith.mulf %133, %141 : vector<8x128xf32>
    %150 = arith.addf %148, %149 : vector<8x128xf32>
    %151 = math.tanh %150 : vector<8x128xf32>
    %152 = arith.mulf %147, %151 : vector<8x128xf32>
    %c0_66 = arith.constant 0 : index
    %c0_67 = arith.constant 0 : index
    %153 = vector.load %arg8[%c0_66, %c0_67] : memref<8x128xf32, #tpu.memory_space<vmem>>, vector<8x128xf32>
    tpu.vector_store %arg8[%c0_66, %c0_67], %150 {strides = array<i32>} : memref<8x128xf32, #tpu.memory_space<vmem>>, vector<8x128xf32>,
    %c0_68 = arith.constant 0 : index
    %c0_69 = arith.constant 0 : index
    %154 = vector.load %arg7[%c0_68, %c0_69] : memref<8x128xf32, #tpu.memory_space<vmem>>, vector<8x128xf32>
    tpu.vector_store %arg7[%c0_68, %c0_69], %152 {strides = array<i32>} : memref<8x128xf32, #tpu.memory_space<vmem>>, vector<8x128xf32>,
    %155 = arith.index_cast %c3_i32 : i32 to index
    %c0_70 = arith.constant 0 : index
    %c0_71 = arith.constant 0 : index
    %156 = vector.load %arg9[%155, %c0_70, %c0_71] : memref<8x8x128xf32, #tpu.memory_space<vmem>>, vector<1x8x128xf32>
    %157 = vector.shape_cast %156 : vector<1x8x128xf32> to vector<8x128xf32>
    %158 = vector.shape_cast %152 : vector<8x128xf32> to vector<1x8x128xf32>
    tpu.vector_store %arg9[%155, %c0_70, %c0_71], %158 {strides = array<i32>} : memref<8x8x128xf32, #tpu.memory_space<vmem>>, vector<1x8x128xf32>,
    %c4_i32 = arith.constant 4 : i32
    %c0_72 = arith.constant 0 : index
    %c0_73 = arith.constant 0 : index
    %159 = vector.load %arg7[%c0_72, %c0_73] : memref<8x128xf32, #tpu.memory_space<vmem>>, vector<8x128xf32>
    %c0_74 = arith.constant 0 : index
    %c0_75 = arith.constant 0 : index
    %160 = vector.load %arg8[%c0_74, %c0_75] : memref<8x128xf32, #tpu.memory_space<vmem>>, vector<8x128xf32>
    %161 = arith.index_cast %c4_i32 : i32 to index
    %c0_76 = arith.constant 0 : index
    %c0_77 = arith.constant 0 : index
    %162 = vector.load %arg2[%161, %c0_76, %c0_77] : memref<8x8x512xf32, #tpu.memory_space<vmem>>, vector<1x8x512xf32>
    %163 = vector.shape_cast %162 : vector<1x8x512xf32> to vector<8x512xf32>
    %c0_78 = arith.constant 0 : index
    %c0_79 = arith.constant 0 : index
    %164 = vector.load %arg3[%c0_78, %c0_79] : memref<128x512xf32, #tpu.memory_space<vmem>>, vector<128x512xf32>
    %cst_80 = arith.constant dense<0.000000e+00> : vector<8x512xf32>
    %165 = tpu.matmul %159, %164, %cst_80 {dimension_numbers = #tpu.dot_dimension_numbers<[1], [0], [0], [1], [0, 0, 1, 1], [], []>} : vector<8x128xf32>, vector<128x512xf32>, vector<8x512xf32> -> vector<8x512xf32>
    %166 = arith.addf %163, %165 : vector<8x512xf32>
    %167 = vector.extract_strided_slice %166 {offsets = [0, 0], sizes = [8, 128], strides = [1, 1]} : vector<8x512xf32> to vector<8x128xf32>
    %168 = arith.negf %167 : vector<8x128xf32>
    %169 = math.exp %168 : vector<8x128xf32>
    %cst_81 = arith.constant 1.000000e+00 : f32
    %170 = vector.broadcast %cst_81 : f32 to vector<8x128xf32>
    %171 = arith.addf %170, %169 : vector<8x128xf32>
    %172 = arith.divf %170, %171 : vector<8x128xf32>
    %173 = vector.extract_strided_slice %166 {offsets = [0, 128], sizes = [8, 128], strides = [1, 1]} : vector<8x512xf32> to vector<8x128xf32>
    %174 = arith.negf %173 : vector<8x128xf32>
    %175 = math.exp %174 : vector<8x128xf32>
    %cst_82 = arith.constant 1.000000e+00 : f32
    %176 = vector.broadcast %cst_82 : f32 to vector<8x128xf32>
    %177 = arith.addf %176, %175 : vector<8x128xf32>
    %178 = arith.divf %176, %177 : vector<8x128xf32>
    %179 = vector.extract_strided_slice %166 {offsets = [0, 256], sizes = [8, 128], strides = [1, 1]} : vector<8x512xf32> to vector<8x128xf32>
    %180 = math.tanh %179 : vector<8x128xf32>
    %181 = vector.extract_strided_slice %166 {offsets = [0, 384], sizes = [8, 128], strides = [1, 1]} : vector<8x512xf32> to vector<8x128xf32>
    %182 = arith.negf %181 : vector<8x128xf32>
    %183 = math.exp %182 : vector<8x128xf32>
    %cst_83 = arith.constant 1.000000e+00 : f32
    %184 = vector.broadcast %cst_83 : f32 to vector<8x128xf32>
    %185 = arith.addf %184, %183 : vector<8x128xf32>
    %186 = arith.divf %184, %185 : vector<8x128xf32>
    %187 = arith.mulf %178, %160 : vector<8x128xf32>
    %188 = arith.mulf %172, %180 : vector<8x128xf32>
    %189 = arith.addf %187, %188 : vector<8x128xf32>
    %190 = math.tanh %189 : vector<8x128xf32>
    %191 = arith.mulf %186, %190 : vector<8x128xf32>
    %c0_84 = arith.constant 0 : index
    %c0_85 = arith.constant 0 : index
    %192 = vector.load %arg8[%c0_84, %c0_85] : memref<8x128xf32, #tpu.memory_space<vmem>>, vector<8x128xf32>
    tpu.vector_store %arg8[%c0_84, %c0_85], %189 {strides = array<i32>} : memref<8x128xf32, #tpu.memory_space<vmem>>, vector<8x128xf32>,
    %c0_86 = arith.constant 0 : index
    %c0_87 = arith.constant 0 : index
    %193 = vector.load %arg7[%c0_86, %c0_87] : memref<8x128xf32, #tpu.memory_space<vmem>>, vector<8x128xf32>
    tpu.vector_store %arg7[%c0_86, %c0_87], %191 {strides = array<i32>} : memref<8x128xf32, #tpu.memory_space<vmem>>, vector<8x128xf32>,
    %194 = arith.index_cast %c4_i32 : i32 to index
    %c0_88 = arith.constant 0 : index
    %c0_89 = arith.constant 0 : index
    %195 = vector.load %arg9[%194, %c0_88, %c0_89] : memref<8x8x128xf32, #tpu.memory_space<vmem>>, vector<1x8x128xf32>
    %196 = vector.shape_cast %195 : vector<1x8x128xf32> to vector<8x128xf32>
    %197 = vector.shape_cast %191 : vector<8x128xf32> to vector<1x8x128xf32>
    tpu.vector_store %arg9[%194, %c0_88, %c0_89], %197 {strides = array<i32>} : memref<8x8x128xf32, #tpu.memory_space<vmem>>, vector<1x8x128xf32>,
    %c5_i32 = arith.constant 5 : i32
    %c0_90 = arith.constant 0 : index
    %c0_91 = arith.constant 0 : index
    %198 = vector.load %arg7[%c0_90, %c0_91] : memref<8x128xf32, #tpu.memory_space<vmem>>, vector<8x128xf32>
    %c0_92 = arith.constant 0 : index
    %c0_93 = arith.constant 0 : index
    %199 = vector.load %arg8[%c0_92, %c0_93] : memref<8x128xf32, #tpu.memory_space<vmem>>, vector<8x128xf32>
    %200 = arith.index_cast %c5_i32 : i32 to index
    %c0_94 = arith.constant 0 : index
    %c0_95 = arith.constant 0 : index
    %201 = vector.load %arg2[%200, %c0_94, %c0_95] : memref<8x8x512xf32, #tpu.memory_space<vmem>>, vector<1x8x512xf32>
    %202 = vector.shape_cast %201 : vector<1x8x512xf32> to vector<8x512xf32>
    %c0_96 = arith.constant 0 : index
    %c0_97 = arith.constant 0 : index
    %203 = vector.load %arg3[%c0_96, %c0_97] : memref<128x512xf32, #tpu.memory_space<vmem>>, vector<128x512xf32>
    %cst_98 = arith.constant dense<0.000000e+00> : vector<8x512xf32>
    %204 = tpu.matmul %198, %203, %cst_98 {dimension_numbers = #tpu.dot_dimension_numbers<[1], [0], [0], [1], [0, 0, 1, 1], [], []>} : vector<8x128xf32>, vector<128x512xf32>, vector<8x512xf32> -> vector<8x512xf32>
    %205 = arith.addf %202, %204 : vector<8x512xf32>
    %206 = vector.extract_strided_slice %205 {offsets = [0, 0], sizes = [8, 128], strides = [1, 1]} : vector<8x512xf32> to vector<8x128xf32>
    %207 = arith.negf %206 : vector<8x128xf32>
    %208 = math.exp %207 : vector<8x128xf32>
    %cst_99 = arith.constant 1.000000e+00 : f32
    %209 = vector.broadcast %cst_99 : f32 to vector<8x128xf32>
    %210 = arith.addf %209, %208 : vector<8x128xf32>
    %211 = arith.divf %209, %210 : vector<8x128xf32>
    %212 = vector.extract_strided_slice %205 {offsets = [0, 128], sizes = [8, 128], strides = [1, 1]} : vector<8x512xf32> to vector<8x128xf32>
    %213 = arith.negf %212 : vector<8x128xf32>
    %214 = math.exp %213 : vector<8x128xf32>
    %cst_100 = arith.constant 1.000000e+00 : f32
    %215 = vector.broadcast %cst_100 : f32 to vector<8x128xf32>
    %216 = arith.addf %215, %214 : vector<8x128xf32>
    %217 = arith.divf %215, %216 : vector<8x128xf32>
    %218 = vector.extract_strided_slice %205 {offsets = [0, 256], sizes = [8, 128], strides = [1, 1]} : vector<8x512xf32> to vector<8x128xf32>
    %219 = math.tanh %218 : vector<8x128xf32>
    %220 = vector.extract_strided_slice %205 {offsets = [0, 384], sizes = [8, 128], strides = [1, 1]} : vector<8x512xf32> to vector<8x128xf32>
    %221 = arith.negf %220 : vector<8x128xf32>
    %222 = math.exp %221 : vector<8x128xf32>
    %cst_101 = arith.constant 1.000000e+00 : f32
    %223 = vector.broadcast %cst_101 : f32 to vector<8x128xf32>
    %224 = arith.addf %223, %222 : vector<8x128xf32>
    %225 = arith.divf %223, %224 : vector<8x128xf32>
    %226 = arith.mulf %217, %199 : vector<8x128xf32>
    %227 = arith.mulf %211, %219 : vector<8x128xf32>
    %228 = arith.addf %226, %227 : vector<8x128xf32>
    %229 = math.tanh %228 : vector<8x128xf32>
    %230 = arith.mulf %225, %229 : vector<8x128xf32>
    %c0_102 = arith.constant 0 : index
    %c0_103 = arith.constant 0 : index
    %231 = vector.load %arg8[%c0_102, %c0_103] : memref<8x128xf32, #tpu.memory_space<vmem>>, vector<8x128xf32>
    tpu.vector_store %arg8[%c0_102, %c0_103], %228 {strides = array<i32>} : memref<8x128xf32, #tpu.memory_space<vmem>>, vector<8x128xf32>,
    %c0_104 = arith.constant 0 : index
    %c0_105 = arith.constant 0 : index
    %232 = vector.load %arg7[%c0_104, %c0_105] : memref<8x128xf32, #tpu.memory_space<vmem>>, vector<8x128xf32>
    tpu.vector_store %arg7[%c0_104, %c0_105], %230 {strides = array<i32>} : memref<8x128xf32, #tpu.memory_space<vmem>>, vector<8x128xf32>,
    %233 = arith.index_cast %c5_i32 : i32 to index
    %c0_106 = arith.constant 0 : index
    %c0_107 = arith.constant 0 : index
    %234 = vector.load %arg9[%233, %c0_106, %c0_107] : memref<8x8x128xf32, #tpu.memory_space<vmem>>, vector<1x8x128xf32>
    %235 = vector.shape_cast %234 : vector<1x8x128xf32> to vector<8x128xf32>
    %236 = vector.shape_cast %230 : vector<8x128xf32> to vector<1x8x128xf32>
    tpu.vector_store %arg9[%233, %c0_106, %c0_107], %236 {strides = array<i32>} : memref<8x8x128xf32, #tpu.memory_space<vmem>>, vector<1x8x128xf32>,
    %c6_i32 = arith.constant 6 : i32
    %c0_108 = arith.constant 0 : index
    %c0_109 = arith.constant 0 : index
    %237 = vector.load %arg7[%c0_108, %c0_109] : memref<8x128xf32, #tpu.memory_space<vmem>>, vector<8x128xf32>
    %c0_110 = arith.constant 0 : index
    %c0_111 = arith.constant 0 : index
    %238 = vector.load %arg8[%c0_110, %c0_111] : memref<8x128xf32, #tpu.memory_space<vmem>>, vector<8x128xf32>
    %239 = arith.index_cast %c6_i32 : i32 to index
    %c0_112 = arith.constant 0 : index
    %c0_113 = arith.constant 0 : index
    %240 = vector.load %arg2[%239, %c0_112, %c0_113] : memref<8x8x512xf32, #tpu.memory_space<vmem>>, vector<1x8x512xf32>
    %241 = vector.shape_cast %240 : vector<1x8x512xf32> to vector<8x512xf32>
    %c0_114 = arith.constant 0 : index
    %c0_115 = arith.constant 0 : index
    %242 = vector.load %arg3[%c0_114, %c0_115] : memref<128x512xf32, #tpu.memory_space<vmem>>, vector<128x512xf32>
    %cst_116 = arith.constant dense<0.000000e+00> : vector<8x512xf32>
    %243 = tpu.matmul %237, %242, %cst_116 {dimension_numbers = #tpu.dot_dimension_numbers<[1], [0], [0], [1], [0, 0, 1, 1], [], []>} : vector<8x128xf32>, vector<128x512xf32>, vector<8x512xf32> -> vector<8x512xf32>
    %244 = arith.addf %241, %243 : vector<8x512xf32>
    %245 = vector.extract_strided_slice %244 {offsets = [0, 0], sizes = [8, 128], strides = [1, 1]} : vector<8x512xf32> to vector<8x128xf32>
    %246 = arith.negf %245 : vector<8x128xf32>
    %247 = math.exp %246 : vector<8x128xf32>
    %cst_117 = arith.constant 1.000000e+00 : f32
    %248 = vector.broadcast %cst_117 : f32 to vector<8x128xf32>
    %249 = arith.addf %248, %247 : vector<8x128xf32>
    %250 = arith.divf %248, %249 : vector<8x128xf32>
    %251 = vector.extract_strided_slice %244 {offsets = [0, 128], sizes = [8, 128], strides = [1, 1]} : vector<8x512xf32> to vector<8x128xf32>
    %252 = arith.negf %251 : vector<8x128xf32>
    %253 = math.exp %252 : vector<8x128xf32>
    %cst_118 = arith.constant 1.000000e+00 : f32
    %254 = vector.broadcast %cst_118 : f32 to vector<8x128xf32>
    %255 = arith.addf %254, %253 : vector<8x128xf32>
    %256 = arith.divf %254, %255 : vector<8x128xf32>
    %257 = vector.extract_strided_slice %244 {offsets = [0, 256], sizes = [8, 128], strides = [1, 1]} : vector<8x512xf32> to vector<8x128xf32>
    %258 = math.tanh %257 : vector<8x128xf32>
    %259 = vector.extract_strided_slice %244 {offsets = [0, 384], sizes = [8, 128], strides = [1, 1]} : vector<8x512xf32> to vector<8x128xf32>
    %260 = arith.negf %259 : vector<8x128xf32>
    %261 = math.exp %260 : vector<8x128xf32>
    %cst_119 = arith.constant 1.000000e+00 : f32
    %262 = vector.broadcast %cst_119 : f32 to vector<8x128xf32>
    %263 = arith.addf %262, %261 : vector<8x128xf32>
    %264 = arith.divf %262, %263 : vector<8x128xf32>
    %265 = arith.mulf %256, %238 : vector<8x128xf32>
    %266 = arith.mulf %250, %258 : vector<8x128xf32>
    %267 = arith.addf %265, %266 : vector<8x128xf32>
    %268 = math.tanh %267 : vector<8x128xf32>
    %269 = arith.mulf %264, %268 : vector<8x128xf32>
    %c0_120 = arith.constant 0 : index
    %c0_121 = arith.constant 0 : index
    %270 = vector.load %arg8[%c0_120, %c0_121] : memref<8x128xf32, #tpu.memory_space<vmem>>, vector<8x128xf32>
    tpu.vector_store %arg8[%c0_120, %c0_121], %267 {strides = array<i32>} : memref<8x128xf32, #tpu.memory_space<vmem>>, vector<8x128xf32>,
    %c0_122 = arith.constant 0 : index
    %c0_123 = arith.constant 0 : index
    %271 = vector.load %arg7[%c0_122, %c0_123] : memref<8x128xf32, #tpu.memory_space<vmem>>, vector<8x128xf32>
    tpu.vector_store %arg7[%c0_122, %c0_123], %269 {strides = array<i32>} : memref<8x128xf32, #tpu.memory_space<vmem>>, vector<8x128xf32>,
    %272 = arith.index_cast %c6_i32 : i32 to index
    %c0_124 = arith.constant 0 : index
    %c0_125 = arith.constant 0 : index
    %273 = vector.load %arg9[%272, %c0_124, %c0_125] : memref<8x8x128xf32, #tpu.memory_space<vmem>>, vector<1x8x128xf32>
    %274 = vector.shape_cast %273 : vector<1x8x128xf32> to vector<8x128xf32>
    %275 = vector.shape_cast %269 : vector<8x128xf32> to vector<1x8x128xf32>
    tpu.vector_store %arg9[%272, %c0_124, %c0_125], %275 {strides = array<i32>} : memref<8x8x128xf32, #tpu.memory_space<vmem>>, vector<1x8x128xf32>,
    %c7_i32 = arith.constant 7 : i32
    %c0_126 = arith.constant 0 : index
    %c0_127 = arith.constant 0 : index
    %276 = vector.load %arg7[%c0_126, %c0_127] : memref<8x128xf32, #tpu.memory_space<vmem>>, vector<8x128xf32>
    %c0_128 = arith.constant 0 : index
    %c0_129 = arith.constant 0 : index
    %277 = vector.load %arg8[%c0_128, %c0_129] : memref<8x128xf32, #tpu.memory_space<vmem>>, vector<8x128xf32>
    %278 = arith.index_cast %c7_i32 : i32 to index
    %c0_130 = arith.constant 0 : index
    %c0_131 = arith.constant 0 : index
    %279 = vector.load %arg2[%278, %c0_130, %c0_131] : memref<8x8x512xf32, #tpu.memory_space<vmem>>, vector<1x8x512xf32>
    %280 = vector.shape_cast %279 : vector<1x8x512xf32> to vector<8x512xf32>
    %c0_132 = arith.constant 0 : index
    %c0_133 = arith.constant 0 : index
    %281 = vector.load %arg3[%c0_132, %c0_133] : memref<128x512xf32, #tpu.memory_space<vmem>>, vector<128x512xf32>
    %cst_134 = arith.constant dense<0.000000e+00> : vector<8x512xf32>
    %282 = tpu.matmul %276, %281, %cst_134 {dimension_numbers = #tpu.dot_dimension_numbers<[1], [0], [0], [1], [0, 0, 1, 1], [], []>} : vector<8x128xf32>, vector<128x512xf32>, vector<8x512xf32> -> vector<8x512xf32>
    %283 = arith.addf %280, %282 : vector<8x512xf32>
    %284 = vector.extract_strided_slice %283 {offsets = [0, 0], sizes = [8, 128], strides = [1, 1]} : vector<8x512xf32> to vector<8x128xf32>
    %285 = arith.negf %284 : vector<8x128xf32>
    %286 = math.exp %285 : vector<8x128xf32>
    %cst_135 = arith.constant 1.000000e+00 : f32
    %287 = vector.broadcast %cst_135 : f32 to vector<8x128xf32>
    %288 = arith.addf %287, %286 : vector<8x128xf32>
    %289 = arith.divf %287, %288 : vector<8x128xf32>
    %290 = vector.extract_strided_slice %283 {offsets = [0, 128], sizes = [8, 128], strides = [1, 1]} : vector<8x512xf32> to vector<8x128xf32>
    %291 = arith.negf %290 : vector<8x128xf32>
    %292 = math.exp %291 : vector<8x128xf32>
    %cst_136 = arith.constant 1.000000e+00 : f32
    %293 = vector.broadcast %cst_136 : f32 to vector<8x128xf32>
    %294 = arith.addf %293, %292 : vector<8x128xf32>
    %295 = arith.divf %293, %294 : vector<8x128xf32>
    %296 = vector.extract_strided_slice %283 {offsets = [0, 256], sizes = [8, 128], strides = [1, 1]} : vector<8x512xf32> to vector<8x128xf32>
    %297 = math.tanh %296 : vector<8x128xf32>
    %298 = vector.extract_strided_slice %283 {offsets = [0, 384], sizes = [8, 128], strides = [1, 1]} : vector<8x512xf32> to vector<8x128xf32>
    %299 = arith.negf %298 : vector<8x128xf32>
    %300 = math.exp %299 : vector<8x128xf32>
    %cst_137 = arith.constant 1.000000e+00 : f32
    %301 = vector.broadcast %cst_137 : f32 to vector<8x128xf32>
    %302 = arith.addf %301, %300 : vector<8x128xf32>
    %303 = arith.divf %301, %302 : vector<8x128xf32>
    %304 = arith.mulf %295, %277 : vector<8x128xf32>
    %305 = arith.mulf %289, %297 : vector<8x128xf32>
    %306 = arith.addf %304, %305 : vector<8x128xf32>
    %307 = math.tanh %306 : vector<8x128xf32>
    %308 = arith.mulf %303, %307 : vector<8x128xf32>
    %c0_138 = arith.constant 0 : index
    %c0_139 = arith.constant 0 : index
    %309 = vector.load %arg8[%c0_138, %c0_139] : memref<8x128xf32, #tpu.memory_space<vmem>>, vector<8x128xf32>
    tpu.vector_store %arg8[%c0_138, %c0_139], %306 {strides = array<i32>} : memref<8x128xf32, #tpu.memory_space<vmem>>, vector<8x128xf32>,
    %c0_140 = arith.constant 0 : index
    %c0_141 = arith.constant 0 : index
    %310 = vector.load %arg7[%c0_140, %c0_141] : memref<8x128xf32, #tpu.memory_space<vmem>>, vector<8x128xf32>
    tpu.vector_store %arg7[%c0_140, %c0_141], %308 {strides = array<i32>} : memref<8x128xf32, #tpu.memory_space<vmem>>, vector<8x128xf32>,
    %311 = arith.index_cast %c7_i32 : i32 to index
    %c0_142 = arith.constant 0 : index
    %c0_143 = arith.constant 0 : index
    %312 = vector.load %arg9[%311, %c0_142, %c0_143] : memref<8x8x128xf32, #tpu.memory_space<vmem>>, vector<1x8x128xf32>
    %313 = vector.shape_cast %312 : vector<1x8x128xf32> to vector<8x128xf32>
    %314 = vector.shape_cast %308 : vector<8x128xf32> to vector<1x8x128xf32>
    tpu.vector_store %arg9[%311, %c0_142, %c0_143], %314 {strides = array<i32>} : memref<8x8x128xf32, #tpu.memory_space<vmem>>, vector<1x8x128xf32>,
    %c8_i32 = arith.constant 8 : i32
    %c0_144 = arith.constant 0 : index
    %c0_145 = arith.constant 0 : index
    %c0_146 = arith.constant 0 : index
    %315 = vector.load %arg9[%c0_144, %c0_145, %c0_146] : memref<8x8x128xf32, #tpu.memory_space<vmem>>, vector<8x8x128xf32>
    %316 = vector.shape_cast %315 : vector<8x8x128xf32> to vector<64x128xf32>
    %c0_147 = arith.constant 0 : index
    %c0_148 = arith.constant 0 : index
    %317 = vector.load %arg4[%c0_147, %c0_148] : memref<128x128xf32, #tpu.memory_space<vmem>>, vector<128x128xf32>
    %cst_149 = arith.constant dense<0.000000e+00> : vector<64x128xf32>
    %318 = tpu.matmul %316, %317, %cst_149 {dimension_numbers = #tpu.dot_dimension_numbers<[1], [0], [0], [1], [0, 0, 1, 1], [], []>} : vector<64x128xf32>, vector<128x128xf32>, vector<64x128xf32> -> vector<64x128xf32>
    %c0_150 = arith.constant 0 : index
    %c0_151 = arith.constant 0 : index
    %319 = vector.load %arg5[%c0_150, %c0_151] : memref<1x128xf32, #tpu.memory_space<vmem>>, vector<1x128xf32>
    %320 = vector.broadcast %319 : vector<1x128xf32> to vector<64x128xf32>
    %321 = arith.addf %318, %320 : vector<64x128xf32>
    %322 = arith.negf %321 : vector<64x128xf32>
    %323 = math.exp %322 : vector<64x128xf32>
    %cst_152 = arith.constant 1.000000e+00 : f32
    %324 = vector.broadcast %cst_152 : f32 to vector<64x128xf32>
    %325 = arith.addf %324, %323 : vector<64x128xf32>
    %326 = arith.divf %324, %325 : vector<64x128xf32>
    %327 = vector.shape_cast %326 : vector<64x128xf32> to vector<8x8x128xf32>
    %c0_153 = arith.constant 0 : index
    %c0_154 = arith.constant 0 : index
    %c0_155 = arith.constant 0 : index
    %328 = vector.load %arg6[%c0_153, %c0_154, %c0_155] : memref<8x8x128xf32, #tpu.memory_space<vmem>>, vector<8x8x128xf32>
    tpu.vector_store %arg6[%c0_153, %c0_154, %c0_155], %327 {strides = array<i32>} : memref<8x8x128xf32, #tpu.memory_space<vmem>>, vector<8x8x128xf32>,
    return
  }
  func.func @transform_0(%arg0: i32, %arg1: i32) -> (i32, i32, i32) {
    %c0_i32 = arith.constant 0 : i32
    %c0_i32_0 = arith.constant 0 : i32
    return %arg1, %arg0, %c0_i32 : i32, i32, i32
  }
  func.func @transform_1(%arg0: i32, %arg1: i32) -> (i32, i32) {
    %c0_i32 = arith.constant 0 : i32
    %c0_i32_0 = arith.constant 0 : i32
    %c0_i32_1 = arith.constant 0 : i32
    return %c0_i32, %c0_i32_0 : i32, i32
  }
  func.func @transform_2(%arg0: i32, %arg1: i32) -> (i32, i32) {
    %c0_i32 = arith.constant 0 : i32
    %c0_i32_0 = arith.constant 0 : i32
    %c0_i32_1 = arith.constant 0 : i32
    return %c0_i32, %c0_i32_0 : i32, i32
  }
  func.func @transform_3(%arg0: i32, %arg1: i32) -> (i32, i32) {
    %c0_i32 = arith.constant 0 : i32
    %c0_i32_0 = arith.constant 0 : i32
    %c0_i32_1 = arith.constant 0 : i32
    return %c0_i32, %c0_i32_0 : i32, i32
  }
  func.func @transform_4(%arg0: i32, %arg1: i32) -> (i32, i32, i32) {
    %c0_i32 = arith.constant 0 : i32
    %c0_i32_0 = arith.constant 0 : i32
    return %arg1, %arg0, %c0_i32 : i32, i32, i32
  }
}

</mosaic_0001>

<llo_original>
// kernel: tpu_custom_call.1
$region0: #{tpu_custom_call.1}
  #allocation0 [shape = 'u32[]', space=smem, size = 0x4, offset = 0x4, fixed_abs, tag = 'smem constant byte address 0x4 - core index']
  #allocation1 [shape = 'u32[144,128]{1,0:T(1,128)}', space=vmem, size = 0x12000, scoped, tag = 'internal scratch']
  #allocation2 [shape = 'f32[8,128]{1,0:T(8,128)}', space=vmem, size = 0x1000, scoped, tag = 'scratch operand']
  #allocation3 [shape = 'f32[8,128]{1,0:T(8,128)}', space=vmem, size = 0x1000, scoped, tag = 'scratch operand']
  #allocation4 [shape = 'f32[8,8,128]{2,1,0:T(8,128)}', space=vmem, size = 0x8000, scoped, tag = 'scratch operand']
  %s0 = inlined_call_operand.hbm [shape: f32[8,8,512], index: 0, kind: input, shape index: {}]
  %s1 = inlined_call_operand.hbm [shape: f32[128,512], index: 1, kind: input, shape index: {}]
  %s2 = inlined_call_operand.hbm [shape: f32[128,128], index: 2, kind: input, shape index: {}]
  %s3 = inlined_call_operand.vmem [shape: f32[1,128], index: 3, kind: input, shape index: {}]
  %s4 = inlined_call_operand.hbm [shape: f32[8,8,128], index: 4, kind: output, shape index: {}]
  %s5 = sld [smem:[#allocation0]]
  $region42: #{tpu_custom_call.1} parent=0
    _
  %s7 = ssub.s32 1, %s5
  %s8 = scalar_select 0, %s7, %s5
  $region1: #{tpu_custom_call.1} parent=0
    #allocation5 [shape = 'u8[131072]{0}', space=vmem, size = 0x20000, scoped, tag = 'input window, operand 0, single buffered']
    #allocation6 [shape = 's32[1]{0}', space=sflag, size = 0x4, scoped, tag = 'scoped memory for tpu_custom_call.1']
    #allocation7 [shape = 's32[1]{0}', space=sflag, size = 0x4, scoped, tag = 'scoped memory for tpu_custom_call.1']
    #allocation8 [shape = 'u8[262144]{0}', space=vmem, size = 0x40000, scoped, tag = 'input window, operand 1, single buffered']
    #allocation9 [shape = 's32[1]{0}', space=sflag, size = 0x4, scoped, tag = 'scoped memory for tpu_custom_call.1']
    #allocation10 [shape = 'u8[65536]{0}', space=vmem, size = 0x10000, scoped, tag = 'input window, operand 2, single buffered']
    #allocation11 [shape = 'u8[32768]{0}', space=vmem, size = 0x8000, scoped, tag = 'output window, operand 0, single buffered']
    %9 = vsyncpa [#allocation6], 0
    %10 = vsyncpa [#allocation9], 0
    %11 = vsyncpa [#allocation7], 0
    // Predicated region
    $region2: #{tpu_custom_call.1} parent=1 // pred_check
      _
    $region3: #{tpu_custom_call.1} parent=1 // pred_check_branch
      %13 = sbr.rel (0) target = $region5
    $region4: #{tpu_custom_call.1} parent=1 // pred_region
      %s15 = ssub.s32 4096, 4096
      %16 = vsyncadd [#allocation6], %s15
      %s17 = sshll.u32 [#allocation5], 4
      %s18 = int_to_ptr.vmem [resolvable:$true] %s17
      %23 = dma.hbm_to_vmem [thread:$0]  %s0, 4096, %s18, [#allocation6], 512, 512, 32
    $region5: #{tpu_custom_call.1} parent=1 // pred_fallthru
      _
    // Predicated region
    $region6: #{tpu_custom_call.1} parent=1 // pred_check
      _
    $region7: #{tpu_custom_call.1} parent=1 // pred_check_branch
      %25 = sbr.rel (0) target = $region9
    $region8: #{tpu_custom_call.1} parent=1 // pred_region
      %s27 = ssub.s32 8192, 8192
      %28 = vsyncadd [#allocation9], %s27
      %s29 = sshll.u32 [#allocation8], 4
      %s30 = int_to_ptr.vmem [resolvable:$true] %s29
      %35 = dma.hbm_to_vmem [thread:$0]  %s1, 8192, %s30, [#allocation9], 512, 512, 32
    $region9: #{tpu_custom_call.1} parent=1 // pred_fallthru
      _
    // Predicated region
    $region10: #{tpu_custom_call.1} parent=1 // pred_check
      _
    $region11: #{tpu_custom_call.1} parent=1 // pred_check_branch
      %37 = sbr.rel (0) target = $region13
    $region12: #{tpu_custom_call.1} parent=1 // pred_region
      %s39 = ssub.s32 2048, 2048
      %40 = vsyncadd [#allocation9], %s39
      %s41 = sshll.u32 [#allocation10], 4
      %s42 = int_to_ptr.vmem [resolvable:$true] %s41
      %47 = dma.hbm_to_vmem [thread:$0]  %s2, 2048, %s42, [#allocation9], 128, 128, 8
    $region13: #{tpu_custom_call.1} parent=1 // pred_fallthru
      _
    // Predicated region
    $region14: #{tpu_custom_call.1} parent=1 // pred_check
      _
    $region15: #{tpu_custom_call.1} parent=1 // pred_check_branch
      %49 = sbr.rel (0) target = $region17
    $region16: #{tpu_custom_call.1} parent=1 // pred_region
      _
    $region17: #{tpu_custom_call.1} parent=1 // pred_fallthru
      _
    // Predicated region
    $region18: #{tpu_custom_call.1} parent=1 // pred_check
      _
    $region19: #{tpu_custom_call.1} parent=1 // pred_check_branch
      %51 = sbr.rel (0) target = $region21
    $region20: #{tpu_custom_call.1} parent=1 // pred_region
      %52 = dma.done [#allocation6], 4096
    $region21: #{tpu_custom_call.1} parent=1 // pred_fallthru
      _
    // Predicated region
    $region22: #{tpu_custom_call.1} parent=1 // pred_check
      _
    $region23: #{tpu_custom_call.1} parent=1 // pred_check_branch
      %54 = sbr.rel (0) target = $region25
    $region24: #{tpu_custom_call.1} parent=1 // pred_region
      %55 = dma.done [#allocation9], 8192
    $region25: #{tpu_custom_call.1} parent=1 // pred_fallthru
      _
    // Predicated region
    $region26: #{tpu_custom_call.1} parent=1 // pred_check
      _
    $region27: #{tpu_custom_call.1} parent=1 // pred_check_branch
      %57 = sbr.rel (0) target = $region29
    $region28: #{tpu_custom_call.1} parent=1 // pred_region
      %58 = dma.done [#allocation9], 2048
    $region29: #{tpu_custom_call.1} parent=1 // pred_fallthru
      _
    %p59 = scmp.eq.s32.totalorder 0, 0
    // Predicated region
    $region30: #{tpu_custom_call.1} parent=1 // pred_check
      %p60 = pneg %p59
    $region31: #{tpu_custom_call.1} parent=1 // pred_check_branch
      %62 = sbr.rel (%p60) target = $region33
    $region32: #{tpu_custom_call.1} parent=1 // pred_region
      %63 = vst [vmem:[#allocation2] sm:$0xff] 0.0
      %64 = vst [vmem:[#allocation3] sm:$0xff] 0.0
    $region33: #{tpu_custom_call.1} parent=1 // pred_fallthru
      _
    %v65 = vld [vmem:[#allocation2] sm:$0xff]
    %v66 = vld [vmem:[#allocation3] sm:$0xff]
    %v67 = vld [vmem:[#allocation5] sm:$0xff]
    %v68 = vld [vmem:[#allocation5 + $0x8] sm:$0xff]
    %v69 = vld [vmem:[#allocation5 + $0x10] sm:$0xff]
    %v70 = vld [vmem:[#allocation5 + $0x18] sm:$0xff]
    %v71 = vld [vmem:[#allocation8] sm:$0xff]
    %v72 = vld [vmem:[#allocation8 + $0x8] sm:$0xff]
    %v73 = vld [vmem:[#allocation8 + $0x10] sm:$0xff]
    %v74 = vld [vmem:[#allocation8 + $0x18] sm:$0xff]
    %v75 = vld [vmem:[#allocation8 + $0x20] sm:$0xff]
    %v76 = vld [vmem:[#allocation8 + $0x28] sm:$0xff]
    %v77 = vld [vmem:[#allocation8 + $0x30] sm:$0xff]
    %v78 = vld [vmem:[#allocation8 + $0x38] sm:$0xff]
    %v79 = vld [vmem:[#allocation8 + $0x40] sm:$0xff]
    %v80 = vld [vmem:[#allocation8 + $0x48] sm:$0xff]
    %v81 = vld [vmem:[#allocation8 + $0x50] sm:$0xff]
    %v82 = vld [vmem:[#allocation8 + $0x58] sm:$0xff]
    %v83 = vld [vmem:[#allocation8 + $0x60] sm:$0xff]
    %v84 = vld [vmem:[#allocation8 + $0x68] sm:$0xff]
    %v85 = vld [vmem:[#allocation8 + $0x70] sm:$0xff]
    %v86 = vld [vmem:[#allocation8 + $0x78] sm:$0xff]
    %v87 = vld [vmem:[#allocation8 + $0x80] sm:$0xff]
    %v88 = vld [vmem:[#allocation8 + $0x88] sm:$0xff]
    %v89 = vld [vmem:[#allocation8 + $0x90] sm:$0xff]
    %v90 = vld [vmem:[#allocation8 + $0x98] sm:$0xff]
    %v91 = vld [vmem:[#allocation8 + $0xa0] sm:$0xff]
    %v92 = vld [vmem:[#allocation8 + $0xa8] sm:$0xff]
    %v93 = vld [vmem:[#allocation8 + $0xb0] sm:$0xff]
    %v94 = vld [vmem:[#allocation8 + $0xb8] sm:$0xff]
    %v95 = vld [vmem:[#allocation8 + $0xc0] sm:$0xff]
    %v96 = vld [vmem:[#allocation8 + $0xc8] sm:$0xff]
    %v97 = vld [vmem:[#allocation8 + $0xd0] sm:$0xff]
    %v98 = vld [vmem:[#allocation8 + $0xd8] sm:$0xff]
    %v99 = vld [vmem:[#allocation8 + $0xe0] sm:$0xff]
    %v100 = vld [vmem:[#allocation8 + $0xe8] sm:$0xff]
    %v101 = vld [vmem:[#allocation8 + $0xf0] sm:$0xff]
    %v102 = vld [vmem:[#allocation8 + $0xf8] sm:$0xff]
    %v103 = vld [vmem:[#allocation8 + $0x100] sm:$0xff]
    %v104 = vld [vmem:[#allocation8 + $0x108] sm:$0xff]
    %v105 = vld [vmem:[#allocation8 + $0x110] sm:$0xff]
    %v106 = vld [vmem:[#allocation8 + $0x118] sm:$0xff]
    %v107 = vld [vmem:[#allocation8 + $0x120] sm:$0xff]
    %v108 = vld [vmem:[#allocation8 + $0x128] sm:$0xff]
    %v109 = vld [vmem:[#allocation8 + $0x130] sm:$0xff]
    %v110 = vld [vmem:[#allocation8 + $0x138] sm:$0xff]
    %v111 = vld [vmem:[#allocation8 + $0x140] sm:$0xff]
    %v112 = vld [vmem:[#allocation8 + $0x148] sm:$0xff]
    %v113 = vld [vmem:[#allocation8 + $0x150] sm:$0xff]
    %v114 = vld [vmem:[#allocation8 + $0x158] sm:$0xff]
    %v115 = vld [vmem:[#allocation8 + $0x160] sm:$0xff]
    %v116 = vld [vmem:[#allocation8 + $0x168] sm:$0xff]
    %v117 = vld [vmem:[#allocation8 + $0x170] sm:$0xff]
    %v118 = vld [vmem:[#allocation8 + $0x178] sm:$0xff]
    %v119 = vld [vmem:[#allocation8 + $0x180] sm:$0xff]
    %v120 = vld [vmem:[#allocation8 + $0x188] sm:$0xff]
    %v121 = vld [vmem:[#allocation8 + $0x190] sm:$0xff]
    %v122 = vld [vmem:[#allocation8 + $0x198] sm:$0xff]
    %v123 = vld [vmem:[#allocation8 + $0x1a0] sm:$0xff]
    %v124 = vld [vmem:[#allocation8 + $0x1a8] sm:$0xff]
    %v125 = vld [vmem:[#allocation8 + $0x1b0] sm:$0xff]
    %v126 = vld [vmem:[#allocation8 + $0x1b8] sm:$0xff]
    %v127 = vld [vmem:[#allocation8 + $0x1c0] sm:$0xff]
    %v128 = vld [vmem:[#allocation8 + $0x1c8] sm:$0xff]
    %v129 = vld [vmem:[#allocation8 + $0x1d0] sm:$0xff]
    %v130 = vld [vmem:[#allocation8 + $0x1d8] sm:$0xff]
    %v131 = vld [vmem:[#allocation8 + $0x1e0] sm:$0xff]
    %v132 = vld [vmem:[#allocation8 + $0x1e8] sm:$0xff]
    %v133 = vld [vmem:[#allocation8 + $0x1f0] sm:$0xff]
    %v134 = vld [vmem:[#allocation8 + $0x1f8] sm:$0xff]
    %135 = vmatprep.subr.mxu0 %v132
    %136 = vmatpush1.msra.mxu0 %v131
    %137 = vmatprep.subr.mxu0 %v128
    %138 = vmatpush1.msra.mxu0 %v127
    %139 = vmatprep.subr.mxu0 %v124
    %140 = vmatpush1.msra.mxu0 %v123
    %141 = vmatprep.subr.mxu0 %v120
    %142 = vmatpush1.msra.mxu0 %v119
    %143 = vmatprep.subr.mxu0 %v116
    %144 = vmatpush1.msra.mxu0 %v115
    %145 = vmatprep.subr.mxu0 %v112
    %146 = vmatpush1.msra.mxu0 %v111
    %147 = vmatprep.subr.mxu0 %v108
    %148 = vmatpush1.msra.mxu0 %v107
    %149 = vmatprep.subr.mxu0 %v104
    %150 = vmatpush1.msra.mxu0 %v103
    %151 = vmatprep.subr.mxu0 %v100
    %152 = vmatpush1.msra.mxu0 %v99
    %153 = vmatprep.subr.mxu0 %v96
    %154 = vmatpush1.msra.mxu0 %v95
    %155 = vmatprep.subr.mxu0 %v92
    %156 = vmatpush1.msra.mxu0 %v91
    %157 = vmatprep.subr.mxu0 %v88
    %158 = vmatpush1.msra.mxu0 %v87
    %159 = vmatprep.subr.mxu0 %v84
    %160 = vmatpush1.msra.mxu0 %v83
    %161 = vmatprep.subr.mxu0 %v80
    %162 = vmatpush1.msra.mxu0 %v79
    %163 = vmatprep.subr.mxu0 %v76
    %164 = vmatpush1.msra.mxu0 %v75
    %165 = vmatprep.subr.mxu0 %v72
    %166 = vmatpush1.msra.mxu0 %v71
    %167 = vmatprep.subr.mxu0 0.0
    %168 = vmatpush2.msra.mxu0 0.0
    %169 = vmatprep.subr.mxu0 0.0
    %170 = vmatpush2.msra.mxu0 0.0
    %171 = vmatprep.subr.mxu0 0.0
    %172 = vmatpush2.msra.mxu0 0.0
    %173 = vmatprep.subr.mxu0 0.0
    %174 = vmatpush2.msra.mxu0 0.0
    %175 = vmatprep.subr.mxu0 0.0
    %176 = vmatpush2.msra.mxu0 0.0
    %177 = vmatprep.subr.mxu0 0.0
    %178 = vmatpush2.msra.mxu0 0.0
    %179 = vmatprep.subr.mxu0 0.0
    %180 = vmatpush2.msra.mxu0 0.0
    %181 = vmatprep.subr.mxu0 0.0
    %182 = vmatpush2.msra.mxu0 0.0
    %183 = vmatprep.subr.mxu0 0.0
    %184 = vmatpush2.msra.mxu0 0.0
    %185 = vmatprep.subr.mxu0 0.0
    %186 = vmatpush2.msra.mxu0 0.0
    %187 = vmatprep.subr.mxu0 0.0
    %188 = vmatpush2.msra.mxu0 0.0
    %189 = vmatprep.subr.mxu0 0.0
    %190 = vmatpush2.msra.mxu0 0.0
    %191 = vmatprep.subr.mxu0 0.0
    %192 = vmatpush2.msra.mxu0 0.0
    %193 = vmatprep.subr.mxu0 0.0
    %194 = vmatpush2.msra.mxu0 0.0
    %195 = vmatprep.subr.mxu0 0.0
    %196 = vmatpush2.msra.mxu0 0.0
    %197 = vmatprep.subr.mxu0 0.0
    %198 = vmatpush2.msra.mxu0 0.0
    %199 = vmatprep.mubr.f32.mxu0 0.0
    %200 = vmatmul.mubr.f32.gmra.mxu0 %v65
    %v201 = vpop.f32.mrf.mxu0
    %v202 = vadd.f32 0.0, %v201
    %v203 = vpop.f32.mrf.mxu0
    %v204 = vadd.f32 0.0, %v203
    %205 = vdwg.mxu0
    %206 = vmatprep.subr.mxu0 %v134
    %207 = vmatpush1.msra.mxu0 %v133
    %208 = vmatprep.subr.mxu0 %v130
    %209 = vmatpush1.msra.mxu0 %v129
    %210 = vmatprep.subr.mxu0 %v126
    %211 = vmatpush1.msra.mxu0 %v125
    %212 = vmatprep.subr.mxu0 %v122
    %213 = vmatpush1.msra.mxu0 %v121
    %214 = vmatprep.subr.mxu0 %v118
    %215 = vmatpush1.msra.mxu0 %v117
    %216 = vmatprep.subr.mxu0 %v114
    %217 = vmatpush1.msra.mxu0 %v113
    %218 = vmatprep.subr.mxu0 %v110
    %219 = vmatpush1.msra.mxu0 %v109
    %220 = vmatprep.subr.mxu0 %v106
    %221 = vmatpush1.msra.mxu0 %v105
    %222 = vmatprep.subr.mxu0 %v102
    %223 = vmatpush1.msra.mxu0 %v101
    %224 = vmatprep.subr.mxu0 %v98
    %225 = vmatpush1.msra.mxu0 %v97
    %226 = vmatprep.subr.mxu0 %v94
    %227 = vmatpush1.msra.mxu0 %v93
    %228 = vmatprep.subr.mxu0 %v90
    %229 = vmatpush1.msra.mxu0 %v89
    %230 = vmatprep.subr.mxu0 %v86
    %231 = vmatpush1.msra.mxu0 %v85
    %232 = vmatprep.subr.mxu0 %v82
    %233 = vmatpush1.msra.mxu0 %v81
    %234 = vmatprep.subr.mxu0 %v78
    %235 = vmatpush1.msra.mxu0 %v77
    %236 = vmatprep.subr.mxu0 %v74
    %237 = vmatpush1.msra.mxu0 %v73
    %238 = vmatprep.subr.mxu0 0.0
    %239 = vmatpush2.msra.mxu0 0.0
    %240 = vmatprep.subr.mxu0 0.0
    %241 = vmatpush2.msra.mxu0 0.0
    %242 = vmatprep.subr.mxu0 0.0
    %243 = vmatpush2.msra.mxu0 0.0
    %244 = vmatprep.subr.mxu0 0.0
    %245 = vmatpush2.msra.mxu0 0.0
    %246 = vmatprep.subr.mxu0 0.0
    %247 = vmatpush2.msra.mxu0 0.0
    %248 = vmatprep.subr.mxu0 0.0
    %249 = vmatpush2.msra.mxu0 0.0
    %250 = vmatprep.subr.mxu0 0.0
    %251 = vmatpush2.msra.mxu0 0.0
    %252 = vmatprep.subr.mxu0 0.0
    %253 = vmatpush2.msra.mxu0 0.0
    %254 = vmatprep.subr.mxu0 0.0
    %255 = vmatpush2.msra.mxu0 0.0
    %256 = vmatprep.subr.mxu0 0.0
    %257 = vmatpush2.msra.mxu0 0.0
    %258 = vmatprep.subr.mxu0 0.0
    %259 = vmatpush2.msra.mxu0 0.0
    %260 = vmatprep.subr.mxu0 0.0
    %261 = vmatpush2.msra.mxu0 0.0
    %262 = vmatprep.subr.mxu0 0.0
    %263 = vmatpush2.msra.mxu0 0.0
    %264 = vmatprep.subr.mxu0 0.0
    %265 = vmatpush2.msra.mxu0 0.0
    %266 = vmatprep.subr.mxu0 0.0
    %267 = vmatpush2.msra.mxu0 0.0
    %268 = vmatprep.subr.mxu0 0.0
    %269 = vmatpush2.msra.mxu0 0.0
    %270 = vmatprep.mubr.f32.mxu0 0.0
    %271 = vmatmul.mubr.f32.gmra.mxu0 %v65
    %v272 = vpop.f32.mrf.mxu0
    %v273 = vadd.f32 0.0, %v272
    %v274 = vpop.f32.mrf.mxu0
    %v275 = vadd.f32 0.0, %v274
    %276 = vdwg.mxu0
    %v277 = vadd.f32 %v67, %v202
    %v278 = vadd.f32 %v68, %v204
    %v279 = vadd.f32 %v69, %v273
    %v280 = vadd.f32 %v70, %v275
    %v281 = vxor.u32 %v277, 2147483648
    %v282 = vmul.f32 %v281, 1.442695
    %v283 = vpow.pop %v282
    %v284 = vadd.f32 %v283, 1.0
    %v285 = vrcp.pop %v284
    %v286 = vmul.f32 1.0, %v285
    %v287 = vxor.u32 %v278, 2147483648
    %v288 = vmul.f32 %v287, 1.442695
    %v289 = vpow.pop %v288
    %v290 = vadd.f32 %v289, 1.0
    %v291 = vrcp.pop %v290
    %v292 = vmul.f32 1.0, %v291
    %v293 = vtanh.pop %v279
    %v294 = vxor.u32 %v280, 2147483648
    %v295 = vmul.f32 %v294, 1.442695
    %v296 = vpow.pop %v295
    %v297 = vadd.f32 %v296, 1.0
    %v298 = vrcp.pop %v297
    %v299 = vmul.f32 1.0, %v298
    %v300 = vmul.f32 %v292, %v66
    %v301 = vmul.f32 %v286, %v293
    %v302 = vadd.f32 %v300, %v301
    %v303 = vtanh.pop %v302
    %v304 = vmul.f32 %v299, %v303
    %305 = vst [vmem:[#allocation3] sm:$0xff] %v302
    %306 = vst [vmem:[#allocation2] sm:$0xff] %v304
    %307 = vst [vmem:[#allocation4] sm:$0xff] %v304
    %v308 = vld [vmem:[#allocation2] sm:$0xff]
    %v309 = vld [vmem:[#allocation3] sm:$0xff]
    %s310 = scalar_lea.vmem [#allocation5], 32
    %v311 = vld [vmem:[%s310] sm:$0xff]
    %v312 = vld [vmem:[%s310 + $0x8] sm:$0xff]
    %v313 = vld [vmem:[%s310 + $0x10] sm:$0xff]
    %v314 = vld [vmem:[%s310 + $0x18] sm:$0xff]
    %v315 = vld [vmem:[#allocation8] sm:$0xff]
    %v316 = vld [vmem:[#allocation8 + $0x8] sm:$0xff]
    %v317 = vld [vmem:[#allocation8 + $0x10] sm:$0xff]
    %v318 = vld [vmem:[#allocation8 + $0x18] sm:$0xff]
    %v319 = vld [vmem:[#allocation8 + $0x20] sm:$0xff]
    %v320 = vld [vmem:[#allocation8 + $0x28] sm:$0xff]
    %v321 = vld [vmem:[#allocation8 + $0x30] sm:$0xff]
    %v322 = vld [vmem:[#allocation8 + $0x38] sm:$0xff]
    %v323 = vld [vmem:[#allocation8 + $0x40] sm:$0xff]
    %v324 = vld [vmem:[#allocation8 + $0x48] sm:$0xff]
    %v325 = vld [vmem:[#allocation8 + $0x50] sm:$0xff]
    %v326 = vld [vmem:[#allocation8 + $0x58] sm:$0xff]
    %v327 = vld [vmem:[#allocation8 + $0x60] sm:$0xff]
    %v328 = vld [vmem:[#allocation8 + $0x68] sm:$0xff]
    %v329 = vld [vmem:[#allocation8 + $0x70] sm:$0xff]
    %v330 = vld [vmem:[#allocation8 + $0x78] sm:$0xff]
    %v331 = vld [vmem:[#allocation8 + $0x80] sm:$0xff]
    %v332 = vld [vmem:[#allocation8 + $0x88] sm:$0xff]
    %v333 = vld [vmem:[#allocation8 + $0x90] sm:$0xff]
    %v334 = vld [vmem:[#allocation8 + $0x98] sm:$0xff]
    %v335 = vld [vmem:[#allocation8 + $0xa0] sm:$0xff]
    %v336 = vld [vmem:[#allocation8 + $0xa8] sm:$0xff]
    %v337 = vld [vmem:[#allocation8 + $0xb0] sm:$0xff]
    %v338 = vld [vmem:[#allocation8 + $0xb8] sm:$0xff]
    %v339 = vld [vmem:[#allocation8 + $0xc0] sm:$0xff]
    %v340 = vld [vmem:[#allocation8 + $0xc8] sm:$0xff]
    %v341 = vld [vmem:[#allocation8 + $0xd0] sm:$0xff]
    %v342 = vld [vmem:[#allocation8 + $0xd8] sm:$0xff]
    %v343 = vld [vmem:[#allocation8 + $0xe0] sm:$0xff]
    %v344 = vld [vmem:[#allocation8 + $0xe8] sm:$0xff]
    %v345 = vld [vmem:[#allocation8 + $0xf0] sm:$0xff]
    %v346 = vld [vmem:[#allocation8 + $0xf8] sm:$0xff]
    %v347 = vld [vmem:[#allocation8 + $0x100] sm:$0xff]
    %v348 = vld [vmem:[#allocation8 + $0x108] sm:$0xff]
    %v349 = vld [vmem:[#allocation8 + $0x110] sm:$0xff]
    %v350 = vld [vmem:[#allocation8 + $0x118] sm:$0xff]
    %v351 = vld [vmem:[#allocation8 + $0x120] sm:$0xff]
    %v352 = vld [vmem:[#allocation8 + $0x128] sm:$0xff]
    %v353 = vld [vmem:[#allocation8 + $0x130] sm:$0xff]
    %v354 = vld [vmem:[#allocation8 + $0x138] sm:$0xff]
    %v355 = vld [vmem:[#allocation8 + $0x140] sm:$0xff]
    %v356 = vld [vmem:[#allocation8 + $0x148] sm:$0xff]
    %v357 = vld [vmem:[#allocation8 + $0x150] sm:$0xff]
    %v358 = vld [vmem:[#allocation8 + $0x158] sm:$0xff]
    %v359 = vld [vmem:[#allocation8 + $0x160] sm:$0xff]
    %v360 = vld [vmem:[#allocation8 + $0x168] sm:$0xff]
    %v361 = vld [vmem:[#allocation8 + $0x170] sm:$0xff]
    %v362 = vld [vmem:[#allocation8 + $0x178] sm:$0xff]
    %v363 = vld [vmem:[#allocation8 + $0x180] sm:$0xff]
    %v364 = vld [vmem:[#allocation8 + $0x188] sm:$0xff]
    %v365 = vld [vmem:[#allocation8 + $0x190] sm:$0xff]
    %v366 = vld [vmem:[#allocation8 + $0x198] sm:$0xff]
    %v367 = vld [vmem:[#allocation8 + $0x1a0] sm:$0xff]
    %v368 = vld [vmem:[#allocation8 + $0x1a8] sm:$0xff]
    %v369 = vld [vmem:[#allocation8 + $0x1b0] sm:$0xff]
    %v370 = vld [vmem:[#allocation8 + $0x1b8] sm:$0xff]
    %v371 = vld [vmem:[#allocation8 + $0x1c0] sm:$0xff]
    %v372 = vld [vmem:[#allocation8 + $0x1c8] sm:$0xff]
    %v373 = vld [vmem:[#allocation8 + $0x1d0] sm:$0xff]
    %v374 = vld [vmem:[#allocation8 + $0x1d8] sm:$0xff]
    %v375 = vld [vmem:[#allocation8 + $0x1e0] sm:$0xff]
    %v376 = vld [vmem:[#allocation8 + $0x1e8] sm:$0xff]
    %v377 = vld [vmem:[#allocation8 + $0x1f0] sm:$0xff]
    %v378 = vld [vmem:[#allocation8 + $0x1f8] sm:$0xff]
    %379 = vmatprep.subr.mxu0 %v376
    %380 = vmatpush1.msra.mxu0 %v375
    %381 = vmatprep.subr.mxu0 %v372
    %382 = vmatpush1.msra.mxu0 %v371
    %383 = vmatprep.subr.mxu0 %v368
    %384 = vmatpush1.msra.mxu0 %v367
    %385 = vmatprep.subr.mxu0 %v364
    %386 = vmatpush1.msra.mxu0 %v363
    %387 = vmatprep.subr.mxu0 %v360
    %388 = vmatpush1.msra.mxu0 %v359
    %389 = vmatprep.subr.mxu0 %v356
    %390 = vmatpush1.msra.mxu0 %v355
    %391 = vmatprep.subr.mxu0 %v352
    %392 = vmatpush1.msra.mxu0 %v351
    %393 = vmatprep.subr.mxu0 %v348
    %394 = vmatpush1.msra.mxu0 %v347
    %395 = vmatprep.subr.mxu0 %v344
    %396 = vmatpush1.msra.mxu0 %v343
    %397 = vmatprep.subr.mxu0 %v340
    %398 = vmatpush1.msra.mxu0 %v339
    %399 = vmatprep.subr.mxu0 %v336
    %400 = vmatpush1.msra.mxu0 %v335
    %401 = vmatprep.subr.mxu0 %v332
    %402 = vmatpush1.msra.mxu0 %v331
    %403 = vmatprep.subr.mxu0 %v328
    %404 = vmatpush1.msra.mxu0 %v327
    %405 = vmatprep.subr.mxu0 %v324
    %406 = vmatpush1.msra.mxu0 %v323
    %407 = vmatprep.subr.mxu0 %v320
    %408 = vmatpush1.msra.mxu0 %v319
    %409 = vmatprep.subr.mxu0 %v316
    %410 = vmatpush1.msra.mxu0 %v315
    %411 = vmatprep.subr.mxu0 0.0
    %412 = vmatpush2.msra.mxu0 0.0
    %413 = vmatprep.subr.mxu0 0.0
    %414 = vmatpush2.msra.mxu0 0.0
    %415 = vmatprep.subr.mxu0 0.0
    %416 = vmatpush2.msra.mxu0 0.0
    %417 = vmatprep.subr.mxu0 0.0
    %418 = vmatpush2.msra.mxu0 0.0
    %419 = vmatprep.subr.mxu0 0.0
    %420 = vmatpush2.msra.mxu0 0.0
    %421 = vmatprep.subr.mxu0 0.0
    %422 = vmatpush2.msra.mxu0 0.0
    %423 = vmatprep.subr.mxu0 0.0
    %424 = vmatpush2.msra.mxu0 0.0
    %425 = vmatprep.subr.mxu0 0.0
    %426 = vmatpush2.msra.mxu0 0.0
    %427 = vmatprep.subr.mxu0 0.0
    %428 = vmatpush2.msra.mxu0 0.0
    %429 = vmatprep.subr.mxu0 0.0
    %430 = vmatpush2.msra.mxu0 0.0
    %431 = vmatprep.subr.mxu0 0.0
    %432 = vmatpush2.msra.mxu0 0.0
    %433 = vmatprep.subr.mxu0 0.0
    %434 = vmatpush2.msra.mxu0 0.0
    %435 = vmatprep.subr.mxu0 0.0
    %436 = vmatpush2.msra.mxu0 0.0
    %437 = vmatprep.subr.mxu0 0.0
    %438 = vmatpush2.msra.mxu0 0.0
    %439 = vmatprep.subr.mxu0 0.0
    %440 = vmatpush2.msra.mxu0 0.0
    %441 = vmatprep.subr.mxu0 0.0
    %442 = vmatpush2.msra.mxu0 0.0
    %443 = vmatprep.mubr.f32.mxu0 0.0
    %444 = vmatmul.mubr.f32.gmra.mxu0 %v308
    %v445 = vpop.f32.mrf.mxu0
    %v446 = vadd.f32 0.0, %v445
    %v447 = vpop.f32.mrf.mxu0
    %v448 = vadd.f32 0.0, %v447
    %449 = vdwg.mxu0
    %450 = vmatprep.subr.mxu0 %v378
    %451 = vmatpush1.msra.mxu0 %v377
    %452 = vmatprep.subr.mxu0 %v374
    %453 = vmatpush1.msra.mxu0 %v373
    %454 = vmatprep.subr.mxu0 %v370
    %455 = vmatpush1.msra.mxu0 %v369
    %456 = vmatprep.subr.mxu0 %v366
    %457 = vmatpush1.msra.mxu0 %v365
    %458 = vmatprep.subr.mxu0 %v362
    %459 = vmatpush1.msra.mxu0 %v361
    %460 = vmatprep.subr.mxu0 %v358
    %461 = vmatpush1.msra.mxu0 %v357
    %462 = vmatprep.subr.mxu0 %v354
    %463 = vmatpush1.msra.mxu0 %v353
    %464 = vmatprep.subr.mxu0 %v350
    %465 = vmatpush1.msra.mxu0 %v349
    %466 = vmatprep.subr.mxu0 %v346
    %467 = vmatpush1.msra.mxu0 %v345
    %468 = vmatprep.subr.mxu0 %v342
    %469 = vmatpush1.msra.mxu0 %v341
    %470 = vmatprep.subr.mxu0 %v338
    %471 = vmatpush1.msra.mxu0 %v337
    %472 = vmatprep.subr.mxu0 %v334
    %473 = vmatpush1.msra.mxu0 %v333
    %474 = vmatprep.subr.mxu0 %v330
    %475 = vmatpush1.msra.mxu0 %v329
    %476 = vmatprep.subr.mxu0 %v326
    %477 = vmatpush1.msra.mxu0 %v325
    %478 = vmatprep.subr.mxu0 %v322
    %479 = vmatpush1.msra.mxu0 %v321
    %480 = vmatprep.subr.mxu0 %v318
    %481 = vmatpush1.msra.mxu0 %v317
    %482 = vmatprep.subr.mxu0 0.0
    %483 = vmatpush2.msra.mxu0 0.0
    %484 = vmatprep.subr.mxu0 0.0
    %485 = vmatpush2.msra.mxu0 0.0
    %486 = vmatprep.subr.mxu0 0.0
    %487 = vmatpush2.msra.mxu0 0.0
    %488 = vmatprep.subr.mxu0 0.0
    %489 = vmatpush2.msra.mxu0 0.0
    %490 = vmatprep.subr.mxu0 0.0
    %491 = vmatpush2.msra.mxu0 0.0
    %492 = vmatprep.subr.mxu0 0.0
    %493 = vmatpush2.msra.mxu0 0.0
    %494 = vmatprep.subr.mxu0 0.0
    %495 = vmatpush2.msra.mxu0 0.0
    %496 = vmatprep.subr.mxu0 0.0
    %497 = vmatpush2.msra.mxu0 0.0
    %498 = vmatprep.subr.mxu0 0.0
    %499 = vmatpush2.msra.mxu0 0.0
    %500 = vmatprep.subr.mxu0 0.0
    %501 = vmatpush2.msra.mxu0 0.0
    %502 = vmatprep.subr.mxu0 0.0
    %503 = vmatpush2.msra.mxu0 0.0
    %504 = vmatprep.subr.mxu0 0.0
    %505 = vmatpush2.msra.mxu0 0.0
    %506 = vmatprep.subr.mxu0 0.0
    %507 = vmatpush2.msra.mxu0 0.0
    %508 = vmatprep.subr.mxu0 0.0
    %509 = vmatpush2.msra.mxu0 0.0
    %510 = vmatprep.subr.mxu0 0.0
    %511 = vmatpush2.msra.mxu0 0.0
    %512 = vmatprep.subr.mxu0 0.0
    %513 = vmatpush2.msra.mxu0 0.0
    %514 = vmatprep.mubr.f32.mxu0 0.0
    %515 = vmatmul.mubr.f32.gmra.mxu0 %v308
    %v516 = vpop.f32.mrf.mxu0
    %v517 = vadd.f32 0.0, %v516
    %v518 = vpop.f32.mrf.mxu0
    %v519 = vadd.f32 0.0, %v518
    %520 = vdwg.mxu0
    %v521 = vadd.f32 %v311, %v446
    %v522 = vadd.f32 %v312, %v448
    %v523 = vadd.f32 %v313, %v517
    %v524 = vadd.f32 %v314, %v519
    %v525 = vxor.u32 %v521, 2147483648
    %v526 = vmul.f32 %v525, 1.442695
    %v527 = vpow.pop %v526
    %v528 = vadd.f32 %v527, 1.0
    %v529 = vrcp.pop %v528
    %v530 = vmul.f32 1.0, %v529
    %v531 = vxor.u32 %v522, 2147483648
    %v532 = vmul.f32 %v531, 1.442695
    %v533 = vpow.pop %v532
    %v534 = vadd.f32 %v533, 1.0
    %v535 = vrcp.pop %v534
    %v536 = vmul.f32 1.0, %v535
    %v537 = vtanh.pop %v523
    %v538 = vxor.u32 %v524, 2147483648
    %v539 = vmul.f32 %v538, 1.442695
    %v540 = vpow.pop %v539
    %v541 = vadd.f32 %v540, 1.0
    %v542 = vrcp.pop %v541
    %v543 = vmul.f32 1.0, %v542
    %v544 = vmul.f32 %v536, %v309
    %v545 = vmul.f32 %v530, %v537
    %v546 = vadd.f32 %v544, %v545
    %v547 = vtanh.pop %v546
    %v548 = vmul.f32 %v543, %v547
    %549 = vst [vmem:[#allocation3] sm:$0xff] %v546
    %550 = vst [vmem:[#allocation2] sm:$0xff] %v548
    %s551 = scalar_lea.vmem [#allocation4], 8
    %552 = vst [vmem:[%s551] sm:$0xff] %v548
    %v553 = vld [vmem:[#allocation2] sm:$0xff]
    %v554 = vld [vmem:[#allocation3] sm:$0xff]
    %s555 = scalar_lea.vmem [#allocation5], 64
    %v556 = vld [vmem:[%s555] sm:$0xff]
    %v557 = vld [vmem:[%s555 + $0x8] sm:$0xff]
    %v558 = vld [vmem:[%s555 + $0x10] sm:$0xff]
    %v559 = vld [vmem:[%s555 + $0x18] sm:$0xff]
    %v560 = vld [vmem:[#allocation8] sm:$0xff]
    %v561 = vld [vmem:[#allocation8 + $0x8] sm:$0xff]
    %v562 = vld [vmem:[#allocation8 + $0x10] sm:$0xff]
    %v563 = vld [vmem:[#allocation8 + $0x18] sm:$0xff]
    %v564 = vld [vmem:[#allocation8 + $0x20] sm:$0xff]
    %v565 = vld [vmem:[#allocation8 + $0x28] sm:$0xff]
    %v566 = vld [vmem:[#allocation8 + $0x30] sm:$0xff]
    %v567 = vld [vmem:[#allocation8 + $0x38] sm:$0xff]
    %v568 = vld [vmem:[#allocation8 + $0x40] sm:$0xff]
    %v569 = vld [vmem:[#allocation8 + $0x48] sm:$0xff]
    %v570 = vld [vmem:[#allocation8 + $0x50] sm:$0xff]
    %v571 = vld [vmem:[#allocation8 + $0x58] sm:$0xff]
    %v572 = vld [vmem:[#allocation8 + $0x60] sm:$0xff]
    %v573 = vld [vmem:[#allocation8 + $0x68] sm:$0xff]
    %v574 = vld [vmem:[#allocation8 + $0x70] sm:$0xff]
    %v575 = vld [vmem:[#allocation8 + $0x78] sm:$0xff]
    %v576 = vld [vmem:[#allocation8 + $0x80] sm:$0xff]
    %v577 = vld [vmem:[#allocation8 + $0x88] sm:$0xff]
    %v578 = vld [vmem:[#allocation8 + $0x90] sm:$0xff]
    %v579 = vld [vmem:[#allocation8 + $0x98] sm:$0xff]
    %v580 = vld [vmem:[#allocation8 + $0xa0] sm:$0xff]
    %v581 = vld [vmem:[#allocation8 + $0xa8] sm:$0xff]
    %v582 = vld [vmem:[#allocation8 + $0xb0] sm:$0xff]
    %v583 = vld [vmem:[#allocation8 + $0xb8] sm:$0xff]
    %v584 = vld [vmem:[#allocation8 + $0xc0] sm:$0xff]
    %v585 = vld [vmem:[#allocation8 + $0xc8] sm:$0xff]
    %v586 = vld [vmem:[#allocation8 + $0xd0] sm:$0xff]
    %v587 = vld [vmem:[#allocation8 + $0xd8] sm:$0xff]
    %v588 = vld [vmem:[#allocation8 + $0xe0] sm:$0xff]
    %v589 = vld [vmem:[#allocation8 + $0xe8] sm:$0xff]
    %v590 = vld [vmem:[#allocation8 + $0xf0] sm:$0xff]
    %v591 = vld [vmem:[#allocation8 + $0xf8] sm:$0xff]
    %v592 = vld [vmem:[#allocation8 + $0x100] sm:$0xff]
    %v593 = vld [vmem:[#allocation8 + $0x108] sm:$0xff]
    %v594 = vld [vmem:[#allocation8 + $0x110] sm:$0xff]
    %v595 = vld [vmem:[#allocation8 + $0x118] sm:$0xff]
    %v596 = vld [vmem:[#allocation8 + $0x120] sm:$0xff]
    %v597 = vld [vmem:[#allocation8 + $0x128] sm:$0xff]
    %v598 = vld [vmem:[#allocation8 + $0x130] sm:$0xff]
    %v599 = vld [vmem:[#allocation8 + $0x138] sm:$0xff]
    %v600 = vld [vmem:[#allocation8 + $0x140] sm:$0xff]
    %v601 = vld [vmem:[#allocation8 + $0x148] sm:$0xff]
    %v602 = vld [vmem:[#allocation8 + $0x150] sm:$0xff]
    %v603 = vld [vmem:[#allocation8 + $0x158] sm:$0xff]
    %v604 = vld [vmem:[#allocation8 + $0x160] sm:$0xff]
    %v605 = vld [vmem:[#allocation8 + $0x168] sm:$0xff]
    %v606 = vld [vmem:[#allocation8 + $0x170] sm:$0xff]
    %v607 = vld [vmem:[#allocation8 + $0x178] sm:$0xff]
    %v608 = vld [vmem:[#allocation8 + $0x180] sm:$0xff]
    %v609 = vld [vmem:[#allocation8 + $0x188] sm:$0xff]
    %v610 = vld [vmem:[#allocation8 + $0x190] sm:$0xff]
    %v611 = vld [vmem:[#allocation8 + $0x198] sm:$0xff]
    %v612 = vld [vmem:[#allocation8 + $0x1a0] sm:$0xff]
    %v613 = vld [vmem:[#allocation8 + $0x1a8] sm:$0xff]
    %v614 = vld [vmem:[#allocation8 + $0x1b0] sm:$0xff]
    %v615 = vld [vmem:[#allocation8 + $0x1b8] sm:$0xff]
    %v616 = vld [vmem:[#allocation8 + $0x1c0] sm:$0xff]
    %v617 = vld [vmem:[#allocation8 + $0x1c8] sm:$0xff]
    %v618 = vld [vmem:[#allocation8 + $0x1d0] sm:$0xff]
    %v619 = vld [vmem:[#allocation8 + $0x1d8] sm:$0xff]
    %v620 = vld [vmem:[#allocation8 + $0x1e0] sm:$0xff]
    %v621 = vld [vmem:[#allocation8 + $0x1e8] sm:$0xff]
    %v622 = vld [vmem:[#allocation8 + $0x1f0] sm:$0xff]
    %v623 = vld [vmem:[#allocation8 + $0x1f8] sm:$0xff]
    %624 = vmatprep.subr.mxu0 %v621
    %625 = vmatpush1.msra.mxu0 %v620
    %626 = vmatprep.subr.mxu0 %v617
    %627 = vmatpush1.msra.mxu0 %v616
    %628 = vmatprep.subr.mxu0 %v613
    %629 = vmatpush1.msra.mxu0 %v612
    %630 = vmatprep.subr.mxu0 %v609
    %631 = vmatpush1.msra.mxu0 %v608
    %632 = vmatprep.subr.mxu0 %v605
    %633 = vmatpush1.msra.mxu0 %v604
    %634 = vmatprep.subr.mxu0 %v601
    %635 = vmatpush1.msra.mxu0 %v600
    %636 = vmatprep.subr.mxu0 %v597
    %637 = vmatpush1.msra.mxu0 %v596
    %638 = vmatprep.subr.mxu0 %v593
    %639 = vmatpush1.msra.mxu0 %v592
    %640 = vmatprep.subr.mxu0 %v589
    %641 = vmatpush1.msra.mxu0 %v588
    %642 = vmatprep.subr.mxu0 %v585
    %643 = vmatpush1.msra.mxu0 %v584
    %644 = vmatprep.subr.mxu0 %v581
    %645 = vmatpush1.msra.mxu0 %v580
    %646 = vmatprep.subr.mxu0 %v577
    %647 = vmatpush1.msra.mxu0 %v576
    %648 = vmatprep.subr.mxu0 %v573
    %649 = vmatpush1.msra.mxu0 %v572
    %650 = vmatprep.subr.mxu0 %v569
    %651 = vmatpush1.msra.mxu0 %v568
    %652 = vmatprep.subr.mxu0 %v565
    %653 = vmatpush1.msra.mxu0 %v564
    %654 = vmatprep.subr.mxu0 %v561
    %655 = vmatpush1.msra.mxu0 %v560
    %656 = vmatprep.subr.mxu0 0.0
    %657 = vmatpush2.msra.mxu0 0.0
    %658 = vmatprep.subr.mxu0 0.0
    %659 = vmatpush2.msra.mxu0 0.0
    %660 = vmatprep.subr.mxu0 0.0
    %661 = vmatpush2.msra.mxu0 0.0
    %662 = vmatprep.subr.mxu0 0.0
    %663 = vmatpush2.msra.mxu0 0.0
    %664 = vmatprep.subr.mxu0 0.0
    %665 = vmatpush2.msra.mxu0 0.0
    %666 = vmatprep.subr.mxu0 0.0
    %667 = vmatpush2.msra.mxu0 0.0
    %668 = vmatprep.subr.mxu0 0.0
    %669 = vmatpush2.msra.mxu0 0.0
    %670 = vmatprep.subr.mxu0 0.0
    %671 = vmatpush2.msra.mxu0 0.0
    %672 = vmatprep.subr.mxu0 0.0
    %673 = vmatpush2.msra.mxu0 0.0
    %674 = vmatprep.subr.mxu0 0.0
    %675 = vmatpush2.msra.mxu0 0.0
    %676 = vmatprep.subr.mxu0 0.0
    %677 = vmatpush2.msra.mxu0 0.0
    %678 = vmatprep.subr.mxu0 0.0
    %679 = vmatpush2.msra.mxu0 0.0
    %680 = vmatprep.subr.mxu0 0.0
    %681 = vmatpush2.msra.mxu0 0.0
    %682 = vmatprep.subr.mxu0 0.0
    %683 = vmatpush2.msra.mxu0 0.0
    %684 = vmatprep.subr.mxu0 0.0
    %685 = vmatpush2.msra.mxu0 0.0
    %686 = vmatprep.subr.mxu0 0.0
    %687 = vmatpush2.msra.mxu0 0.0
    %688 = vmatprep.mubr.f32.mxu0 0.0
    %689 = vmatmul.mubr.f32.gmra.mxu0 %v553
    %v690 = vpop.f32.mrf.mxu0
    %v691 = vadd.f32 0.0, %v690
    %v692 = vpop.f32.mrf.mxu0
    %v693 = vadd.f32 0.0, %v692
    %694 = vdwg.mxu0
    %695 = vmatprep.subr.mxu0 %v623
    %696 = vmatpush1.msra.mxu0 %v622
    %697 = vmatprep.subr.mxu0 %v619
    %698 = vmatpush1.msra.mxu0 %v618
    %699 = vmatprep.subr.mxu0 %v615
    %700 = vmatpush1.msra.mxu0 %v614
    %701 = vmatprep.subr.mxu0 %v611
    %702 = vmatpush1.msra.mxu0 %v610
    %703 = vmatprep.subr.mxu0 %v607
    %704 = vmatpush1.msra.mxu0 %v606
    %705 = vmatprep.subr.mxu0 %v603
    %706 = vmatpush1.msra.mxu0 %v602
    %707 = vmatprep.subr.mxu0 %v599
    %708 = vmatpush1.msra.mxu0 %v598
    %709 = vmatprep.subr.mxu0 %v595
    %710 = vmatpush1.msra.mxu0 %v594
    %711 = vmatprep.subr.mxu0 %v591
    %712 = vmatpush1.msra.mxu0 %v590
    %713 = vmatprep.subr.mxu0 %v587
    %714 = vmatpush1.msra.mxu0 %v586
    %715 = vmatprep.subr.mxu0 %v583
    %716 = vmatpush1.msra.mxu0 %v582
    %717 = vmatprep.subr.mxu0 %v579
    %718 = vmatpush1.msra.mxu0 %v578
    %719 = vmatprep.subr.mxu0 %v575
    %720 = vmatpush1.msra.mxu0 %v574
    %721 = vmatprep.subr.mxu0 %v571
    %722 = vmatpush1.msra.mxu0 %v570
    %723 = vmatprep.subr.mxu0 %v567
    %724 = vmatpush1.msra.mxu0 %v566
    %725 = vmatprep.subr.mxu0 %v563
    %726 = vmatpush1.msra.mxu0 %v562
    %727 = vmatprep.subr.mxu0 0.0
    %728 = vmatpush2.msra.mxu0 0.0
    %729 = vmatprep.subr.mxu0 0.0
    %730 = vmatpush2.msra.mxu0 0.0
    %731 = vmatprep.subr.mxu0 0.0
    %732 = vmatpush2.msra.mxu0 0.0
    %733 = vmatprep.subr.mxu0 0.0
    %734 = vmatpush2.msra.mxu0 0.0
    %735 = vmatprep.subr.mxu0 0.0
    %736 = vmatpush2.msra.mxu0 0.0
    %737 = vmatprep.subr.mxu0 0.0
    %738 = vmatpush2.msra.mxu0 0.0
    %739 = vmatprep.subr.mxu0 0.0
    %740 = vmatpush2.msra.mxu0 0.0
    %741 = vmatprep.subr.mxu0 0.0
    %742 = vmatpush2.msra.mxu0 0.0
    %743 = vmatprep.subr.mxu0 0.0
    %744 = vmatpush2.msra.mxu0 0.0
    %745 = vmatprep.subr.mxu0 0.0
    %746 = vmatpush2.msra.mxu0 0.0
    %747 = vmatprep.subr.mxu0 0.0
    %748 = vmatpush2.msra.mxu0 0.0
    %749 = vmatprep.subr.mxu0 0.0
    %750 = vmatpush2.msra.mxu0 0.0
    %751 = vmatprep.subr.mxu0 0.0
    %752 = vmatpush2.msra.mxu0 0.0
    %753 = vmatprep.subr.mxu0 0.0
    %754 = vmatpush2.msra.mxu0 0.0
    %755 = vmatprep.subr.mxu0 0.0
    %756 = vmatpush2.msra.mxu0 0.0
    %757 = vmatprep.subr.mxu0 0.0
    %758 = vmatpush2.msra.mxu0 0.0
    %759 = vmatprep.mubr.f32.mxu0 0.0
    %760 = vmatmul.mubr.f32.gmra.mxu0 %v553
    %v761 = vpop.f32.mrf.mxu0
    %v762 = vadd.f32 0.0, %v761
    %v763 = vpop.f32.mrf.mxu0
    %v764 = vadd.f32 0.0, %v763
    %765 = vdwg.mxu0
    %v766 = vadd.f32 %v556, %v691
    %v767 = vadd.f32 %v557, %v693
    %v768 = vadd.f32 %v558, %v762
    %v769 = vadd.f32 %v559, %v764
    %v770 = vxor.u32 %v766, 2147483648
    %v771 = vmul.f32 %v770, 1.442695
    %v772 = vpow.pop %v771
    %v773 = vadd.f32 %v772, 1.0
    %v774 = vrcp.pop %v773
    %v775 = vmul.f32 1.0, %v774
    %v776 = vxor.u32 %v767, 2147483648
    %v777 = vmul.f32 %v776, 1.442695
    %v778 = vpow.pop %v777
    %v779 = vadd.f32 %v778, 1.0
    %v780 = vrcp.pop %v779
    %v781 = vmul.f32 1.0, %v780
    %v782 = vtanh.pop %v768
    %v783 = vxor.u32 %v769, 2147483648
    %v784 = vmul.f32 %v783, 1.442695
    %v785 = vpow.pop %v784
    %v786 = vadd.f32 %v785, 1.0
    %v787 = vrcp.pop %v786
    %v788 = vmul.f32 1.0, %v787
    %v789 = vmul.f32 %v781, %v554
    %v790 = vmul.f32 %v775, %v782
    %v791 = vadd.f32 %v789, %v790
    %v792 = vtanh.pop %v791
    %v793 = vmul.f32 %v788, %v792
    %794 = vst [vmem:[#allocation3] sm:$0xff] %v791
    %795 = vst [vmem:[#allocation2] sm:$0xff] %v793
    %s796 = scalar_lea.vmem [#allocation4], 16
    %797 = vst [vmem:[%s796] sm:$0xff] %v793
    %v798 = vld [vmem:[#allocation2] sm:$0xff]
    %v799 = vld [vmem:[#allocation3] sm:$0xff]
    %s800 = scalar_lea.vmem [#allocation5], 96
    %v801 = vld [vmem:[%s800] sm:$0xff]
    %v802 = vld [vmem:[%s800 + $0x8] sm:$0xff]
    %v803 = vld [vmem:[%s800 + $0x10] sm:$0xff]
    %v804 = vld [vmem:[%s800 + $0x18] sm:$0xff]
    %v805 = vld [vmem:[#allocation8] sm:$0xff]
    %v806 = vld [vmem:[#allocation8 + $0x8] sm:$0xff]
    %v807 = vld [vmem:[#allocation8 + $0x10] sm:$0xff]
    %v808 = vld [vmem:[#allocation8 + $0x18] sm:$0xff]
    %v809 = vld [vmem:[#allocation8 + $0x20] sm:$0xff]
    %v810 = vld [vmem:[#allocation8 + $0x28] sm:$0xff]
    %v811 = vld [vmem:[#allocation8 + $0x30] sm:$0xff]
    %v812 = vld [vmem:[#allocation8 + $0x38] sm:$0xff]
    %v813 = vld [vmem:[#allocation8 + $0x40] sm:$0xff]
    %v814 = vld [vmem:[#allocation8 + $0x48] sm:$0xff]
    %v815 = vld [vmem:[#allocation8 + $0x50] sm:$0xff]
    %v816 = vld [vmem:[#allocation8 + $0x58] sm:$0xff]
    %v817 = vld [vmem:[#allocation8 + $0x60] sm:$0xff]
    %v818 = vld [vmem:[#allocation8 + $0x68] sm:$0xff]
    %v819 = vld [vmem:[#allocation8 + $0x70] sm:$0xff]
    %v820 = vld [vmem:[#allocation8 + $0x78] sm:$0xff]
    %v821 = vld [vmem:[#allocation8 + $0x80] sm:$0xff]
    %v822 = vld [vmem:[#allocation8 + $0x88] sm:$0xff]
    %v823 = vld [vmem:[#allocation8 + $0x90] sm:$0xff]
    %v824 = vld [vmem:[#allocation8 + $0x98] sm:$0xff]
    %v825 = vld [vmem:[#allocation8 + $0xa0] sm:$0xff]
    %v826 = vld [vmem:[#allocation8 + $0xa8] sm:$0xff]
    %v827 = vld [vmem:[#allocation8 + $0xb0] sm:$0xff]
    %v828 = vld [vmem:[#allocation8 + $0xb8] sm:$0xff]
    %v829 = vld [vmem:[#allocation8 + $0xc0] sm:$0xff]
    %v830 = vld [vmem:[#allocation8 + $0xc8] sm:$0xff]
    %v831 = vld [vmem:[#allocation8 + $0xd0] sm:$0xff]
    %v832 = vld [vmem:[#allocation8 + $0xd8] sm:$0xff]
    %v833 = vld [vmem:[#allocation8 + $0xe0] sm:$0xff]
    %v834 = vld [vmem:[#allocation8 + $0xe8] sm:$0xff]
    %v835 = vld [vmem:[#allocation8 + $0xf0] sm:$0xff]
    %v836 = vld [vmem:[#allocation8 + $0xf8] sm:$0xff]
    %v837 = vld [vmem:[#allocation8 + $0x100] sm:$0xff]
    %v838 = vld [vmem:[#allocation8 + $0x108] sm:$0xff]
    %v839 = vld [vmem:[#allocation8 + $0x110] sm:$0xff]
    %v840 = vld [vmem:[#allocation8 + $0x118] sm:$0xff]
    %v841 = vld [vmem:[#allocation8 + $0x120] sm:$0xff]
    %v842 = vld [vmem:[#allocation8 + $0x128] sm:$0xff]
    %v843 = vld [vmem:[#allocation8 + $0x130] sm:$0xff]
    %v844 = vld [vmem:[#allocation8 + $0x138] sm:$0xff]
    %v845 = vld [vmem:[#allocation8 + $0x140] sm:$0xff]
    %v846 = vld [vmem:[#allocation8 + $0x148] sm:$0xff]
    %v847 = vld [vmem:[#allocation8 + $0x150] sm:$0xff]
    %v848 = vld [vmem:[#allocation8 + $0x158] sm:$0xff]
    %v849 = vld [vmem:[#allocation8 + $0x160] sm:$0xff]
    %v850 = vld [vmem:[#allocation8 + $0x168] sm:$0xff]
    %v851 = vld [vmem:[#allocation8 + $0x170] sm:$0xff]
    %v852 = vld [vmem:[#allocation8 + $0x178] sm:$0xff]
    %v853 = vld [vmem:[#allocation8 + $0x180] sm:$0xff]
    %v854 = vld [vmem:[#allocation8 + $0x188] sm:$0xff]
    %v855 = vld [vmem:[#allocation8 + $0x190] sm:$0xff]
    %v856 = vld [vmem:[#allocation8 + $0x198] sm:$0xff]
    %v857 = vld [vmem:[#allocation8 + $0x1a0] sm:$0xff]
    %v858 = vld [vmem:[#allocation8 + $0x1a8] sm:$0xff]
    %v859 = vld [vmem:[#allocation8 + $0x1b0] sm:$0xff]
    %v860 = vld [vmem:[#allocation8 + $0x1b8] sm:$0xff]
    %v861 = vld [vmem:[#allocation8 + $0x1c0] sm:$0xff]
    %v862 = vld [vmem:[#allocation8 + $0x1c8] sm:$0xff]
    %v863 = vld [vmem:[#allocation8 + $0x1d0] sm:$0xff]
    %v864 = vld [vmem:[#allocation8 + $0x1d8] sm:$0xff]
    %v865 = vld [vmem:[#allocation8 + $0x1e0] sm:$0xff]
    %v866 = vld [vmem:[#allocation8 + $0x1e8] sm:$0xff]
    %v867 = vld [vmem:[#allocation8 + $0x1f0] sm:$0xff]
    %v868 = vld [vmem:[#allocation8 + $0x1f8] sm:$0xff]
    %869 = vmatprep.subr.mxu0 %v866
    %870 = vmatpush1.msra.mxu0 %v865
    %871 = vmatprep.subr.mxu0 %v862
    %872 = vmatpush1.msra.mxu0 %v861
    %873 = vmatprep.subr.mxu0 %v858
    %874 = vmatpush1.msra.mxu0 %v857
    %875 = vmatprep.subr.mxu0 %v854
    %876 = vmatpush1.msra.mxu0 %v853
    %877 = vmatprep.subr.mxu0 %v850
    %878 = vmatpush1.msra.mxu0 %v849
    %879 = vmatprep.subr.mxu0 %v846
    %880 = vmatpush1.msra.mxu0 %v845
    %881 = vmatprep.subr.mxu0 %v842
    %882 = vmatpush1.msra.mxu0 %v841
    %883 = vmatprep.subr.mxu0 %v838
    %884 = vmatpush1.msra.mxu0 %v837
    %885 = vmatprep.subr.mxu0 %v834
    %886 = vmatpush1.msra.mxu0 %v833
    %887 = vmatprep.subr.mxu0 %v830
    %888 = vmatpush1.msra.mxu0 %v829
    %889 = vmatprep.subr.mxu0 %v826
    %890 = vmatpush1.msra.mxu0 %v825
    %891 = vmatprep.subr.mxu0 %v822
    %892 = vmatpush1.msra.mxu0 %v821
    %893 = vmatprep.subr.mxu0 %v818
    %894 = vmatpush1.msra.mxu0 %v817
    %895 = vmatprep.subr.mxu0 %v814
    %896 = vmatpush1.msra.mxu0 %v813
    %897 = vmatprep.subr.mxu0 %v810
    %898 = vmatpush1.msra.mxu0 %v809
    %899 = vmatprep.subr.mxu0 %v806
    %900 = vmatpush1.msra.mxu0 %v805
    %901 = vmatprep.subr.mxu0 0.0
    %902 = vmatpush2.msra.mxu0 0.0
    %903 = vmatprep.subr.mxu0 0.0
    %904 = vmatpush2.msra.mxu0 0.0
    %905 = vmatprep.subr.mxu0 0.0
    %906 = vmatpush2.msra.mxu0 0.0
    %907 = vmatprep.subr.mxu0 0.0
    %908 = vmatpush2.msra.mxu0 0.0
    %909 = vmatprep.subr.mxu0 0.0
    %910 = vmatpush2.msra.mxu0 0.0
    %911 = vmatprep.subr.mxu0 0.0
    %912 = vmatpush2.msra.mxu0 0.0
    %913 = vmatprep.subr.mxu0 0.0
    %914 = vmatpush2.msra.mxu0 0.0
    %915 = vmatprep.subr.mxu0 0.0
    %916 = vmatpush2.msra.mxu0 0.0
    %917 = vmatprep.subr.mxu0 0.0
    %918 = vmatpush2.msra.mxu0 0.0
    %919 = vmatprep.subr.mxu0 0.0
    %920 = vmatpush2.msra.mxu0 0.0
    %921 = vmatprep.subr.mxu0 0.0
    %922 = vmatpush2.msra.mxu0 0.0
    %923 = vmatprep.subr.mxu0 0.0
    %924 = vmatpush2.msra.mxu0 0.0
    %925 = vmatprep.subr.mxu0 0.0
    %926 = vmatpush2.msra.mxu0 0.0
    %927 = vmatprep.subr.mxu0 0.0
    %928 = vmatpush2.msra.mxu0 0.0
    %929 = vmatprep.subr.mxu0 0.0
    %930 = vmatpush2.msra.mxu0 0.0
    %931 = vmatprep.subr.mxu0 0.0
    %932 = vmatpush2.msra.mxu0 0.0
    %933 = vmatprep.mubr.f32.mxu0 0.0
    %934 = vmatmul.mubr.f32.gmra.mxu0 %v798
    %v935 = vpop.f32.mrf.mxu0
    %v936 = vadd.f32 0.0, %v935
    %v937 = vpop.f32.mrf.mxu0
    %v938 = vadd.f32 0.0, %v937
    %939 = vdwg.mxu0
    %940 = vmatprep.subr.mxu0 %v868
    %941 = vmatpush1.msra.mxu0 %v867
    %942 = vmatprep.subr.mxu0 %v864
    %943 = vmatpush1.msra.mxu0 %v863
    %944 = vmatprep.subr.mxu0 %v860
    %945 = vmatpush1.msra.mxu0 %v859
    %946 = vmatprep.subr.mxu0 %v856
    %947 = vmatpush1.msra.mxu0 %v855
    %948 = vmatprep.subr.mxu0 %v852
    %949 = vmatpush1.msra.mxu0 %v851
    %950 = vmatprep.subr.mxu0 %v848
    %951 = vmatpush1.msra.mxu0 %v847
    %952 = vmatprep.subr.mxu0 %v844
    %953 = vmatpush1.msra.mxu0 %v843
    %954 = vmatprep.subr.mxu0 %v840
    %955 = vmatpush1.msra.mxu0 %v839
    %956 = vmatprep.subr.mxu0 %v836
    %957 = vmatpush1.msra.mxu0 %v835
    %958 = vmatprep.subr.mxu0 %v832
    %959 = vmatpush1.msra.mxu0 %v831
    %960 = vmatprep.subr.mxu0 %v828
    %961 = vmatpush1.msra.mxu0 %v827
    %962 = vmatprep.subr.mxu0 %v824
    %963 = vmatpush1.msra.mxu0 %v823
    %964 = vmatprep.subr.mxu0 %v820
    %965 = vmatpush1.msra.mxu0 %v819
    %966 = vmatprep.subr.mxu0 %v816
    %967 = vmatpush1.msra.mxu0 %v815
    %968 = vmatprep.subr.mxu0 %v812
    %969 = vmatpush1.msra.mxu0 %v811
    %970 = vmatprep.subr.mxu0 %v808
    %971 = vmatpush1.msra.mxu0 %v807
    %972 = vmatprep.subr.mxu0 0.0
    %973 = vmatpush2.msra.mxu0 0.0
    %974 = vmatprep.subr.mxu0 0.0
    %975 = vmatpush2.msra.mxu0 0.0
    %976 = vmatprep.subr.mxu0 0.0
    %977 = vmatpush2.msra.mxu0 0.0
    %978 = vmatprep.subr.mxu0 0.0
    %979 = vmatpush2.msra.mxu0 0.0
    %980 = vmatprep.subr.mxu0 0.0
    %981 = vmatpush2.msra.mxu0 0.0
    %982 = vmatprep.subr.mxu0 0.0
    %983 = vmatpush2.msra.mxu0 0.0
    %984 = vmatprep.subr.mxu0 0.0
    %985 = vmatpush2.msra.mxu0 0.0
    %986 = vmatprep.subr.mxu0 0.0
    %987 = vmatpush2.msra.mxu0 0.0
    %988 = vmatprep.subr.mxu0 0.0
    %989 = vmatpush2.msra.mxu0 0.0
    %990 = vmatprep.subr.mxu0 0.0
    %991 = vmatpush2.msra.mxu0 0.0
    %992 = vmatprep.subr.mxu0 0.0
    %993 = vmatpush2.msra.mxu0 0.0
    %994 = vmatprep.subr.mxu0 0.0
    %995 = vmatpush2.msra.mxu0 0.0
    %996 = vmatprep.subr.mxu0 0.0
    %997 = vmatpush2.msra.mxu0 0.0
    %998 = vmatprep.subr.mxu0 0.0
    %999 = vmatpush2.msra.mxu0 0.0
    %1000 = vmatprep.subr.mxu0 0.0
    %1001 = vmatpush2.msra.mxu0 0.0
    %1002 = vmatprep.subr.mxu0 0.0
    %1003 = vmatpush2.msra.mxu0 0.0
    %1004 = vmatprep.mubr.f32.mxu0 0.0
    %1005 = vmatmul.mubr.f32.gmra.mxu0 %v798
    %v1006 = vpop.f32.mrf.mxu0
    %v1007 = vadd.f32 0.0, %v1006
    %v1008 = vpop.f32.mrf.mxu0
    %v1009 = vadd.f32 0.0, %v1008
    %1010 = vdwg.mxu0
    %v1011 = vadd.f32 %v801, %v936
    %v1012 = vadd.f32 %v802, %v938
    %v1013 = vadd.f32 %v803, %v1007
    %v1014 = vadd.f32 %v804, %v1009
    %v1015 = vxor.u32 %v1011, 2147483648
    %v1016 = vmul.f32 %v1015, 1.442695
    %v1017 = vpow.pop %v1016
    %v1018 = vadd.f32 %v1017, 1.0
    %v1019 = vrcp.pop %v1018
    %v1020 = vmul.f32 1.0, %v1019
    %v1021 = vxor.u32 %v1012, 2147483648
    %v1022 = vmul.f32 %v1021, 1.442695
    %v1023 = vpow.pop %v1022
    %v1024 = vadd.f32 %v1023, 1.0
    %v1025 = vrcp.pop %v1024
    %v1026 = vmul.f32 1.0, %v1025
    %v1027 = vtanh.pop %v1013
    %v1028 = vxor.u32 %v1014, 2147483648
    %v1029 = vmul.f32 %v1028, 1.442695
    %v1030 = vpow.pop %v1029
    %v1031 = vadd.f32 %v1030, 1.0
    %v1032 = vrcp.pop %v1031
    %v1033 = vmul.f32 1.0, %v1032
    %v1034 = vmul.f32 %v1026, %v799
    %v1035 = vmul.f32 %v1020, %v1027
    %v1036 = vadd.f32 %v1034, %v1035
    %v1037 = vtanh.pop %v1036
    %v1038 = vmul.f32 %v1033, %v1037
    %1039 = vst [vmem:[#allocation3] sm:$0xff] %v1036
    %1040 = vst [vmem:[#allocation2] sm:$0xff] %v1038
    %s1041 = scalar_lea.vmem [#allocation4], 24
    %1042 = vst [vmem:[%s1041] sm:$0xff] %v1038
    %v1043 = vld [vmem:[#allocation2] sm:$0xff]
    %v1044 = vld [vmem:[#allocation3] sm:$0xff]
    %s1045 = scalar_lea.vmem [#allocation5], 128
    %v1046 = vld [vmem:[%s1045] sm:$0xff]
    %v1047 = vld [vmem:[%s1045 + $0x8] sm:$0xff]
    %v1048 = vld [vmem:[%s1045 + $0x10] sm:$0xff]
    %v1049 = vld [vmem:[%s1045 + $0x18] sm:$0xff]
    %v1050 = vld [vmem:[#allocation8] sm:$0xff]
    %v1051 = vld [vmem:[#allocation8 + $0x8] sm:$0xff]
    %v1052 = vld [vmem:[#allocation8 + $0x10] sm:$0xff]
    %v1053 = vld [vmem:[#allocation8 + $0x18] sm:$0xff]
    %v1054 = vld [vmem:[#allocation8 + $0x20] sm:$0xff]
    %v1055 = vld [vmem:[#allocation8 + $0x28] sm:$0xff]
    %v1056 = vld [vmem:[#allocation8 + $0x30] sm:$0xff]
    %v1057 = vld [vmem:[#allocation8 + $0x38] sm:$0xff]
    %v1058 = vld [vmem:[#allocation8 + $0x40] sm:$0xff]
    %v1059 = vld [vmem:[#allocation8 + $0x48] sm:$0xff]
    %v1060 = vld [vmem:[#allocation8 + $0x50] sm:$0xff]
    %v1061 = vld [vmem:[#allocation8 + $0x58] sm:$0xff]
    %v1062 = vld [vmem:[#allocation8 + $0x60] sm:$0xff]
    %v1063 = vld [vmem:[#allocation8 + $0x68] sm:$0xff]
    %v1064 = vld [vmem:[#allocation8 + $0x70] sm:$0xff]
    %v1065 = vld [vmem:[#allocation8 + $0x78] sm:$0xff]
    %v1066 = vld [vmem:[#allocation8 + $0x80] sm:$0xff]
    %v1067 = vld [vmem:[#allocation8 + $0x88] sm:$0xff]
    %v1068 = vld [vmem:[#allocation8 + $0x90] sm:$0xff]
    %v1069 = vld [vmem:[#allocation8 + $0x98] sm:$0xff]
    %v1070 = vld [vmem:[#allocation8 + $0xa0] sm:$0xff]
    %v1071 = vld [vmem:[#allocation8 + $0xa8] sm:$0xff]
    %v1072 = vld [vmem:[#allocation8 + $0xb0] sm:$0xff]
    %v1073 = vld [vmem:[#allocation8 + $0xb8] sm:$0xff]
    %v1074 = vld [vmem:[#allocation8 + $0xc0] sm:$0xff]
    %v1075 = vld [vmem:[#allocation8 + $0xc8] sm:$0xff]
    %v1076 = vld [vmem:[#allocation8 + $0xd0] sm:$0xff]
    %v1077 = vld [vmem:[#allocation8 + $0xd8] sm:$0xff]
    %v1078 = vld [vmem:[#allocation8 + $0xe0] sm:$0xff]
    %v1079 = vld [vmem:[#allocation8 + $0xe8] sm:$0xff]
    %v1080 = vld [vmem:[#allocation8 + $0xf0] sm:$0xff]
    %v1081 = vld [vmem:[#allocation8 + $0xf8] sm:$0xff]
    %v1082 = vld [vmem:[#allocation8 + $0x100] sm:$0xff]
    %v1083 = vld [vmem:[#allocation8 + $0x108] sm:$0xff]
    %v1084 = vld [vmem:[#allocation8 + $0x110] sm:$0xff]
    %v1085 = vld [vmem:[#allocation8 + $0x118] sm:$0xff]
    %v1086 = vld [vmem:[#allocation8 + $0x120] sm:$0xff]
    %v1087 = vld [vmem:[#allocation8 + $0x128] sm:$0xff]
    %v1088 = vld [vmem:[#allocation8 + $0x130] sm:$0xff]
    %v1089 = vld [vmem:[#allocation8 + $0x138] sm:$0xff]
    %v1090 = vld [vmem:[#allocation8 + $0x140] sm:$0xff]
    %v1091 = vld [vmem:[#allocation8 + $0x148] sm:$0xff]
    %v1092 = vld [vmem:[#allocation8 + $0x150] sm:$0xff]
    %v1093 = vld [vmem:[#allocation8 + $0x158] sm:$0xff]
    %v1094 = vld [vmem:[#allocation8 + $0x160] sm:$0xff]
    %v1095 = vld [vmem:[#allocation8 + $0x168] sm:$0xff]
    %v1096 = vld [vmem:[#allocation8 + $0x170] sm:$0xff]
    %v1097 = vld [vmem:[#allocation8 + $0x178] sm:$0xff]
    %v1098 = vld [vmem:[#allocation8 + $0x180] sm:$0xff]
    %v1099 = vld [vmem:[#allocation8 + $0x188] sm:$0xff]
    %v1100 = vld [vmem:[#allocation8 + $0x190] sm:$0xff]
    %v1101 = vld [vmem:[#allocation8 + $0x198] sm:$0xff]
    %v1102 = vld [vmem:[#allocation8 + $0x1a0] sm:$0xff]
    %v1103 = vld [vmem:[#allocation8 + $0x1a8] sm:$0xff]
    %v1104 = vld [vmem:[#allocation8 + $0x1b0] sm:$0xff]
    %v1105 = vld [vmem:[#allocation8 + $0x1b8] sm:$0xff]
    %v1106 = vld [vmem:[#allocation8 + $0x1c0] sm:$0xff]
    %v1107 = vld [vmem:[#allocation8 + $0x1c8] sm:$0xff]
    %v1108 = vld [vmem:[#allocation8 + $0x1d0] sm:$0xff]
    %v1109 = vld [vmem:[#allocation8 + $0x1d8] sm:$0xff]
    %v1110 = vld [vmem:[#allocation8 + $0x1e0] sm:$0xff]
    %v1111 = vld [vmem:[#allocation8 + $0x1e8] sm:$0xff]
    %v1112 = vld [vmem:[#allocation8 + $0x1f0] sm:$0xff]
    %v1113 = vld [vmem:[#allocation8 + $0x1f8] sm:$0xff]
    %1114 = vmatprep.subr.mxu0 %v1111
    %1115 = vmatpush1.msra.mxu0 %v1110
    %1116 = vmatprep.subr.mxu0 %v1107
    %1117 = vmatpush1.msra.mxu0 %v1106
    %1118 = vmatprep.subr.mxu0 %v1103
    %1119 = vmatpush1.msra.mxu0 %v1102
    %1120 = vmatprep.subr.mxu0 %v1099
    %1121 = vmatpush1.msra.mxu0 %v1098
    %1122 = vmatprep.subr.mxu0 %v1095
    %1123 = vmatpush1.msra.mxu0 %v1094
    %1124 = vmatprep.subr.mxu0 %v1091
    %1125 = vmatpush1.msra.mxu0 %v1090
    %1126 = vmatprep.subr.mxu0 %v1087
    %1127 = vmatpush1.msra.mxu0 %v1086
    %1128 = vmatprep.subr.mxu0 %v1083
    %1129 = vmatpush1.msra.mxu0 %v1082
    %1130 = vmatprep.subr.mxu0 %v1079
    %1131 = vmatpush1.msra.mxu0 %v1078
    %1132 = vmatprep.subr.mxu0 %v1075
    %1133 = vmatpush1.msra.mxu0 %v1074
    %1134 = vmatprep.subr.mxu0 %v1071
    %1135 = vmatpush1.msra.mxu0 %v1070
    %1136 = vmatprep.subr.mxu0 %v1067
    %1137 = vmatpush1.msra.mxu0 %v1066
    %1138 = vmatprep.subr.mxu0 %v1063
    %1139 = vmatpush1.msra.mxu0 %v1062
    %1140 = vmatprep.subr.mxu0 %v1059
    %1141 = vmatpush1.msra.mxu0 %v1058
    %1142 = vmatprep.subr.mxu0 %v1055
    %1143 = vmatpush1.msra.mxu0 %v1054
    %1144 = vmatprep.subr.mxu0 %v1051
    %1145 = vmatpush1.msra.mxu0 %v1050
    %1146 = vmatprep.subr.mxu0 0.0
    %1147 = vmatpush2.msra.mxu0 0.0
    %1148 = vmatprep.subr.mxu0 0.0
    %1149 = vmatpush2.msra.mxu0 0.0
    %1150 = vmatprep.subr.mxu0 0.0
    %1151 = vmatpush2.msra.mxu0 0.0
    %1152 = vmatprep.subr.mxu0 0.0
    %1153 = vmatpush2.msra.mxu0 0.0
    %1154 = vmatprep.subr.mxu0 0.0
    %1155 = vmatpush2.msra.mxu0 0.0
    %1156 = vmatprep.subr.mxu0 0.0
    %1157 = vmatpush2.msra.mxu0 0.0
    %1158 = vmatprep.subr.mxu0 0.0
    %1159 = vmatpush2.msra.mxu0 0.0
    %1160 = vmatprep.subr.mxu0 0.0
    %1161 = vmatpush2.msra.mxu0 0.0
    %1162 = vmatprep.subr.mxu0 0.0
    %1163 = vmatpush2.msra.mxu0 0.0
    %1164 = vmatprep.subr.mxu0 0.0
    %1165 = vmatpush2.msra.mxu0 0.0
    %1166 = vmatprep.subr.mxu0 0.0
    %1167 = vmatpush2.msra.mxu0 0.0
    %1168 = vmatprep.subr.mxu0 0.0
    %1169 = vmatpush2.msra.mxu0 0.0
    %1170 = vmatprep.subr.mxu0 0.0
    %1171 = vmatpush2.msra.mxu0 0.0
    %1172 = vmatprep.subr.mxu0 0.0
    %1173 = vmatpush2.msra.mxu0 0.0
    %1174 = vmatprep.subr.mxu0 0.0
    %1175 = vmatpush2.msra.mxu0 0.0
    %1176 = vmatprep.subr.mxu0 0.0
    %1177 = vmatpush2.msra.mxu0 0.0
    %1178 = vmatprep.mubr.f32.mxu0 0.0
    %1179 = vmatmul.mubr.f32.gmra.mxu0 %v1043
    %v1180 = vpop.f32.mrf.mxu0
    %v1181 = vadd.f32 0.0, %v1180
    %v1182 = vpop.f32.mrf.mxu0
    %v1183 = vadd.f32 0.0, %v1182
    %1184 = vdwg.mxu0
    %1185 = vmatprep.subr.mxu0 %v1113
    %1186 = vmatpush1.msra.mxu0 %v1112
    %1187 = vmatprep.subr.mxu0 %v1109
    %1188 = vmatpush1.msra.mxu0 %v1108
    %1189 = vmatprep.subr.mxu0 %v1105
    %1190 = vmatpush1.msra.mxu0 %v1104
    %1191 = vmatprep.subr.mxu0 %v1101
    %1192 = vmatpush1.msra.mxu0 %v1100
    %1193 = vmatprep.subr.mxu0 %v1097
    %1194 = vmatpush1.msra.mxu0 %v1096
    %1195 = vmatprep.subr.mxu0 %v1093
    %1196 = vmatpush1.msra.mxu0 %v1092
    %1197 = vmatprep.subr.mxu0 %v1089
    %1198 = vmatpush1.msra.mxu0 %v1088
    %1199 = vmatprep.subr.mxu0 %v1085
    %1200 = vmatpush1.msra.mxu0 %v1084
    %1201 = vmatprep.subr.mxu0 %v1081
    %1202 = vmatpush1.msra.mxu0 %v1080
    %1203 = vmatprep.subr.mxu0 %v1077
    %1204 = vmatpush1.msra.mxu0 %v1076
    %1205 = vmatprep.subr.mxu0 %v1073
    %1206 = vmatpush1.msra.mxu0 %v1072
    %1207 = vmatprep.subr.mxu0 %v1069
    %1208 = vmatpush1.msra.mxu0 %v1068
    %1209 = vmatprep.subr.mxu0 %v1065
    %1210 = vmatpush1.msra.mxu0 %v1064
    %1211 = vmatprep.subr.mxu0 %v1061
    %1212 = vmatpush1.msra.mxu0 %v1060
    %1213 = vmatprep.subr.mxu0 %v1057
    %1214 = vmatpush1.msra.mxu0 %v1056
    %1215 = vmatprep.subr.mxu0 %v1053
    %1216 = vmatpush1.msra.mxu0 %v1052
    %1217 = vmatprep.subr.mxu0 0.0
    %1218 = vmatpush2.msra.mxu0 0.0
    %1219 = vmatprep.subr.mxu0 0.0
    %1220 = vmatpush2.msra.mxu0 0.0
    %1221 = vmatprep.subr.mxu0 0.0
    %1222 = vmatpush2.msra.mxu0 0.0
    %1223 = vmatprep.subr.mxu0 0.0
    %1224 = vmatpush2.msra.mxu0 0.0
    %1225 = vmatprep.subr.mxu0 0.0
    %1226 = vmatpush2.msra.mxu0 0.0
    %1227 = vmatprep.subr.mxu0 0.0
    %1228 = vmatpush2.msra.mxu0 0.0
    %1229 = vmatprep.subr.mxu0 0.0
    %1230 = vmatpush2.msra.mxu0 0.0
    %1231 = vmatprep.subr.mxu0 0.0
    %1232 = vmatpush2.msra.mxu0 0.0
    %1233 = vmatprep.subr.mxu0 0.0
    %1234 = vmatpush2.msra.mxu0 0.0
    %1235 = vmatprep.subr.mxu0 0.0
    %1236 = vmatpush2.msra.mxu0 0.0
    %1237 = vmatprep.subr.mxu0 0.0
    %1238 = vmatpush2.msra.mxu0 0.0
    %1239 = vmatprep.subr.mxu0 0.0
    %1240 = vmatpush2.msra.mxu0 0.0
    %1241 = vmatprep.subr.mxu0 0.0
    %1242 = vmatpush2.msra.mxu0 0.0
    %1243 = vmatprep.subr.mxu0 0.0
    %1244 = vmatpush2.msra.mxu0 0.0
    %1245 = vmatprep.subr.mxu0 0.0
    %1246 = vmatpush2.msra.mxu0 0.0
    %1247 = vmatprep.subr.mxu0 0.0
    %1248 = vmatpush2.msra.mxu0 0.0
    %1249 = vmatprep.mubr.f32.mxu0 0.0
    %1250 = vmatmul.mubr.f32.gmra.mxu0 %v1043
    %v1251 = vpop.f32.mrf.mxu0
    %v1252 = vadd.f32 0.0, %v1251
    %v1253 = vpop.f32.mrf.mxu0
    %v1254 = vadd.f32 0.0, %v1253
    %1255 = vdwg.mxu0
    %v1256 = vadd.f32 %v1046, %v1181
    %v1257 = vadd.f32 %v1047, %v1183
    %v1258 = vadd.f32 %v1048, %v1252
    %v1259 = vadd.f32 %v1049, %v1254
    %v1260 = vxor.u32 %v1256, 2147483648
    %v1261 = vmul.f32 %v1260, 1.442695
    %v1262 = vpow.pop %v1261
    %v1263 = vadd.f32 %v1262, 1.0
    %v1264 = vrcp.pop %v1263
    %v1265 = vmul.f32 1.0, %v1264
    %v1266 = vxor.u32 %v1257, 2147483648
    %v1267 = vmul.f32 %v1266, 1.442695
    %v1268 = vpow.pop %v1267
    %v1269 = vadd.f32 %v1268, 1.0
    %v1270 = vrcp.pop %v1269
    %v1271 = vmul.f32 1.0, %v1270
    %v1272 = vtanh.pop %v1258
    %v1273 = vxor.u32 %v1259, 2147483648
    %v1274 = vmul.f32 %v1273, 1.442695
    %v1275 = vpow.pop %v1274
    %v1276 = vadd.f32 %v1275, 1.0
    %v1277 = vrcp.pop %v1276
    %v1278 = vmul.f32 1.0, %v1277
    %v1279 = vmul.f32 %v1271, %v1044
    %v1280 = vmul.f32 %v1265, %v1272
    %v1281 = vadd.f32 %v1279, %v1280
    %v1282 = vtanh.pop %v1281
    %v1283 = vmul.f32 %v1278, %v1282
    %1284 = vst [vmem:[#allocation3] sm:$0xff] %v1281
    %1285 = vst [vmem:[#allocation2] sm:$0xff] %v1283
    %s1286 = scalar_lea.vmem [#allocation4], 32
    %1287 = vst [vmem:[%s1286] sm:$0xff] %v1283
    %v1288 = vld [vmem:[#allocation2] sm:$0xff]
    %v1289 = vld [vmem:[#allocation3] sm:$0xff]
    %s1290 = scalar_lea.vmem [#allocation5], 160
    %v1291 = vld [vmem:[%s1290] sm:$0xff]
    %v1292 = vld [vmem:[%s1290 + $0x8] sm:$0xff]
    %v1293 = vld [vmem:[%s1290 + $0x10] sm:$0xff]
    %v1294 = vld [vmem:[%s1290 + $0x18] sm:$0xff]
    %v1295 = vld [vmem:[#allocation8] sm:$0xff]
    %v1296 = vld [vmem:[#allocation8 + $0x8] sm:$0xff]
    %v1297 = vld [vmem:[#allocation8 + $0x10] sm:$0xff]
    %v1298 = vld [vmem:[#allocation8 + $0x18] sm:$0xff]
    %v1299 = vld [vmem:[#allocation8 + $0x20] sm:$0xff]
    %v1300 = vld [vmem:[#allocation8 + $0x28] sm:$0xff]
    %v1301 = vld [vmem:[#allocation8 + $0x30] sm:$0xff]
    %v1302 = vld [vmem:[#allocation8 + $0x38] sm:$0xff]
    %v1303 = vld [vmem:[#allocation8 + $0x40] sm:$0xff]
    %v1304 = vld [vmem:[#allocation8 + $0x48] sm:$0xff]
    %v1305 = vld [vmem:[#allocation8 + $0x50] sm:$0xff]
    %v1306 = vld [vmem:[#allocation8 + $0x58] sm:$0xff]
    %v1307 = vld [vmem:[#allocation8 + $0x60] sm:$0xff]
    %v1308 = vld [vmem:[#allocation8 + $0x68] sm:$0xff]
    %v1309 = vld [vmem:[#allocation8 + $0x70] sm:$0xff]
    %v1310 = vld [vmem:[#allocation8 + $0x78] sm:$0xff]
    %v1311 = vld [vmem:[#allocation8 + $0x80] sm:$0xff]
    %v1312 = vld [vmem:[#allocation8 + $0x88] sm:$0xff]
    %v1313 = vld [vmem:[#allocation8 + $0x90] sm:$0xff]
    %v1314 = vld [vmem:[#allocation8 + $0x98] sm:$0xff]
    %v1315 = vld [vmem:[#allocation8 + $0xa0] sm:$0xff]
    %v1316 = vld [vmem:[#allocation8 + $0xa8] sm:$0xff]
    %v1317 = vld [vmem:[#allocation8 + $0xb0] sm:$0xff]
    %v1318 = vld [vmem:[#allocation8 + $0xb8] sm:$0xff]
    %v1319 = vld [vmem:[#allocation8 + $0xc0] sm:$0xff]
    %v1320 = vld [vmem:[#allocation8 + $0xc8] sm:$0xff]
    %v1321 = vld [vmem:[#allocation8 + $0xd0] sm:$0xff]
    %v1322 = vld [vmem:[#allocation8 + $0xd8] sm:$0xff]
    %v1323 = vld [vmem:[#allocation8 + $0xe0] sm:$0xff]
    %v1324 = vld [vmem:[#allocation8 + $0xe8] sm:$0xff]
    %v1325 = vld [vmem:[#allocation8 + $0xf0] sm:$0xff]
    %v1326 = vld [vmem:[#allocation8 + $0xf8] sm:$0xff]
    %v1327 = vld [vmem:[#allocation8 + $0x100] sm:$0xff]
    %v1328 = vld [vmem:[#allocation8 + $0x108] sm:$0xff]
    %v1329 = vld [vmem:[#allocation8 + $0x110] sm:$0xff]
    %v1330 = vld [vmem:[#allocation8 + $0x118] sm:$0xff]
    %v1331 = vld [vmem:[#allocation8 + $0x120] sm:$0xff]
    %v1332 = vld [vmem:[#allocation8 + $0x128] sm:$0xff]
    %v1333 = vld [vmem:[#allocation8 + $0x130] sm:$0xff]
    %v1334 = vld [vmem:[#allocation8 + $0x138] sm:$0xff]
    %v1335 = vld [vmem:[#allocation8 + $0x140] sm:$0xff]
    %v1336 = vld [vmem:[#allocation8 + $0x148] sm:$0xff]
    %v1337 = vld [vmem:[#allocation8 + $0x150] sm:$0xff]
    %v1338 = vld [vmem:[#allocation8 + $0x158] sm:$0xff]
    %v1339 = vld [vmem:[#allocation8 + $0x160] sm:$0xff]
    %v1340 = vld [vmem:[#allocation8 + $0x168] sm:$0xff]
    %v1341 = vld [vmem:[#allocation8 + $0x170] sm:$0xff]
    %v1342 = vld [vmem:[#allocation8 + $0x178] sm:$0xff]
    %v1343 = vld [vmem:[#allocation8 + $0x180] sm:$0xff]
    %v1344 = vld [vmem:[#allocation8 + $0x188] sm:$0xff]
    %v1345 = vld [vmem:[#allocation8 + $0x190] sm:$0xff]
    %v1346 = vld [vmem:[#allocation8 + $0x198] sm:$0xff]
    %v1347 = vld [vmem:[#allocation8 + $0x1a0] sm:$0xff]
    %v1348 = vld [vmem:[#allocation8 + $0x1a8] sm:$0xff]
    %v1349 = vld [vmem:[#allocation8 + $0x1b0] sm:$0xff]
    %v1350 = vld [vmem:[#allocation8 + $0x1b8] sm:$0xff]
    %v1351 = vld [vmem:[#allocation8 + $0x1c0] sm:$0xff]
    %v1352 = vld [vmem:[#allocation8 + $0x1c8] sm:$0xff]
    %v1353 = vld [vmem:[#allocation8 + $0x1d0] sm:$0xff]
    %v1354 = vld [vmem:[#allocation8 + $0x1d8] sm:$0xff]
    %v1355 = vld [vmem:[#allocation8 + $0x1e0] sm:$0xff]
    %v1356 = vld [vmem:[#allocation8 + $0x1e8] sm:$0xff]
    %v1357 = vld [vmem:[#allocation8 + $0x1f0] sm:$0xff]
    %v1358 = vld [vmem:[#allocation8 + $0x1f8] sm:$0xff]
    %1359 = vmatprep.subr.mxu0 %v1356
    %1360 = vmatpush1.msra.mxu0 %v1355
    %1361 = vmatprep.subr.mxu0 %v1352
    %1362 = vmatpush1.msra.mxu0 %v1351
    %1363 = vmatprep.subr.mxu0 %v1348
    %1364 = vmatpush1.msra.mxu0 %v1347
    %1365 = vmatprep.subr.mxu0 %v1344
    %1366 = vmatpush1.msra.mxu0 %v1343
    %1367 = vmatprep.subr.mxu0 %v1340
    %1368 = vmatpush1.msra.mxu0 %v1339
    %1369 = vmatprep.subr.mxu0 %v1336
    %1370 = vmatpush1.msra.mxu0 %v1335
    %1371 = vmatprep.subr.mxu0 %v1332
    %1372 = vmatpush1.msra.mxu0 %v1331
    %1373 = vmatprep.subr.mxu0 %v1328
    %1374 = vmatpush1.msra.mxu0 %v1327
    %1375 = vmatprep.subr.mxu0 %v1324
    %1376 = vmatpush1.msra.mxu0 %v1323
    %1377 = vmatprep.subr.mxu0 %v1320
    %1378 = vmatpush1.msra.mxu0 %v1319
    %1379 = vmatprep.subr.mxu0 %v1316
    %1380 = vmatpush1.msra.mxu0 %v1315
    %1381 = vmatprep.subr.mxu0 %v1312
    %1382 = vmatpush1.msra.mxu0 %v1311
    %1383 = vmatprep.subr.mxu0 %v1308
    %1384 = vmatpush1.msra.mxu0 %v1307
    %1385 = vmatprep.subr.mxu0 %v1304
    %1386 = vmatpush1.msra.mxu0 %v1303
    %1387 = vmatprep.subr.mxu0 %v1300
    %1388 = vmatpush1.msra.mxu0 %v1299
    %1389 = vmatprep.subr.mxu0 %v1296
    %1390 = vmatpush1.msra.mxu0 %v1295
    %1391 = vmatprep.subr.mxu0 0.0
    %1392 = vmatpush2.msra.mxu0 0.0
    %1393 = vmatprep.subr.mxu0 0.0
    %1394 = vmatpush2.msra.mxu0 0.0
    %1395 = vmatprep.subr.mxu0 0.0
    %1396 = vmatpush2.msra.mxu0 0.0
    %1397 = vmatprep.subr.mxu0 0.0
    %1398 = vmatpush2.msra.mxu0 0.0
    %1399 = vmatprep.subr.mxu0 0.0
    %1400 = vmatpush2.msra.mxu0 0.0
    %1401 = vmatprep.subr.mxu0 0.0
    %1402 = vmatpush2.msra.mxu0 0.0
    %1403 = vmatprep.subr.mxu0 0.0
    %1404 = vmatpush2.msra.mxu0 0.0
    %1405 = vmatprep.subr.mxu0 0.0
    %1406 = vmatpush2.msra.mxu0 0.0
    %1407 = vmatprep.subr.mxu0 0.0
    %1408 = vmatpush2.msra.mxu0 0.0
    %1409 = vmatprep.subr.mxu0 0.0
    %1410 = vmatpush2.msra.mxu0 0.0
    %1411 = vmatprep.subr.mxu0 0.0
    %1412 = vmatpush2.msra.mxu0 0.0
    %1413 = vmatprep.subr.mxu0 0.0
    %1414 = vmatpush2.msra.mxu0 0.0
    %1415 = vmatprep.subr.mxu0 0.0
    %1416 = vmatpush2.msra.mxu0 0.0
    %1417 = vmatprep.subr.mxu0 0.0
    %1418 = vmatpush2.msra.mxu0 0.0
    %1419 = vmatprep.subr.mxu0 0.0
    %1420 = vmatpush2.msra.mxu0 0.0
    %1421 = vmatprep.subr.mxu0 0.0
    %1422 = vmatpush2.msra.mxu0 0.0
    %1423 = vmatprep.mubr.f32.mxu0 0.0
    %1424 = vmatmul.mubr.f32.gmra.mxu0 %v1288
    %v1425 = vpop.f32.mrf.mxu0
    %v1426 = vadd.f32 0.0, %v1425
    %v1427 = vpop.f32.mrf.mxu0
    %v1428 = vadd.f32 0.0, %v1427
    %1429 = vdwg.mxu0
    %1430 = vmatprep.subr.mxu0 %v1358
    %1431 = vmatpush1.msra.mxu0 %v1357
    %1432 = vmatprep.subr.mxu0 %v1354
    %1433 = vmatpush1.msra.mxu0 %v1353
    %1434 = vmatprep.subr.mxu0 %v1350
    %1435 = vmatpush1.msra.mxu0 %v1349
    %1436 = vmatprep.subr.mxu0 %v1346
    %1437 = vmatpush1.msra.mxu0 %v1345
    %1438 = vmatprep.subr.mxu0 %v1342
    %1439 = vmatpush1.msra.mxu0 %v1341
    %1440 = vmatprep.subr.mxu0 %v1338
    %1441 = vmatpush1.msra.mxu0 %v1337
    %1442 = vmatprep.subr.mxu0 %v1334
    %1443 = vmatpush1.msra.mxu0 %v1333
    %1444 = vmatprep.subr.mxu0 %v1330
    %1445 = vmatpush1.msra.mxu0 %v1329
    %1446 = vmatprep.subr.mxu0 %v1326
    %1447 = vmatpush1.msra.mxu0 %v1325
    %1448 = vmatprep.subr.mxu0 %v1322
    %1449 = vmatpush1.msra.mxu0 %v1321
    %1450 = vmatprep.subr.mxu0 %v1318
    %1451 = vmatpush1.msra.mxu0 %v1317
    %1452 = vmatprep.subr.mxu0 %v1314
    %1453 = vmatpush1.msra.mxu0 %v1313
    %1454 = vmatprep.subr.mxu0 %v1310
    %1455 = vmatpush1.msra.mxu0 %v1309
    %1456 = vmatprep.subr.mxu0 %v1306
    %1457 = vmatpush1.msra.mxu0 %v1305
    %1458 = vmatprep.subr.mxu0 %v1302
    %1459 = vmatpush1.msra.mxu0 %v1301
    %1460 = vmatprep.subr.mxu0 %v1298
    %1461 = vmatpush1.msra.mxu0 %v1297
    %1462 = vmatprep.subr.mxu0 0.0
    %1463 = vmatpush2.msra.mxu0 0.0
    %1464 = vmatprep.subr.mxu0 0.0
    %1465 = vmatpush2.msra.mxu0 0.0
    %1466 = vmatprep.subr.mxu0 0.0
    %1467 = vmatpush2.msra.mxu0 0.0
    %1468 = vmatprep.subr.mxu0 0.0
    %1469 = vmatpush2.msra.mxu0 0.0
    %1470 = vmatprep.subr.mxu0 0.0
    %1471 = vmatpush2.msra.mxu0 0.0
    %1472 = vmatprep.subr.mxu0 0.0
    %1473 = vmatpush2.msra.mxu0 0.0
    %1474 = vmatprep.subr.mxu0 0.0
    %1475 = vmatpush2.msra.mxu0 0.0
    %1476 = vmatprep.subr.mxu0 0.0
    %1477 = vmatpush2.msra.mxu0 0.0
    %1478 = vmatprep.subr.mxu0 0.0
    %1479 = vmatpush2.msra.mxu0 0.0
    %1480 = vmatprep.subr.mxu0 0.0
    %1481 = vmatpush2.msra.mxu0 0.0
    %1482 = vmatprep.subr.mxu0 0.0
    %1483 = vmatpush2.msra.mxu0 0.0
    %1484 = vmatprep.subr.mxu0 0.0
    %1485 = vmatpush2.msra.mxu0 0.0
    %1486 = vmatprep.subr.mxu0 0.0
    %1487 = vmatpush2.msra.mxu0 0.0
    %1488 = vmatprep.subr.mxu0 0.0
    %1489 = vmatpush2.msra.mxu0 0.0
    %1490 = vmatprep.subr.mxu0 0.0
    %1491 = vmatpush2.msra.mxu0 0.0
    %1492 = vmatprep.subr.mxu0 0.0
    %1493 = vmatpush2.msra.mxu0 0.0
    %1494 = vmatprep.mubr.f32.mxu0 0.0
    %1495 = vmatmul.mubr.f32.gmra.mxu0 %v1288
    %v1496 = vpop.f32.mrf.mxu0
    %v1497 = vadd.f32 0.0, %v1496
    %v1498 = vpop.f32.mrf.mxu0
    %v1499 = vadd.f32 0.0, %v1498
    %1500 = vdwg.mxu0
    %v1501 = vadd.f32 %v1291, %v1426
    %v1502 = vadd.f32 %v1292, %v1428
    %v1503 = vadd.f32 %v1293, %v1497
    %v1504 = vadd.f32 %v1294, %v1499
    %v1505 = vxor.u32 %v1501, 2147483648
    %v1506 = vmul.f32 %v1505, 1.442695
    %v1507 = vpow.pop %v1506
    %v1508 = vadd.f32 %v1507, 1.0
    %v1509 = vrcp.pop %v1508
    %v1510 = vmul.f32 1.0, %v1509
    %v1511 = vxor.u32 %v1502, 2147483648
    %v1512 = vmul.f32 %v1511, 1.442695
    %v1513 = vpow.pop %v1512
    %v1514 = vadd.f32 %v1513, 1.0
    %v1515 = vrcp.pop %v1514
    %v1516 = vmul.f32 1.0, %v1515
    %v1517 = vtanh.pop %v1503
    %v1518 = vxor.u32 %v1504, 2147483648
    %v1519 = vmul.f32 %v1518, 1.442695
    %v1520 = vpow.pop %v1519
    %v1521 = vadd.f32 %v1520, 1.0
    %v1522 = vrcp.pop %v1521
    %v1523 = vmul.f32 1.0, %v1522
    %v1524 = vmul.f32 %v1516, %v1289
    %v1525 = vmul.f32 %v1510, %v1517
    %v1526 = vadd.f32 %v1524, %v1525
    %v1527 = vtanh.pop %v1526
    %v1528 = vmul.f32 %v1523, %v1527
    %1529 = vst [vmem:[#allocation3] sm:$0xff] %v1526
    %1530 = vst [vmem:[#allocation2] sm:$0xff] %v1528
    %s1531 = scalar_lea.vmem [#allocation4], 40
    %1532 = vst [vmem:[%s1531] sm:$0xff] %v1528
    %v1533 = vld [vmem:[#allocation2] sm:$0xff]
    %v1534 = vld [vmem:[#allocation3] sm:$0xff]
    %s1535 = scalar_lea.vmem [#allocation5], 192
    %v1536 = vld [vmem:[%s1535] sm:$0xff]
    %v1537 = vld [vmem:[%s1535 + $0x8] sm:$0xff]
    %v1538 = vld [vmem:[%s1535 + $0x10] sm:$0xff]
    %v1539 = vld [vmem:[%s1535 + $0x18] sm:$0xff]
    %v1540 = vld [vmem:[#allocation8] sm:$0xff]
    %v1541 = vld [vmem:[#allocation8 + $0x8] sm:$0xff]
    %v1542 = vld [vmem:[#allocation8 + $0x10] sm:$0xff]
    %v1543 = vld [vmem:[#allocation8 + $0x18] sm:$0xff]
    %v1544 = vld [vmem:[#allocation8 + $0x20] sm:$0xff]
    %v1545 = vld [vmem:[#allocation8 + $0x28] sm:$0xff]
    %v1546 = vld [vmem:[#allocation8 + $0x30] sm:$0xff]
    %v1547 = vld [vmem:[#allocation8 + $0x38] sm:$0xff]
    %v1548 = vld [vmem:[#allocation8 + $0x40] sm:$0xff]
    %v1549 = vld [vmem:[#allocation8 + $0x48] sm:$0xff]
    %v1550 = vld [vmem:[#allocation8 + $0x50] sm:$0xff]
    %v1551 = vld [vmem:[#allocation8 + $0x58] sm:$0xff]
    %v1552 = vld [vmem:[#allocation8 + $0x60] sm:$0xff]
    %v1553 = vld [vmem:[#allocation8 + $0x68] sm:$0xff]
    %v1554 = vld [vmem:[#allocation8 + $0x70] sm:$0xff]
    %v1555 = vld [vmem:[#allocation8 + $0x78] sm:$0xff]
    %v1556 = vld [vmem:[#allocation8 + $0x80] sm:$0xff]
    %v1557 = vld [vmem:[#allocation8 + $0x88] sm:$0xff]
    %v1558 = vld [vmem:[#allocation8 + $0x90] sm:$0xff]
    %v1559 = vld [vmem:[#allocation8 + $0x98] sm:$0xff]
    %v1560 = vld [vmem:[#allocation8 + $0xa0] sm:$0xff]
    %v1561 = vld [vmem:[#allocation8 + $0xa8] sm:$0xff]
    %v1562 = vld [vmem:[#allocation8 + $0xb0] sm:$0xff]
    %v1563 = vld [vmem:[#allocation8 + $0xb8] sm:$0xff]
    %v1564 = vld [vmem:[#allocation8 + $0xc0] sm:$0xff]
    %v1565 = vld [vmem:[#allocation8 + $0xc8] sm:$0xff]
    %v1566 = vld [vmem:[#allocation8 + $0xd0] sm:$0xff]
    %v1567 = vld [vmem:[#allocation8 + $0xd8] sm:$0xff]
    %v1568 = vld [vmem:[#allocation8 + $0xe0] sm:$0xff]
    %v1569 = vld [vmem:[#allocation8 + $0xe8] sm:$0xff]
    %v1570 = vld [vmem:[#allocation8 + $0xf0] sm:$0xff]
    %v1571 = vld [vmem:[#allocation8 + $0xf8] sm:$0xff]
    %v1572 = vld [vmem:[#allocation8 + $0x100] sm:$0xff]
    %v1573 = vld [vmem:[#allocation8 + $0x108] sm:$0xff]
    %v1574 = vld [vmem:[#allocation8 + $0x110] sm:$0xff]
    %v1575 = vld [vmem:[#allocation8 + $0x118] sm:$0xff]
    %v1576 = vld [vmem:[#allocation8 + $0x120] sm:$0xff]
    %v1577 = vld [vmem:[#allocation8 + $0x128] sm:$0xff]
    %v1578 = vld [vmem:[#allocation8 + $0x130] sm:$0xff]
    %v1579 = vld [vmem:[#allocation8 + $0x138] sm:$0xff]
    %v1580 = vld [vmem:[#allocation8 + $0x140] sm:$0xff]
    %v1581 = vld [vmem:[#allocation8 + $0x148] sm:$0xff]
    %v1582 = vld [vmem:[#allocation8 + $0x150] sm:$0xff]
    %v1583 = vld [vmem:[#allocation8 + $0x158] sm:$0xff]
    %v1584 = vld [vmem:[#allocation8 + $0x160] sm:$0xff]
    %v1585 = vld [vmem:[#allocation8 + $0x168] sm:$0xff]
    %v1586 = vld [vmem:[#allocation8 + $0x170] sm:$0xff]
    %v1587 = vld [vmem:[#allocation8 + $0x178] sm:$0xff]
    %v1588 = vld [vmem:[#allocation8 + $0x180] sm:$0xff]
    %v1589 = vld [vmem:[#allocation8 + $0x188] sm:$0xff]
    %v1590 = vld [vmem:[#allocation8 + $0x190] sm:$0xff]
    %v1591 = vld [vmem:[#allocation8 + $0x198] sm:$0xff]
    %v1592 = vld [vmem:[#allocation8 + $0x1a0] sm:$0xff]
    %v1593 = vld [vmem:[#allocation8 + $0x1a8] sm:$0xff]
    %v1594 = vld [vmem:[#allocation8 + $0x1b0] sm:$0xff]
    %v1595 = vld [vmem:[#allocation8 + $0x1b8] sm:$0xff]
    %v1596 = vld [vmem:[#allocation8 + $0x1c0] sm:$0xff]
    %v1597 = vld [vmem:[#allocation8 + $0x1c8] sm:$0xff]
    %v1598 = vld [vmem:[#allocation8 + $0x1d0] sm:$0xff]
    %v1599 = vld [vmem:[#allocation8 + $0x1d8] sm:$0xff]
    %v1600 = vld [vmem:[#allocation8 + $0x1e0] sm:$0xff]
    %v1601 = vld [vmem:[#allocation8 + $0x1e8] sm:$0xff]
    %v1602 = vld [vmem:[#allocation8 + $0x1f0] sm:$0xff]
    %v1603 = vld [vmem:[#allocation8 + $0x1f8] sm:$0xff]
    %1604 = vmatprep.subr.mxu0 %v1601
    %1605 = vmatpush1.msra.mxu0 %v1600
    %1606 = vmatprep.subr.mxu0 %v1597
    %1607 = vmatpush1.msra.mxu0 %v1596
    %1608 = vmatprep.subr.mxu0 %v1593
    %1609 = vmatpush1.msra.mxu0 %v1592
    %1610 = vmatprep.subr.mxu0 %v1589
    %1611 = vmatpush1.msra.mxu0 %v1588
    %1612 = vmatprep.subr.mxu0 %v1585
    %1613 = vmatpush1.msra.mxu0 %v1584
    %1614 = vmatprep.subr.mxu0 %v1581
    %1615 = vmatpush1.msra.mxu0 %v1580
    %1616 = vmatprep.subr.mxu0 %v1577
    %1617 = vmatpush1.msra.mxu0 %v1576
    %1618 = vmatprep.subr.mxu0 %v1573
    %1619 = vmatpush1.msra.mxu0 %v1572
    %1620 = vmatprep.subr.mxu0 %v1569
    %1621 = vmatpush1.msra.mxu0 %v1568
    %1622 = vmatprep.subr.mxu0 %v1565
    %1623 = vmatpush1.msra.mxu0 %v1564
    %1624 = vmatprep.subr.mxu0 %v1561
    %1625 = vmatpush1.msra.mxu0 %v1560
    %1626 = vmatprep.subr.mxu0 %v1557
    %1627 = vmatpush1.msra.mxu0 %v1556
    %1628 = vmatprep.subr.mxu0 %v1553
    %1629 = vmatpush1.msra.mxu0 %v1552
    %1630 = vmatprep.subr.mxu0 %v1549
    %1631 = vmatpush1.msra.mxu0 %v1548
    %1632 = vmatprep.subr.mxu0 %v1545
    %1633 = vmatpush1.msra.mxu0 %v1544
    %1634 = vmatprep.subr.mxu0 %v1541
    %1635 = vmatpush1.msra.mxu0 %v1540
    %1636 = vmatprep.subr.mxu0 0.0
    %1637 = vmatpush2.msra.mxu0 0.0
    %1638 = vmatprep.subr.mxu0 0.0
    %1639 = vmatpush2.msra.mxu0 0.0
    %1640 = vmatprep.subr.mxu0 0.0
    %1641 = vmatpush2.msra.mxu0 0.0
    %1642 = vmatprep.subr.mxu0 0.0
    %1643 = vmatpush2.msra.mxu0 0.0
    %1644 = vmatprep.subr.mxu0 0.0
    %1645 = vmatpush2.msra.mxu0 0.0
    %1646 = vmatprep.subr.mxu0 0.0
    %1647 = vmatpush2.msra.mxu0 0.0
    %1648 = vmatprep.subr.mxu0 0.0
    %1649 = vmatpush2.msra.mxu0 0.0
    %1650 = vmatprep.subr.mxu0 0.0
    %1651 = vmatpush2.msra.mxu0 0.0
    %1652 = vmatprep.subr.mxu0 0.0
    %1653 = vmatpush2.msra.mxu0 0.0
    %1654 = vmatprep.subr.mxu0 0.0
    %1655 = vmatpush2.msra.mxu0 0.0
    %1656 = vmatprep.subr.mxu0 0.0
    %1657 = vmatpush2.msra.mxu0 0.0
    %1658 = vmatprep.subr.mxu0 0.0
    %1659 = vmatpush2.msra.mxu0 0.0
    %1660 = vmatprep.subr.mxu0 0.0
    %1661 = vmatpush2.msra.mxu0 0.0
    %1662 = vmatprep.subr.mxu0 0.0
    %1663 = vmatpush2.msra.mxu0 0.0
    %1664 = vmatprep.subr.mxu0 0.0
    %1665 = vmatpush2.msra.mxu0 0.0
    %1666 = vmatprep.subr.mxu0 0.0
    %1667 = vmatpush2.msra.mxu0 0.0
    %1668 = vmatprep.mubr.f32.mxu0 0.0
    %1669 = vmatmul.mubr.f32.gmra.mxu0 %v1533
    %v1670 = vpop.f32.mrf.mxu0
    %v1671 = vadd.f32 0.0, %v1670
    %v1672 = vpop.f32.mrf.mxu0
    %v1673 = vadd.f32 0.0, %v1672
    %1674 = vdwg.mxu0
    %1675 = vmatprep.subr.mxu0 %v1603
    %1676 = vmatpush1.msra.mxu0 %v1602
    %1677 = vmatprep.subr.mxu0 %v1599
    %1678 = vmatpush1.msra.mxu0 %v1598
    %1679 = vmatprep.subr.mxu0 %v1595
    %1680 = vmatpush1.msra.mxu0 %v1594
    %1681 = vmatprep.subr.mxu0 %v1591
    %1682 = vmatpush1.msra.mxu0 %v1590
    %1683 = vmatprep.subr.mxu0 %v1587
    %1684 = vmatpush1.msra.mxu0 %v1586
    %1685 = vmatprep.subr.mxu0 %v1583
    %1686 = vmatpush1.msra.mxu0 %v1582
    %1687 = vmatprep.subr.mxu0 %v1579
    %1688 = vmatpush1.msra.mxu0 %v1578
    %1689 = vmatprep.subr.mxu0 %v1575
    %1690 = vmatpush1.msra.mxu0 %v1574
    %1691 = vmatprep.subr.mxu0 %v1571
    %1692 = vmatpush1.msra.mxu0 %v1570
    %1693 = vmatprep.subr.mxu0 %v1567
    %1694 = vmatpush1.msra.mxu0 %v1566
    %1695 = vmatprep.subr.mxu0 %v1563
    %1696 = vmatpush1.msra.mxu0 %v1562
    %1697 = vmatprep.subr.mxu0 %v1559
    %1698 = vmatpush1.msra.mxu0 %v1558
    %1699 = vmatprep.subr.mxu0 %v1555
    %1700 = vmatpush1.msra.mxu0 %v1554
    %1701 = vmatprep.subr.mxu0 %v1551
    %1702 = vmatpush1.msra.mxu0 %v1550
    %1703 = vmatprep.subr.mxu0 %v1547
    %1704 = vmatpush1.msra.mxu0 %v1546
    %1705 = vmatprep.subr.mxu0 %v1543
    %1706 = vmatpush1.msra.mxu0 %v1542
    %1707 = vmatprep.subr.mxu0 0.0
    %1708 = vmatpush2.msra.mxu0 0.0
    %1709 = vmatprep.subr.mxu0 0.0
    %1710 = vmatpush2.msra.mxu0 0.0
    %1711 = vmatprep.subr.mxu0 0.0
    %1712 = vmatpush2.msra.mxu0 0.0
    %1713 = vmatprep.subr.mxu0 0.0
    %1714 = vmatpush2.msra.mxu0 0.0
    %1715 = vmatprep.subr.mxu0 0.0
    %1716 = vmatpush2.msra.mxu0 0.0
    %1717 = vmatprep.subr.mxu0 0.0
    %1718 = vmatpush2.msra.mxu0 0.0
    %1719 = vmatprep.subr.mxu0 0.0
    %1720 = vmatpush2.msra.mxu0 0.0
    %1721 = vmatprep.subr.mxu0 0.0
    %1722 = vmatpush2.msra.mxu0 0.0
    %1723 = vmatprep.subr.mxu0 0.0
    %1724 = vmatpush2.msra.mxu0 0.0
    %1725 = vmatprep.subr.mxu0 0.0
    %1726 = vmatpush2.msra.mxu0 0.0
    %1727 = vmatprep.subr.mxu0 0.0
    %1728 = vmatpush2.msra.mxu0 0.0
    %1729 = vmatprep.subr.mxu0 0.0
    %1730 = vmatpush2.msra.mxu0 0.0
    %1731 = vmatprep.subr.mxu0 0.0
    %1732 = vmatpush2.msra.mxu0 0.0
    %1733 = vmatprep.subr.mxu0 0.0
    %1734 = vmatpush2.msra.mxu0 0.0
    %1735 = vmatprep.subr.mxu0 0.0
    %1736 = vmatpush2.msra.mxu0 0.0
    %1737 = vmatprep.subr.mxu0 0.0
    %1738 = vmatpush2.msra.mxu0 0.0
    %1739 = vmatprep.mubr.f32.mxu0 0.0
    %1740 = vmatmul.mubr.f32.gmra.mxu0 %v1533
    %v1741 = vpop.f32.mrf.mxu0
    %v1742 = vadd.f32 0.0, %v1741
    %v1743 = vpop.f32.mrf.mxu0
    %v1744 = vadd.f32 0.0, %v1743
    %1745 = vdwg.mxu0
    %v1746 = vadd.f32 %v1536, %v1671
    %v1747 = vadd.f32 %v1537, %v1673
    %v1748 = vadd.f32 %v1538, %v1742
    %v1749 = vadd.f32 %v1539, %v1744
    %v1750 = vxor.u32 %v1746, 2147483648
    %v1751 = vmul.f32 %v1750, 1.442695
    %v1752 = vpow.pop %v1751
    %v1753 = vadd.f32 %v1752, 1.0
    %v1754 = vrcp.pop %v1753
    %v1755 = vmul.f32 1.0, %v1754
    %v1756 = vxor.u32 %v1747, 2147483648
    %v1757 = vmul.f32 %v1756, 1.442695
    %v1758 = vpow.pop %v1757
    %v1759 = vadd.f32 %v1758, 1.0
    %v1760 = vrcp.pop %v1759
    %v1761 = vmul.f32 1.0, %v1760
    %v1762 = vtanh.pop %v1748
    %v1763 = vxor.u32 %v1749, 2147483648
    %v1764 = vmul.f32 %v1763, 1.442695
    %v1765 = vpow.pop %v1764
    %v1766 = vadd.f32 %v1765, 1.0
    %v1767 = vrcp.pop %v1766
    %v1768 = vmul.f32 1.0, %v1767
    %v1769 = vmul.f32 %v1761, %v1534
    %v1770 = vmul.f32 %v1755, %v1762
    %v1771 = vadd.f32 %v1769, %v1770
    %v1772 = vtanh.pop %v1771
    %v1773 = vmul.f32 %v1768, %v1772
    %1774 = vst [vmem:[#allocation3] sm:$0xff] %v1771
    %1775 = vst [vmem:[#allocation2] sm:$0xff] %v1773
    %s1776 = scalar_lea.vmem [#allocation4], 48
    %1777 = vst [vmem:[%s1776] sm:$0xff] %v1773
    %v1778 = vld [vmem:[#allocation2] sm:$0xff]
    %v1779 = vld [vmem:[#allocation3] sm:$0xff]
    %s1780 = scalar_lea.vmem [#allocation5], 224
    %v1781 = vld [vmem:[%s1780] sm:$0xff]
    %v1782 = vld [vmem:[%s1780 + $0x8] sm:$0xff]
    %v1783 = vld [vmem:[%s1780 + $0x10] sm:$0xff]
    %v1784 = vld [vmem:[%s1780 + $0x18] sm:$0xff]
    %v1785 = vld [vmem:[#allocation8] sm:$0xff]
    %v1786 = vld [vmem:[#allocation8 + $0x8] sm:$0xff]
    %v1787 = vld [vmem:[#allocation8 + $0x10] sm:$0xff]
    %v1788 = vld [vmem:[#allocation8 + $0x18] sm:$0xff]
    %v1789 = vld [vmem:[#allocation8 + $0x20] sm:$0xff]
    %v1790 = vld [vmem:[#allocation8 + $0x28] sm:$0xff]
    %v1791 = vld [vmem:[#allocation8 + $0x30] sm:$0xff]
    %v1792 = vld [vmem:[#allocation8 + $0x38] sm:$0xff]
    %v1793 = vld [vmem:[#allocation8 + $0x40] sm:$0xff]
    %v1794 = vld [vmem:[#allocation8 + $0x48] sm:$0xff]
    %v1795 = vld [vmem:[#allocation8 + $0x50] sm:$0xff]
    %v1796 = vld [vmem:[#allocation8 + $0x58] sm:$0xff]
    %v1797 = vld [vmem:[#allocation8 + $0x60] sm:$0xff]
    %v1798 = vld [vmem:[#allocation8 + $0x68] sm:$0xff]
    %v1799 = vld [vmem:[#allocation8 + $0x70] sm:$0xff]
    %v1800 = vld [vmem:[#allocation8 + $0x78] sm:$0xff]
    %v1801 = vld [vmem:[#allocation8 + $0x80] sm:$0xff]
    %v1802 = vld [vmem:[#allocation8 + $0x88] sm:$0xff]
    %v1803 = vld [vmem:[#allocation8 + $0x90] sm:$0xff]
    %v1804 = vld [vmem:[#allocation8 + $0x98] sm:$0xff]
    %v1805 = vld [vmem:[#allocation8 + $0xa0] sm:$0xff]
    %v1806 = vld [vmem:[#allocation8 + $0xa8] sm:$0xff]
    %v1807 = vld [vmem:[#allocation8 + $0xb0] sm:$0xff]
    %v1808 = vld [vmem:[#allocation8 + $0xb8] sm:$0xff]
    %v1809 = vld [vmem:[#allocation8 + $0xc0] sm:$0xff]
    %v1810 = vld [vmem:[#allocation8 + $0xc8] sm:$0xff]
    %v1811 = vld [vmem:[#allocation8 + $0xd0] sm:$0xff]
    %v1812 = vld [vmem:[#allocation8 + $0xd8] sm:$0xff]
    %v1813 = vld [vmem:[#allocation8 + $0xe0] sm:$0xff]
    %v1814 = vld [vmem:[#allocation8 + $0xe8] sm:$0xff]
    %v1815 = vld [vmem:[#allocation8 + $0xf0] sm:$0xff]
    %v1816 = vld [vmem:[#allocation8 + $0xf8] sm:$0xff]
    %v1817 = vld [vmem:[#allocation8 + $0x100] sm:$0xff]
    %v1818 = vld [vmem:[#allocation8 + $0x108] sm:$0xff]
    %v1819 = vld [vmem:[#allocation8 + $0x110] sm:$0xff]
    %v1820 = vld [vmem:[#allocation8 + $0x118] sm:$0xff]
    %v1821 = vld [vmem:[#allocation8 + $0x120] sm:$0xff]
    %v1822 = vld [vmem:[#allocation8 + $0x128] sm:$0xff]
    %v1823 = vld [vmem:[#allocation8 + $0x130] sm:$0xff]
    %v1824 = vld [vmem:[#allocation8 + $0x138] sm:$0xff]
    %v1825 = vld [vmem:[#allocation8 + $0x140] sm:$0xff]
    %v1826 = vld [vmem:[#allocation8 + $0x148] sm:$0xff]
    %v1827 = vld [vmem:[#allocation8 + $0x150] sm:$0xff]
    %v1828 = vld [vmem:[#allocation8 + $0x158] sm:$0xff]
    %v1829 = vld [vmem:[#allocation8 + $0x160] sm:$0xff]
    %v1830 = vld [vmem:[#allocation8 + $0x168] sm:$0xff]
    %v1831 = vld [vmem:[#allocation8 + $0x170] sm:$0xff]
    %v1832 = vld [vmem:[#allocation8 + $0x178] sm:$0xff]
    %v1833 = vld [vmem:[#allocation8 + $0x180] sm:$0xff]
    %v1834 = vld [vmem:[#allocation8 + $0x188] sm:$0xff]
    %v1835 = vld [vmem:[#allocation8 + $0x190] sm:$0xff]
    %v1836 = vld [vmem:[#allocation8 + $0x198] sm:$0xff]
    %v1837 = vld [vmem:[#allocation8 + $0x1a0] sm:$0xff]
    %v1838 = vld [vmem:[#allocation8 + $0x1a8] sm:$0xff]
    %v1839 = vld [vmem:[#allocation8 + $0x1b0] sm:$0xff]
    %v1840 = vld [vmem:[#allocation8 + $0x1b8] sm:$0xff]
    %v1841 = vld [vmem:[#allocation8 + $0x1c0] sm:$0xff]
    %v1842 = vld [vmem:[#allocation8 + $0x1c8] sm:$0xff]
    %v1843 = vld [vmem:[#allocation8 + $0x1d0] sm:$0xff]
    %v1844 = vld [vmem:[#allocation8 + $0x1d8] sm:$0xff]
    %v1845 = vld [vmem:[#allocation8 + $0x1e0] sm:$0xff]
    %v1846 = vld [vmem:[#allocation8 + $0x1e8] sm:$0xff]
    %v1847 = vld [vmem:[#allocation8 + $0x1f0] sm:$0xff]
    %v1848 = vld [vmem:[#allocation8 + $0x1f8] sm:$0xff]
    %1849 = vmatprep.subr.mxu0 %v1846
    %1850 = vmatpush1.msra.mxu0 %v1845
    %1851 = vmatprep.subr.mxu0 %v1842
    %1852 = vmatpush1.msra.mxu0 %v1841
    %1853 = vmatprep.subr.mxu0 %v1838
    %1854 = vmatpush1.msra.mxu0 %v1837
    %1855 = vmatprep.subr.mxu0 %v1834
    %1856 = vmatpush1.msra.mxu0 %v1833
    %1857 = vmatprep.subr.mxu0 %v1830
    %1858 = vmatpush1.msra.mxu0 %v1829
    %1859 = vmatprep.subr.mxu0 %v1826
    %1860 = vmatpush1.msra.mxu0 %v1825
    %1861 = vmatprep.subr.mxu0 %v1822
    %1862 = vmatpush1.msra.mxu0 %v1821
    %1863 = vmatprep.subr.mxu0 %v1818
    %1864 = vmatpush1.msra.mxu0 %v1817
    %1865 = vmatprep.subr.mxu0 %v1814
    %1866 = vmatpush1.msra.mxu0 %v1813
    %1867 = vmatprep.subr.mxu0 %v1810
    %1868 = vmatpush1.msra.mxu0 %v1809
    %1869 = vmatprep.subr.mxu0 %v1806
    %1870 = vmatpush1.msra.mxu0 %v1805
    %1871 = vmatprep.subr.mxu0 %v1802
    %1872 = vmatpush1.msra.mxu0 %v1801
    %1873 = vmatprep.subr.mxu0 %v1798
    %1874 = vmatpush1.msra.mxu0 %v1797
    %1875 = vmatprep.subr.mxu0 %v1794
    %1876 = vmatpush1.msra.mxu0 %v1793
    %1877 = vmatprep.subr.mxu0 %v1790
    %1878 = vmatpush1.msra.mxu0 %v1789
    %1879 = vmatprep.subr.mxu0 %v1786
    %1880 = vmatpush1.msra.mxu0 %v1785
    %1881 = vmatprep.subr.mxu0 0.0
    %1882 = vmatpush2.msra.mxu0 0.0
    %1883 = vmatprep.subr.mxu0 0.0
    %1884 = vmatpush2.msra.mxu0 0.0
    %1885 = vmatprep.subr.mxu0 0.0
    %1886 = vmatpush2.msra.mxu0 0.0
    %1887 = vmatprep.subr.mxu0 0.0
    %1888 = vmatpush2.msra.mxu0 0.0
    %1889 = vmatprep.subr.mxu0 0.0
    %1890 = vmatpush2.msra.mxu0 0.0
    %1891 = vmatprep.subr.mxu0 0.0
    %1892 = vmatpush2.msra.mxu0 0.0
    %1893 = vmatprep.subr.mxu0 0.0
    %1894 = vmatpush2.msra.mxu0 0.0
    %1895 = vmatprep.subr.mxu0 0.0
    %1896 = vmatpush2.msra.mxu0 0.0
    %1897 = vmatprep.subr.mxu0 0.0
    %1898 = vmatpush2.msra.mxu0 0.0
    %1899 = vmatprep.subr.mxu0 0.0
    %1900 = vmatpush2.msra.mxu0 0.0
    %1901 = vmatprep.subr.mxu0 0.0
    %1902 = vmatpush2.msra.mxu0 0.0
    %1903 = vmatprep.subr.mxu0 0.0
    %1904 = vmatpush2.msra.mxu0 0.0
    %1905 = vmatprep.subr.mxu0 0.0
    %1906 = vmatpush2.msra.mxu0 0.0
    %1907 = vmatprep.subr.mxu0 0.0
    %1908 = vmatpush2.msra.mxu0 0.0
    %1909 = vmatprep.subr.mxu0 0.0
    %1910 = vmatpush2.msra.mxu0 0.0
    %1911 = vmatprep.subr.mxu0 0.0
    %1912 = vmatpush2.msra.mxu0 0.0
    %1913 = vmatprep.mubr.f32.mxu0 0.0
    %1914 = vmatmul.mubr.f32.gmra.mxu0 %v1778
    %v1915 = vpop.f32.mrf.mxu0
    %v1916 = vadd.f32 0.0, %v1915
    %v1917 = vpop.f32.mrf.mxu0
    %v1918 = vadd.f32 0.0, %v1917
    %1919 = vdwg.mxu0
    %1920 = vmatprep.subr.mxu0 %v1848
    %1921 = vmatpush1.msra.mxu0 %v1847
    %1922 = vmatprep.subr.mxu0 %v1844
    %1923 = vmatpush1.msra.mxu0 %v1843
    %1924 = vmatprep.subr.mxu0 %v1840
    %1925 = vmatpush1.msra.mxu0 %v1839
    %1926 = vmatprep.subr.mxu0 %v1836
    %1927 = vmatpush1.msra.mxu0 %v1835
    %1928 = vmatprep.subr.mxu0 %v1832
    %1929 = vmatpush1.msra.mxu0 %v1831
    %1930 = vmatprep.subr.mxu0 %v1828
    %1931 = vmatpush1.msra.mxu0 %v1827
    %1932 = vmatprep.subr.mxu0 %v1824
    %1933 = vmatpush1.msra.mxu0 %v1823
    %1934 = vmatprep.subr.mxu0 %v1820
    %1935 = vmatpush1.msra.mxu0 %v1819
    %1936 = vmatprep.subr.mxu0 %v1816
    %1937 = vmatpush1.msra.mxu0 %v1815
    %1938 = vmatprep.subr.mxu0 %v1812
    %1939 = vmatpush1.msra.mxu0 %v1811
    %1940 = vmatprep.subr.mxu0 %v1808
    %1941 = vmatpush1.msra.mxu0 %v1807
    %1942 = vmatprep.subr.mxu0 %v1804
    %1943 = vmatpush1.msra.mxu0 %v1803
    %1944 = vmatprep.subr.mxu0 %v1800
    %1945 = vmatpush1.msra.mxu0 %v1799
    %1946 = vmatprep.subr.mxu0 %v1796
    %1947 = vmatpush1.msra.mxu0 %v1795
    %1948 = vmatprep.subr.mxu0 %v1792
    %1949 = vmatpush1.msra.mxu0 %v1791
    %1950 = vmatprep.subr.mxu0 %v1788
    %1951 = vmatpush1.msra.mxu0 %v1787
    %1952 = vmatprep.subr.mxu0 0.0
    %1953 = vmatpush2.msra.mxu0 0.0
    %1954 = vmatprep.subr.mxu0 0.0
    %1955 = vmatpush2.msra.mxu0 0.0
    %1956 = vmatprep.subr.mxu0 0.0
    %1957 = vmatpush2.msra.mxu0 0.0
    %1958 = vmatprep.subr.mxu0 0.0
    %1959 = vmatpush2.msra.mxu0 0.0
    %1960 = vmatprep.subr.mxu0 0.0
    %1961 = vmatpush2.msra.mxu0 0.0
    %1962 = vmatprep.subr.mxu0 0.0
    %1963 = vmatpush2.msra.mxu0 0.0
    %1964 = vmatprep.subr.mxu0 0.0
    %1965 = vmatpush2.msra.mxu0 0.0
    %1966 = vmatprep.subr.mxu0 0.0
    %1967 = vmatpush2.msra.mxu0 0.0
    %1968 = vmatprep.subr.mxu0 0.0
    %1969 = vmatpush2.msra.mxu0 0.0
    %1970 = vmatprep.subr.mxu0 0.0
    %1971 = vmatpush2.msra.mxu0 0.0
    %1972 = vmatprep.subr.mxu0 0.0
    %1973 = vmatpush2.msra.mxu0 0.0
    %1974 = vmatprep.subr.mxu0 0.0
    %1975 = vmatpush2.msra.mxu0 0.0
    %1976 = vmatprep.subr.mxu0 0.0
    %1977 = vmatpush2.msra.mxu0 0.0
    %1978 = vmatprep.subr.mxu0 0.0
    %1979 = vmatpush2.msra.mxu0 0.0
    %1980 = vmatprep.subr.mxu0 0.0
    %1981 = vmatpush2.msra.mxu0 0.0
    %1982 = vmatprep.subr.mxu0 0.0
    %1983 = vmatpush2.msra.mxu0 0.0
    %1984 = vmatprep.mubr.f32.mxu0 0.0
    %1985 = vmatmul.mubr.f32.gmra.mxu0 %v1778
    %v1986 = vpop.f32.mrf.mxu0
    %v1987 = vadd.f32 0.0, %v1986
    %v1988 = vpop.f32.mrf.mxu0
    %v1989 = vadd.f32 0.0, %v1988
    %1990 = vdwg.mxu0
    %v1991 = vadd.f32 %v1781, %v1916
    %v1992 = vadd.f32 %v1782, %v1918
    %v1993 = vadd.f32 %v1783, %v1987
    %v1994 = vadd.f32 %v1784, %v1989
    %v1995 = vxor.u32 %v1991, 2147483648
    %v1996 = vmul.f32 %v1995, 1.442695
    %v1997 = vpow.pop %v1996
    %v1998 = vadd.f32 %v1997, 1.0
    %v1999 = vrcp.pop %v1998
    %v2000 = vmul.f32 1.0, %v1999
    %v2001 = vxor.u32 %v1992, 2147483648
    %v2002 = vmul.f32 %v2001, 1.442695
    %v2003 = vpow.pop %v2002
    %v2004 = vadd.f32 %v2003, 1.0
    %v2005 = vrcp.pop %v2004
    %v2006 = vmul.f32 1.0, %v2005
    %v2007 = vtanh.pop %v1993
    %v2008 = vxor.u32 %v1994, 2147483648
    %v2009 = vmul.f32 %v2008, 1.442695
    %v2010 = vpow.pop %v2009
    %v2011 = vadd.f32 %v2010, 1.0
    %v2012 = vrcp.pop %v2011
    %v2013 = vmul.f32 1.0, %v2012
    %v2014 = vmul.f32 %v2006, %v1779
    %v2015 = vmul.f32 %v2000, %v2007
    %v2016 = vadd.f32 %v2014, %v2015
    %v2017 = vtanh.pop %v2016
    %v2018 = vmul.f32 %v2013, %v2017
    %2019 = vst [vmem:[#allocation3] sm:$0xff] %v2016
    %2020 = vst [vmem:[#allocation2] sm:$0xff] %v2018
    %s2021 = scalar_lea.vmem [#allocation4], 56
    %2022 = vst [vmem:[%s2021] sm:$0xff] %v2018
    %v2023 = vld [vmem:[#allocation4] sm:$0xff]
    %v2024 = vld [vmem:[#allocation4 + $0x8] sm:$0xff]
    %v2025 = vld [vmem:[#allocation4 + $0x10] sm:$0xff]
    %v2026 = vld [vmem:[#allocation4 + $0x18] sm:$0xff]
    %v2027 = vld [vmem:[#allocation4 + $0x20] sm:$0xff]
    %v2028 = vld [vmem:[#allocation4 + $0x28] sm:$0xff]
    %v2029 = vld [vmem:[#allocation4 + $0x30] sm:$0xff]
    %v2030 = vld [vmem:[#allocation4 + $0x38] sm:$0xff]
    %v2031 = vld [vmem:[#allocation10] sm:$0xff]
    %v2032 = vld [vmem:[#allocation10 + $0x8] sm:$0xff]
    %v2033 = vld [vmem:[#allocation10 + $0x10] sm:$0xff]
    %v2034 = vld [vmem:[#allocation10 + $0x18] sm:$0xff]
    %v2035 = vld [vmem:[#allocation10 + $0x20] sm:$0xff]
    %v2036 = vld [vmem:[#allocation10 + $0x28] sm:$0xff]
    %v2037 = vld [vmem:[#allocation10 + $0x30] sm:$0xff]
    %v2038 = vld [vmem:[#allocation10 + $0x38] sm:$0xff]
    %v2039 = vld [vmem:[#allocation10 + $0x40] sm:$0xff]
    %v2040 = vld [vmem:[#allocation10 + $0x48] sm:$0xff]
    %v2041 = vld [vmem:[#allocation10 + $0x50] sm:$0xff]
    %v2042 = vld [vmem:[#allocation10 + $0x58] sm:$0xff]
    %v2043 = vld [vmem:[#allocation10 + $0x60] sm:$0xff]
    %v2044 = vld [vmem:[#allocation10 + $0x68] sm:$0xff]
    %v2045 = vld [vmem:[#allocation10 + $0x70] sm:$0xff]
    %v2046 = vld [vmem:[#allocation10 + $0x78] sm:$0xff]
    %v2047 = vld [vmem:[%s3] sm:$0x1]
    %v2049 = vlaneseq
    %v2050 = vshrl.u32 %v2049, 7
    %v2051 = vsub.s32 0, %v2050
    %v2052 = vrot.slane %v2047, %v2051
    %2054 = vmatprep.subr.mxu0 0.0
    %2055 = vmatpush1.msra.mxu0 %v2046
    %2056 = vmatprep.subr.mxu0 0.0
    %2057 = vmatpush1.msra.mxu0 %v2045
    %2058 = vmatprep.subr.mxu0 0.0
    %2059 = vmatpush1.msra.mxu0 %v2044
    %2060 = vmatprep.subr.mxu0 0.0
    %2061 = vmatpush1.msra.mxu0 %v2043
    %2062 = vmatprep.subr.mxu0 0.0
    %2063 = vmatpush1.msra.mxu0 %v2042
    %2064 = vmatprep.subr.mxu0 0.0
    %2065 = vmatpush1.msra.mxu0 %v2041
    %2066 = vmatprep.subr.mxu0 0.0
    %2067 = vmatpush1.msra.mxu0 %v2040
    %2068 = vmatprep.subr.mxu0 0.0
    %2069 = vmatpush1.msra.mxu0 %v2039
    %2070 = vmatprep.subr.mxu0 0.0
    %2071 = vmatpush1.msra.mxu0 %v2038
    %2072 = vmatprep.subr.mxu0 0.0
    %2073 = vmatpush1.msra.mxu0 %v2037
    %2074 = vmatprep.subr.mxu0 0.0
    %2075 = vmatpush1.msra.mxu0 %v2036
    %2076 = vmatprep.subr.mxu0 0.0
    %2077 = vmatpush1.msra.mxu0 %v2035
    %2078 = vmatprep.subr.mxu0 0.0
    %2079 = vmatpush1.msra.mxu0 %v2034
    %2080 = vmatprep.subr.mxu0 0.0
    %2081 = vmatpush1.msra.mxu0 %v2033
    %2082 = vmatprep.subr.mxu0 0.0
    %2083 = vmatpush1.msra.mxu0 %v2032
    %2084 = vmatprep.subr.mxu0 0.0
    %2085 = vmatpush1.msra.mxu0 %v2031
    %2086 = vmatprep.subr.mxu0 0.0
    %2087 = vmatpush2.msra.mxu0 0.0
    %2088 = vmatprep.subr.mxu0 0.0
    %2089 = vmatpush2.msra.mxu0 0.0
    %2090 = vmatprep.subr.mxu0 0.0
    %2091 = vmatpush2.msra.mxu0 0.0
    %2092 = vmatprep.subr.mxu0 0.0
    %2093 = vmatpush2.msra.mxu0 0.0
    %2094 = vmatprep.subr.mxu0 0.0
    %2095 = vmatpush2.msra.mxu0 0.0
    %2096 = vmatprep.subr.mxu0 0.0
    %2097 = vmatpush2.msra.mxu0 0.0
    %2098 = vmatprep.subr.mxu0 0.0
    %2099 = vmatpush2.msra.mxu0 0.0
    %2100 = vmatprep.subr.mxu0 0.0
    %2101 = vmatpush2.msra.mxu0 0.0
    %2102 = vmatprep.subr.mxu0 0.0
    %2103 = vmatpush2.msra.mxu0 0.0
    %2104 = vmatprep.subr.mxu0 0.0
    %2105 = vmatpush2.msra.mxu0 0.0
    %2106 = vmatprep.subr.mxu0 0.0
    %2107 = vmatpush2.msra.mxu0 0.0
    %2108 = vmatprep.subr.mxu0 0.0
    %2109 = vmatpush2.msra.mxu0 0.0
    %2110 = vmatprep.subr.mxu0 0.0
    %2111 = vmatpush2.msra.mxu0 0.0
    %2112 = vmatprep.subr.mxu0 0.0
    %2113 = vmatpush2.msra.mxu0 0.0
    %2114 = vmatprep.subr.mxu0 0.0
    %2115 = vmatpush2.msra.mxu0 0.0
    %2116 = vmatprep.subr.mxu0 0.0
    %2117 = vmatpush2.msra.mxu0 0.0
    %2118 = vmatprep.mubr.f32.mxu0 0.0
    %2119 = vmatmul.mubr.f32.gmra.mxu0 %v2023
    %v2120 = vpop.f32.mrf.mxu0
    %v2121 = vadd.f32 %v2052, %v2120
    %v2122 = vpop.f32.mrf.mxu0
    %2123 = vmatprep.mubr.f32.mxu0 0.0
    %2124 = vmatmul.mubr.f32.gmra.mxu0 %v2024
    %v2125 = vpop.f32.mrf.mxu0
    %v2126 = vadd.f32 %v2052, %v2125
    %v2127 = vpop.f32.mrf.mxu0
    %2128 = vmatprep.mubr.f32.mxu0 0.0
    %2129 = vmatmul.mubr.f32.gmra.mxu0 %v2025
    %v2130 = vpop.f32.mrf.mxu0
    %v2131 = vadd.f32 %v2052, %v2130
    %v2132 = vpop.f32.mrf.mxu0
    %2133 = vmatprep.mubr.f32.mxu0 0.0
    %2134 = vmatmul.mubr.f32.gmra.mxu0 %v2026
    %v2135 = vpop.f32.mrf.mxu0
    %v2136 = vadd.f32 %v2052, %v2135
    %v2137 = vpop.f32.mrf.mxu0
    %2138 = vmatprep.mubr.f32.mxu0 0.0
    %2139 = vmatmul.mubr.f32.gmra.mxu0 %v2027
    %v2140 = vpop.f32.mrf.mxu0
    %v2141 = vadd.f32 %v2052, %v2140
    %v2142 = vpop.f32.mrf.mxu0
    %2143 = vmatprep.mubr.f32.mxu0 0.0
    %2144 = vmatmul.mubr.f32.gmra.mxu0 %v2028
    %v2145 = vpop.f32.mrf.mxu0
    %v2146 = vadd.f32 %v2052, %v2145
    %v2147 = vpop.f32.mrf.mxu0
    %2148 = vmatprep.mubr.f32.mxu0 0.0
    %2149 = vmatmul.mubr.f32.gmra.mxu0 %v2029
    %v2150 = vpop.f32.mrf.mxu0
    %v2151 = vadd.f32 %v2052, %v2150
    %v2152 = vpop.f32.mrf.mxu0
    %2153 = vmatprep.mubr.f32.mxu0 0.0
    %2154 = vmatmul.mubr.f32.gmra.mxu0 %v2030
    %v2155 = vpop.f32.mrf.mxu0
    %v2156 = vadd.f32 %v2052, %v2155
    %v2157 = vpop.f32.mrf.mxu0
    %2158 = vdwg.mxu0
    %v2159 = vxor.u32 %v2121, 2147483648
    %v2160 = vxor.u32 %v2126, 2147483648
    %v2161 = vxor.u32 %v2131, 2147483648
    %v2162 = vxor.u32 %v2136, 2147483648
    %v2163 = vxor.u32 %v2141, 2147483648
    %v2164 = vxor.u32 %v2146, 2147483648
    %v2165 = vxor.u32 %v2151, 2147483648
    %v2166 = vxor.u32 %v2156, 2147483648
    %v2167 = vmul.f32 %v2159, 1.442695
    %v2168 = vpow.pop %v2167
    %v2169 = vmul.f32 %v2160, 1.442695
    %v2170 = vpow.pop %v2169
    %v2171 = vmul.f32 %v2161, 1.442695
    %v2172 = vpow.pop %v2171
    %v2173 = vmul.f32 %v2162, 1.442695
    %v2174 = vpow.pop %v2173
    %v2175 = vmul.f32 %v2163, 1.442695
    %v2176 = vpow.pop %v2175
    %v2177 = vmul.f32 %v2164, 1.442695
    %v2178 = vpow.pop %v2177
    %v2179 = vmul.f32 %v2165, 1.442695
    %v2180 = vpow.pop %v2179
    %v2181 = vmul.f32 %v2166, 1.442695
    %v2182 = vpow.pop %v2181
    %v2183 = vadd.f32 %v2168, 1.0
    %v2184 = vadd.f32 %v2170, 1.0
    %v2185 = vadd.f32 %v2172, 1.0
    %v2186 = vadd.f32 %v2174, 1.0
    %v2187 = vadd.f32 %v2176, 1.0
    %v2188 = vadd.f32 %v2178, 1.0
    %v2189 = vadd.f32 %v2180, 1.0
    %v2190 = vadd.f32 %v2182, 1.0
    %v2191 = vrcp.pop %v2183
    %v2192 = vmul.f32 1.0, %v2191
    %v2193 = vrcp.pop %v2184
    %v2194 = vmul.f32 1.0, %v2193
    %v2195 = vrcp.pop %v2185
    %v2196 = vmul.f32 1.0, %v2195
    %v2197 = vrcp.pop %v2186
    %v2198 = vmul.f32 1.0, %v2197
    %v2199 = vrcp.pop %v2187
    %v2200 = vmul.f32 1.0, %v2199
    %v2201 = vrcp.pop %v2188
    %v2202 = vmul.f32 1.0, %v2201
    %v2203 = vrcp.pop %v2189
    %v2204 = vmul.f32 1.0, %v2203
    %v2205 = vrcp.pop %v2190
    %v2206 = vmul.f32 1.0, %v2205
    %2207 = vst [vmem:[#allocation11] sm:$0xff] %v2192
    %2208 = vst [vmem:[#allocation11 + $0x8] sm:$0xff] %v2194
    %2209 = vst [vmem:[#allocation11 + $0x10] sm:$0xff] %v2196
    %2210 = vst [vmem:[#allocation11 + $0x18] sm:$0xff] %v2198
    %2211 = vst [vmem:[#allocation11 + $0x20] sm:$0xff] %v2200
    %2212 = vst [vmem:[#allocation11 + $0x28] sm:$0xff] %v2202
    %2213 = vst [vmem:[#allocation11 + $0x30] sm:$0xff] %v2204
    %2214 = vst [vmem:[#allocation11 + $0x38] sm:$0xff] %v2206
    // Predicated region
    $region34: #{tpu_custom_call.1} parent=1 // pred_check
      _
    $region35: #{tpu_custom_call.1} parent=1 // pred_check_branch
      %2216 = sbr.rel (0) target = $region37
    $region36: #{tpu_custom_call.1} parent=1 // pred_region
      %s2218 = ssub.s32 1024, 1024
      %2219 = vsyncadd [#allocation7], %s2218
      %s2220 = sshll.u32 [#allocation11], 4
      %s2221 = int_to_ptr.vmem [resolvable:$true] %s2220
      %2226 = dma.vmem_to_hbm [thread:$0]  %s2221, 1024, %s4, [#allocation7], 128, 128, 8
    $region37: #{tpu_custom_call.1} parent=1 // pred_fallthru
      _
    // Predicated region
    $region38: #{tpu_custom_call.1} parent=1 // pred_check
      _
    $region39: #{tpu_custom_call.1} parent=1 // pred_check_branch
      %2228 = sbr.rel (0) target = $region41
    $region40: #{tpu_custom_call.1} parent=1 // pred_region
      %2229 = dma.done [#allocation7], 1024
    $region41: #{tpu_custom_call.1} parent=1 // pred_fallthru
      _
    %2230 = vsyncpa [#allocation6], 1
    %2231 = vsyncpa [#allocation9], 1
    %2232 = vsyncpa [#allocation7], 1

</llo_original>
